<compile_context>
chip_gen: v5e
topology: v5e:2x2
jax: 0.10.0
libtpu: 0.0.40
codegen_flags: <defaults>
</compile_context>

<pallas_src>
import functools
import math

import jax
import jax.numpy as jnp
from jax.experimental import pallas as pl
from jax.experimental.pallas import tpu as pltpu

# Full-precision host matmuls so the plain-JAX reference is a real f32 baseline.
jax.config.update("jax_default_matmul_precision", "highest")

_VMEM_LIMIT_BYTES = 32 << 20   # safe on v5e/v6e (128 MiB phys) and v7x (64 MiB phys)


def _round_up(x, m):
    return ((x + m - 1) // m) * m


def _group_semantics():
    """CORE_PARALLEL on v7x (2 TensorCores / chip); plain 'parallel' elsewhere."""
    try:
        kind = jax.devices()[0].device_kind.lower()
    except Exception:
        kind = ""
    if "v7" in kind:
        return (pltpu.CORE_PARALLEL,)
    return ("parallel",)


def _row_tile(M, row_tile):
    # Keep at least 2 grid steps when possible so the pipeline double-buffers.
    tm = min(row_tile, _round_up(pl.cdiv(M, 2), 8))
    return max(8, tm)


# ---------------------------------------------------------------------------
# Kernel 1: fused QKV projection  (x @ Wq, x @ Wk, x @ Wv) -> three outputs
# ---------------------------------------------------------------------------
def _qkv_kernel(x_ref, wq_ref, wk_ref, wv_ref, q_ref, k_ref, v_ref):
    x = x_ref[...]
    q_ref[...] = jnp.dot(x, wq_ref[...],
                         preferred_element_type=jnp.float32).astype(q_ref.dtype)
    k_ref[...] = jnp.dot(x, wk_ref[...],
                         preferred_element_type=jnp.float32).astype(k_ref.dtype)
    v_ref[...] = jnp.dot(x, wv_ref[...],
                         preferred_element_type=jnp.float32).astype(v_ref.dtype)


def qkv_project_pallas(x2, wq, wk, wv, *, out_dtype=jnp.bfloat16, row_tile=512):
    """x2: (M, K); wq/wk/wv: (K, N).  Returns q, k, v each (M, N) in out_dtype."""
    M, K = x2.shape
    N = wq.shape[1]
    tm = _row_tile(M, row_tile)
    Mp = _round_up(M, tm)
    if Mp != M:
        x2 = jnp.pad(x2, ((0, Mp - M), (0, 0)))

    shp = jax.ShapeDtypeStruct((Mp, N), out_dtype)
    w_spec = pl.BlockSpec((K, N), lambda i: (0, 0))     # weights resident
    o_spec = pl.BlockSpec((tm, N), lambda i: (i, 0))

    q, k, v = pl.pallas_call(
        _qkv_kernel,
        out_shape=(shp, shp, shp),
        grid_spec=pltpu.PrefetchScalarGridSpec(
            num_scalar_prefetch=0,
            grid=(Mp // tm,),
            in_specs=[pl.BlockSpec((tm, K), lambda i: (i, 0)),
                      w_spec, w_spec, w_spec],
            out_specs=[o_spec, o_spec, o_spec],
        ),
        compiler_params=pltpu.CompilerParams(
            dimension_semantics=("parallel",),
            vmem_limit_bytes=_VMEM_LIMIT_BYTES),
    )(x2, wq, wk, wv)
    return q[:M], k[:M], v[:M]


# ---------------------------------------------------------------------------
# Kernel 2: output projection  y = x @ W + b
# ---------------------------------------------------------------------------
def _linear_bias_kernel(x_ref, w_ref, b_ref, o_ref):
    acc = jnp.dot(x_ref[...], w_ref[...], preferred_element_type=jnp.float32)
    o_ref[...] = (acc + b_ref[...].astype(jnp.float32)).astype(o_ref.dtype)


def linear_bias_pallas(x2, w, b, *, out_dtype=None, row_tile=512):
    M, K = x2.shape
    N = w.shape[1]
    out_dtype = out_dtype or x2.dtype
    tm = _row_tile(M, row_tile)
    Mp = _round_up(M, tm)
    if Mp != M:
        x2 = jnp.pad(x2, ((0, Mp - M), (0, 0)))

    out = pl.pallas_call(
        _linear_bias_kernel,
        out_shape=jax.ShapeDtypeStruct((Mp, N), out_dtype),
        grid_spec=pltpu.PrefetchScalarGridSpec(
            num_scalar_prefetch=0,
            grid=(Mp // tm,),
            in_specs=[pl.BlockSpec((tm, K), lambda i: (i, 0)),
                      pl.BlockSpec((K, N), lambda i: (0, 0)),
                      pl.BlockSpec((1, N), lambda i: (0, 0))],
            out_specs=pl.BlockSpec((tm, N), lambda i: (i, 0)),
        ),
        compiler_params=pltpu.CompilerParams(
            dimension_semantics=("parallel",),
            vmem_limit_bytes=_VMEM_LIMIT_BYTES),
    )(x2, w, b.reshape(1, N))
    return out[:M]


# ---------------------------------------------------------------------------
# Kernel 3: fused batched window attention, heads merged into the lane dim.
#   q,k,v: (G, L, C) with C = heads*d   (groups G = independent (batch, win/pos))
#   pos  : (heads, L, L)
#   out  : per head h: softmax(scale*q_h @ k_h^T + pos_h) @ v_h, concat on lanes
# Heads are separated with lane masks so every HBM block and every matmul
# operand keeps the full, lane-dense C (or L) trailing dimension.
# ---------------------------------------------------------------------------
def _attn_kernel(q_ref, k_ref, v_ref, pos_ref, o_ref, *, scale, heads):
    gt, L, C = q_ref.shape
    d = C // heads
    f32 = jnp.float32

    # Scale in f32, keep MXU operands bf16 (accumulation stays f32).
    qb = (q_ref[...].astype(f32) * scale).astype(jnp.bfloat16)
    kb = k_ref[...].astype(jnp.bfloat16)
    vb = v_ref[...].astype(jnp.bfloat16)

    lane = jax.lax.broadcasted_iota(jnp.int32, (1, 1, C), 2)
    out = jnp.zeros((gt, L, C), f32)
    for h in range(heads):                      # unrolled; heads is small (4/8)
        mh = ((lane >= h * d) & (lane < (h + 1) * d)).astype(jnp.bfloat16)
        k_h = kb * mh                           # zero lanes outside head h
        v_h = vb * mh
        # Q @ K^T: contraction over full C; non-head lanes of k_h are zero so
        # this equals the per-head d-contraction (one MXU pass either way).
        sim = jnp.einsum('gic,gjc->gij', qb, k_h, preferred_element_type=f32)
        sim = sim + pos_ref[h].astype(f32)[None]
        sim = sim - jnp.max(sim, axis=-1, keepdims=True)
        p = jnp.exp(sim)                        # f32 softmax numerator
        s = jnp.sum(p, axis=-1, keepdims=True)  # f32 row sums
        pv = jnp.einsum('gij,gjc->gic', p.astype(jnp.bfloat16), v_h,
                        preferred_element_type=f32)
        # Normalize the PV output (not the LxL probabilities); EUP reciprocal.
        out = out + pv * pl.reciprocal(s, approx=True)
    o_ref[...] = out.astype(o_ref.dtype)


def window_attention_pallas(q, k, v, pos, scale, heads, *,
                            out_dtype=None, vmem_budget_bytes=12 << 20):
    """q,k,v: (G, L, C); pos: (heads, L, L) -> (G, L, C)."""
    G, L, C = q.shape
    out_dtype = out_dtype or q.dtype
    itemsize = jnp.dtype(q.dtype).itemsize

    # Honest per-group VMEM estimate: double-buffered q/k/v/out blocks plus an
    # f32 upper bound on in-kernel temporaries (bf16 copies, sim/exp, PV, acc).
    per_group = (8 * L * C * itemsize
                 + (10 * L * C + (2 + heads) * L * L) * 4)
    budget_gt = max(1, int(vmem_budget_bytes // max(per_group, 1)))
    # Keep >= ~8 grid steps so the pipeline double-buffers and (on v7x) both
    # TensorCores get work.
    gt = int(max(1, min(budget_gt, pl.cdiv(G, 8))))
    steps = pl.cdiv(G, gt)
    if steps > 1 and steps % 2:
        steps += 1                               # even step count (megacore-friendly)
    Gp = steps * gt
    if Gp != G:
        pad = ((0, Gp - G), (0, 0), (0, 0))
        q = jnp.pad(q, pad)
        k = jnp.pad(k, pad)
        v = jnp.pad(v, pad)

    io_spec = pl.BlockSpec((gt, L, C), lambda i: (i, 0, 0))
    out = pl.pallas_call(
        functools.partial(_attn_kernel, scale=scale, heads=heads),
        out_shape=jax.ShapeDtypeStruct((Gp, L, C), out_dtype),
        grid_spec=pltpu.PrefetchScalarGridSpec(
            num_scalar_prefetch=0,
            grid=(steps,),
            in_specs=[io_spec, io_spec, io_spec,
                      pl.BlockSpec((heads, L, L), lambda i: (0, 0, 0))],  # pos resident
            out_specs=pl.BlockSpec((gt, L, C), lambda i: (i, 0, 0)),
        ),
        compiler_params=pltpu.CompilerParams(
            dimension_semantics=_group_semantics(),
            vmem_limit_bytes=_VMEM_LIMIT_BYTES),
    )(q, k, v, pos)
    return out[:G]


# ---------------------------------------------------------------------------
# Layout plumbing (einops rearranges as reshape/transpose)
# ---------------------------------------------------------------------------
def _window_partition(t, b0, b1):
    # 'b (h b0) (w b1) c -> b (h w) (b0 b1) c'
    b, H, W, c = t.shape
    hh, ww = H // b0, W // b1
    t = t.reshape(b, hh, b0, ww, b1, c).transpose(0, 1, 3, 2, 4, 5)
    return t.reshape(b, hh * ww, b0 * b1, c)


def _window_reverse(t, b0, b1, hh, ww):
    # 'b (h w) (b0 b1) c -> b (h b0) (w b1) c'
    b, n, mm, c = t.shape
    t = t.reshape(b, hh, ww, b0, b1, c).transpose(0, 1, 3, 2, 4, 5)
    return t.reshape(b, hh * b0, ww * b1, c)


# ---------------------------------------------------------------------------
# Plain-JAX reference ops (f32, for validation)
# ---------------------------------------------------------------------------
def _qkv_ref(x2, wq, wk, wv):
    return x2 @ wq, x2 @ wk, x2 @ wv


def _linear_ref(x2, w, b):
    return x2 @ w + b


def _attention_ref(q, k, v, pos, scale, heads):
    G, L, C = q.shape
    d = C // heads

    def split(t):
        return t.astype(jnp.float32).reshape(G, L, heads, d).transpose(0, 2, 1, 3)

    q4, k4, v4 = split(q), split(k), split(v)
    sim = jnp.einsum('ghid,ghjd->ghij', q4 * scale, k4) + pos[None]
    attn = jax.nn.softmax(sim, axis=-1)
    o = jnp.einsum('ghij,ghjd->ghid', attn, v4)
    return o.transpose(0, 2, 1, 3).reshape(G, L, C)


# ---------------------------------------------------------------------------
# Parameter init helpers (host-side; mirrors torch defaults closely enough)
# ---------------------------------------------------------------------------
def _trunc_normal(key, shape, dtype=jnp.float32):
    return jax.random.truncated_normal(key, -2.0, 2.0, shape).astype(dtype)


def _linear_weight(key, fan_in, fan_out, dtype=jnp.float32):
    bound = 1.0 / math.sqrt(fan_in)
    return jax.random.uniform(key, (fan_in, fan_out), dtype, -bound, bound)


# ---------------------------------------------------------------------------
# HS_MSA module
# ---------------------------------------------------------------------------
class HSMSAPallas:
    def __init__(self, dim, window_size=(8, 8), dim_head=28, heads=8,
                 only_local_branch=False, *, key):
        self.dim = dim
        self.heads = heads
        self.scale = float(dim_head) ** -0.5
        self.window_size = window_size
        self.only_local_branch = only_local_branch
        inner = dim_head * heads
        self.inner_dim = inner

        kq, kk, kv, kwo, kbo, kp1, kp2 = jax.random.split(key, 7)
        seq_l1 = window_size[0] * window_size[1]
        if only_local_branch:
            self.pos_emb = _trunc_normal(kp1, (1, heads, seq_l1, seq_l1))
        else:
            self.pos_emb1 = _trunc_normal(kp1, (1, 1, heads // 2, seq_l1, seq_l1))
            hh, ww = 128 // heads, 128 // heads
            self.seq_l2 = hh * ww // seq_l1
            self.pos_emb2 = _trunc_normal(kp2, (1, 1, heads // 2, self.seq_l2, self.seq_l2))

        self.w_q = _linear_weight(kq, dim, inner)        # to_q (no bias)
        wkv = _linear_weight(kk, dim, 2 * inner)         # to_kv (no bias)
        self.w_k = wkv[:, :inner]
        self.w_v = wkv[:, inner:]
        self.w_out = _linear_weight(kwo, inner, dim)     # to_out
        bound = 1.0 / math.sqrt(inner)
        self.b_out = jax.random.uniform(kbo, (dim,), jnp.float32, -bound, bound)
        del kv  # unused split (kept for deterministic key layout)

    # shared forward, parameterized by qkv / attention / output implementations
    def _forward(self, x, qkv_fn, attn_fn, out_fn):
        b, H, W, c = x.shape
        b0, b1 = self.window_size
        assert H % b0 == 0 and W % b1 == 0, \
            "fmap dimensions must be divisible by the window size"
        inner = self.inner_dim
        L = b0 * b1
        nwin = (H // b0) * (W // b1)

        q, k, v = qkv_fn(x.reshape(-1, c))                         # each (M, inner)
        q = q.reshape(b, H, W, inner)
        k = k.reshape(b, H, W, inner)
        v = v.reshape(b, H, W, inner)

        if self.only_local_branch:
            hh = self.heads

            def prep(t):
                return _window_partition(t, b0, b1).reshape(b * nwin, L, inner)

            o = attn_fn(prep(q), prep(k), prep(v),
                        self.pos_emb.reshape(hh, L, L), hh)        # (b*nwin, L, inner)
            o = o.reshape(b, nwin, L, inner)
        else:
            hh = self.heads // 2
            chalf = c // 2
            c2 = inner - chalf

            # ---- branch 1: attention inside each window (heads stay in lanes) ----
            def prep1(t):
                return _window_partition(t[..., :chalf], b0, b1).reshape(b * nwin, L, chalf)

            o1 = attn_fn(prep1(q), prep1(k), prep1(v),
                         self.pos_emb1.reshape(hh, L, L), hh)      # (b*nwin, L, chalf)
            o1 = o1.reshape(b, nwin, L, chalf)

            # ---- branch 2: attention across windows (same in-window position) ----
            assert nwin == self.seq_l2, \
                "pos_emb2 was sized for a different window count"

            # TODO(synk): the cross-window permute below could be folded into the
            # attention BlockSpec index_map (gather over windows) to drop the
            # remaining host-side transpose passes.
            def prep2(t):
                t = _window_partition(t[..., chalf:], b0, b1)      # (b, nwin, L, c2)
                return t.transpose(0, 2, 1, 3).reshape(b * L, nwin, c2)

            o2 = attn_fn(prep2(q), prep2(k), prep2(v),
                         self.pos_emb2.reshape(hh, nwin, nwin), hh)  # (b*L, nwin, c2)
            o2 = o2.reshape(b, L, nwin, c2).transpose(0, 2, 1, 3)    # (b, nwin, L, c2)

            o = jnp.concatenate([o1, o2], axis=-1)                   # (b, nwin, L, inner)

        out = out_fn(o.reshape(-1, inner))
        return _window_reverse(out.reshape(b, nwin, L, self.dim),
                               b0, b1, H // b0, W // b1)

    def __call__(self, x):
        qkv = lambda x2: qkv_project_pallas(x2, self.w_q, self.w_k, self.w_v,
                                            out_dtype=jnp.bfloat16)
        attn = lambda q, k, v, pos, hh: window_attention_pallas(
            q, k, v, pos, self.scale, hh, out_dtype=jnp.bfloat16)
        out = lambda o2: linear_bias_pallas(o2, self.w_out, self.b_out,
                                            out_dtype=x.dtype)
        return self._forward(x, qkv, attn, out)

    def reference(self, x):
        qkv = lambda x2: _qkv_ref(x2, self.w_q, self.w_k, self.w_v)
        attn = lambda q, k, v, pos, hh: _attention_ref(q, k, v, pos, self.scale, hh)
        out = lambda o2: _linear_ref(o2, self.w_out, self.b_out)
        return self._forward(x, qkv, attn, out)


# ---------------------------------------------------------------------------
def _check(out, ref, tag):
    out = out.astype(jnp.float32)
    ref = ref.astype(jnp.float32)
    max_err = float(jnp.max(jnp.abs(out - ref)))
    rel_l2 = float(jnp.linalg.norm(out - ref) / (jnp.linalg.norm(ref) + 1e-12))
    # bf16 MXU operands / bf16 activation storage vs. an f32 "highest" reference.
    assert max_err < 5e-2 and rel_l2 < 2e-2, \
        f"{tag}: max_abs_err={max_err:.4e} rel_l2={rel_l2:.4e}"


if __name__ == "__main__":
    key = jax.random.PRNGKey(0)
    kparam, kparam_local, kx = jax.random.split(key, 3)

    # Shapes the forward implies: window (8,8); with heads=8 the global-branch
    # pos_emb2 expects (128//8)^2 / 64 = 4 windows -> 16x16 feature map.
    # MST++ uses dim == dim_head * heads, so pick dim_head=4 -> dim=32.
    b, H, W = 2, 16, 16
    heads, dim_head = 8, 4
    dim = dim_head * heads                      # 32

    x = jax.random.normal(kx, (b, H, W, dim), dtype=jnp.float32)

    # Default (dual local/non-local branch) HS_MSA
    msa = HSMSAPallas(dim, window_size=(8, 8), dim_head=dim_head, heads=heads,
                      only_local_branch=False, key=kparam)
    out = jax.block_until_ready(msa(x))
    assert out.shape == (b, H, W, dim)
    _check(out, msa.reference(x), "global-branch")

    # Local-only branch variant (same kernels, different head/pos layout)
    msa_local = HSMSAPallas(dim, window_size=(8, 8), dim_head=dim_head, heads=heads,
                            only_local_branch=True, key=kparam_local)
    out_l = jax.block_until_ready(msa_local(x))
    assert out_l.shape == (b, H, W, dim)
    _check(out_l, msa_local.reference(x), "local-branch")

    print("KERNEL_OK")
</pallas_src>

<mosaic_0001>
module attributes {stable_mosaic.version = 11 : i64} {
  func.func @_qkv_kernel(%arg0: i32, %arg1: memref<256x32xf32, #tpu.memory_space<vmem>>, %arg2: memref<32x32xf32, #tpu.memory_space<vmem>>, %arg3: memref<32x32xf32, #tpu.memory_space<vmem>>, %arg4: memref<32x32xf32, #tpu.memory_space<vmem>>, %arg5: memref<256x32xbf16, #tpu.memory_space<vmem>>, %arg6: memref<256x32xbf16, #tpu.memory_space<vmem>>, %arg7: memref<256x32xbf16, #tpu.memory_space<vmem>>) attributes {dimension_semantics = [#tpu.dimension_semantics<parallel>], iteration_bounds = array<i64: 2>, scalar_prefetch = 0 : i64, scratch_operands = 0 : i64, tpu.core_type = #tpu.core_type<tc>, window_params = [{transform_indices = @transform_0, window_bounds = array<i64: 256, 32>}, {pipeline_mode = #tpu.pipeline_mode<synchronous>, transform_indices = @transform_1, window_bounds = array<i64: 32, 32>}, {pipeline_mode = #tpu.pipeline_mode<synchronous>, transform_indices = @transform_2, window_bounds = array<i64: 32, 32>}, {pipeline_mode = #tpu.pipeline_mode<synchronous>, transform_indices = @transform_3, window_bounds = array<i64: 32, 32>}, {transform_indices = @transform_4, window_bounds = array<i64: 256, 32>}, {transform_indices = @transform_5, window_bounds = array<i64: 256, 32>}, {transform_indices = @transform_6, window_bounds = array<i64: 256, 32>}]} {
    %c0 = arith.constant 0 : index
    %c0_0 = arith.constant 0 : index
    %0 = vector.load %arg1[%c0, %c0_0] : memref<256x32xf32, #tpu.memory_space<vmem>>, vector<256x32xf32>
    %c0_1 = arith.constant 0 : index
    %c0_2 = arith.constant 0 : index
    %1 = vector.load %arg2[%c0_1, %c0_2] : memref<32x32xf32, #tpu.memory_space<vmem>>, vector<32x32xf32>
    %cst = arith.constant dense<0.000000e+00> : vector<256x32xf32>
    %2 = tpu.matmul %0, %1, %cst {dimension_numbers = #tpu.dot_dimension_numbers<[1], [0], [0], [1], [0, 0, 1, 1], [], []>, precision = #tpu.contract_precision<fp32>} : vector<256x32xf32>, vector<32x32xf32>, vector<256x32xf32> -> vector<256x32xf32>
    %3 = arith.truncf %2 : vector<256x32xf32> to vector<256x32xbf16>
    %c0_3 = arith.constant 0 : index
    %c0_4 = arith.constant 0 : index
    %4 = vector.load %arg5[%c0_3, %c0_4] : memref<256x32xbf16, #tpu.memory_space<vmem>>, vector<256x32xbf16>
    tpu.vector_store %arg5[%c0_3, %c0_4], %3 {strides = array<i32>} : memref<256x32xbf16, #tpu.memory_space<vmem>>, vector<256x32xbf16>,
    %c0_5 = arith.constant 0 : index
    %c0_6 = arith.constant 0 : index
    %5 = vector.load %arg3[%c0_5, %c0_6] : memref<32x32xf32, #tpu.memory_space<vmem>>, vector<32x32xf32>
    %cst_7 = arith.constant dense<0.000000e+00> : vector<256x32xf32>
    %6 = tpu.matmul %0, %5, %cst_7 {dimension_numbers = #tpu.dot_dimension_numbers<[1], [0], [0], [1], [0, 0, 1, 1], [], []>, precision = #tpu.contract_precision<fp32>} : vector<256x32xf32>, vector<32x32xf32>, vector<256x32xf32> -> vector<256x32xf32>
    %7 = arith.truncf %6 : vector<256x32xf32> to vector<256x32xbf16>
    %c0_8 = arith.constant 0 : index
    %c0_9 = arith.constant 0 : index
    %8 = vector.load %arg6[%c0_8, %c0_9] : memref<256x32xbf16, #tpu.memory_space<vmem>>, vector<256x32xbf16>
    tpu.vector_store %arg6[%c0_8, %c0_9], %7 {strides = array<i32>} : memref<256x32xbf16, #tpu.memory_space<vmem>>, vector<256x32xbf16>,
    %c0_10 = arith.constant 0 : index
    %c0_11 = arith.constant 0 : index
    %9 = vector.load %arg4[%c0_10, %c0_11] : memref<32x32xf32, #tpu.memory_space<vmem>>, vector<32x32xf32>
    %cst_12 = arith.constant dense<0.000000e+00> : vector<256x32xf32>
    %10 = tpu.matmul %0, %9, %cst_12 {dimension_numbers = #tpu.dot_dimension_numbers<[1], [0], [0], [1], [0, 0, 1, 1], [], []>, precision = #tpu.contract_precision<fp32>} : vector<256x32xf32>, vector<32x32xf32>, vector<256x32xf32> -> vector<256x32xf32>
    %11 = arith.truncf %10 : vector<256x32xf32> to vector<256x32xbf16>
    %c0_13 = arith.constant 0 : index
    %c0_14 = arith.constant 0 : index
    %12 = vector.load %arg7[%c0_13, %c0_14] : memref<256x32xbf16, #tpu.memory_space<vmem>>, vector<256x32xbf16>
    tpu.vector_store %arg7[%c0_13, %c0_14], %11 {strides = array<i32>} : memref<256x32xbf16, #tpu.memory_space<vmem>>, vector<256x32xbf16>,
    return
  }
  func.func @transform_0(%arg0: i32) -> (i32, i32) {
    %c0_i32 = arith.constant 0 : i32
    %c0_i32_0 = arith.constant 0 : i32
    return %arg0, %c0_i32 : i32, i32
  }
  func.func @transform_1(%arg0: i32) -> (i32, i32) {
    %c0_i32 = arith.constant 0 : i32
    %c0_i32_0 = arith.constant 0 : i32
    %c0_i32_1 = arith.constant 0 : i32
    return %c0_i32, %c0_i32_0 : i32, i32
  }
  func.func @transform_2(%arg0: i32) -> (i32, i32) {
    %c0_i32 = arith.constant 0 : i32
    %c0_i32_0 = arith.constant 0 : i32
    %c0_i32_1 = arith.constant 0 : i32
    return %c0_i32, %c0_i32_0 : i32, i32
  }
  func.func @transform_3(%arg0: i32) -> (i32, i32) {
    %c0_i32 = arith.constant 0 : i32
    %c0_i32_0 = arith.constant 0 : i32
    %c0_i32_1 = arith.constant 0 : i32
    return %c0_i32, %c0_i32_0 : i32, i32
  }
  func.func @transform_4(%arg0: i32) -> (i32, i32) {
    %c0_i32 = arith.constant 0 : i32
    %c0_i32_0 = arith.constant 0 : i32
    return %arg0, %c0_i32 : i32, i32
  }
  func.func @transform_5(%arg0: i32) -> (i32, i32) {
    %c0_i32 = arith.constant 0 : i32
    %c0_i32_0 = arith.constant 0 : i32
    return %arg0, %c0_i32 : i32, i32
  }
  func.func @transform_6(%arg0: i32) -> (i32, i32) {
    %c0_i32 = arith.constant 0 : i32
    %c0_i32_0 = arith.constant 0 : i32
    return %arg0, %c0_i32 : i32, i32
  }
}

</mosaic_0001>

<llo_original>
// kernel: tpu_custom_call.1
$region0: #{tpu_custom_call.1}
  #allocation0 [shape = 'u32[]', space=smem, size = 0x4, offset = 0x4, fixed_abs, tag = 'smem constant byte address 0x4 - core index']
  #allocation1 [shape = 'u32[72,128]{1,0:T(1,128)}', space=vmem, size = 0x9000, scoped, tag = 'internal scratch']
  %s0 = inlined_call_operand.vmem [shape: f32[512,32], index: 0, kind: input, shape index: {}]
  %s1 = inlined_call_operand.vmem [shape: f32[32,32], index: 1, kind: input, shape index: {}]
  %s2 = inlined_call_operand.vmem [shape: f32[32,32], index: 2, kind: input, shape index: {}]
  %s3 = inlined_call_operand.vmem [shape: f32[32,32], index: 3, kind: input, shape index: {}]
  %s4 = inlined_call_operand.vmem [shape: bf16[512,32], index: 4, kind: output, shape index: {0}]
  %s5 = inlined_call_operand.vmem [shape: bf16[512,32], index: 5, kind: output, shape index: {1}]
  %s6 = inlined_call_operand.vmem [shape: bf16[512,32], index: 6, kind: output, shape index: {2}]
  %7 = xla_tuple %s4, %s5, %s6
  %s8 = sld [smem:[#allocation0]]
  $region65: #{tpu_custom_call.1} parent=0
    _
  %s10 = ssub.s32 1, %s8
  %s11 = scalar_select 0, %s10, %s8
  loop: start=0, step=1, limit=4
  $region2: #{tpu_custom_call.1} parent=0 // loop_pre_header
    _
  $region3: #{tpu_custom_call.1} parent=0 // loop_header
    %s13 = sphi 0, %s17
    %p14 = scmp.ge.s32.totalorder %s13, 4
    %s23 = sphi 0, %s25
    %s26 = sphi 0, %s23
    %s27 = sphi 0, %s26
    %s43 = sphi 0, %s27
    %s47 = sphi 0, %s47
    %s49 = sphi 0, %s47
    %s50 = sphi 0, %s49
    %s64 = sphi 0, %s50
    %s68 = sphi 0, %s68
    %s70 = sphi 0, %s68
    %s71 = sphi 0, %s70
    %s85 = sphi 0, %s71
    %s89 = sphi 0, %s89
    %s91 = sphi 0, %s89
    %s92 = sphi 0, %s91
    %s106 = sphi 0, %s92
    %s112 = sphi 0, %s114
    %s115 = sphi 0, %s112
    %s116 = sphi 0, %s115
    %s132 = sphi 0, %s116
    %s138 = sphi 0, %s140
    %s141 = sphi 0, %s138
    %s142 = sphi 0, %s141
    %s158 = sphi 0, %s142
    %s164 = sphi 0, %s166
    %s167 = sphi 0, %s164
    %s168 = sphi 0, %s167
    %s184 = sphi 0, %s168
  $region4: #{tpu_custom_call.1} parent=0 // loop_header_branch
    %16 = sbr.rel (%p14) target = $region8
  $region5: #{tpu_custom_call.1} parent=0 // loop_body
    %s18 = ssub.s32 %s13, 1
    %s19 = ssub.s32 %s13, 2
    %s20 = sadd.s32 %s13, 1
    %s21 = ssub.s32 %s13, %s20
    %p22 = scmp.eq.s32.totalorder %s21, 0
    %s24 = sadd.s32 %s23, 1
    %s25 = scalar_select %p22, %s23, %s24
    %p28 = pneg %p22
    %p29 = scmp.eq.s32.totalorder %s13, 1
    %p30 = por %p28, %p29
    %p31 = scmp.ne.s32.totalorder %s23, %s26
    %p32 = scmp.eq.s32.totalorder %s13, 0
    %p33 = por %p31, %p32
    %p34 = scmp.ne.s32.totalorder %s23, %s26
    %p35 = scmp.eq.s32.totalorder %s18, 1
    %p36 = por %p34, %p35
    %p37 = scmp.ne.s32.totalorder %s26, %s27
    %p38 = scmp.eq.s32.totalorder %s18, 0
    %p39 = por %p37, %p38
    %p40 = scmp.ne.s32.totalorder %s26, %s27
    %p41 = scmp.eq.s32.totalorder %s19, 1
    %p42 = por %p40, %p41
    %p44 = scmp.ne.s32.totalorder %s27, %s43
    %p45 = scmp.eq.s32.totalorder %s19, 0
    %p46 = por %p44, %p45
    %s48 = sadd.s32 %s47, 1
    %p51 = scmp.eq.s32.totalorder %s13, 1
    %p52 = scmp.ne.s32.totalorder %s47, %s49
    %p53 = scmp.eq.s32.totalorder %s13, 0
    %p54 = por %p52, %p53
    %p55 = scmp.ne.s32.totalorder %s47, %s49
    %p56 = scmp.eq.s32.totalorder %s18, 1
    %p57 = por %p55, %p56
    %p58 = scmp.ne.s32.totalorder %s49, %s50
    %p59 = scmp.eq.s32.totalorder %s18, 0
    %p60 = por %p58, %p59
    %p61 = scmp.ne.s32.totalorder %s49, %s50
    %p62 = scmp.eq.s32.totalorder %s19, 1
    %p63 = por %p61, %p62
    %p65 = scmp.ne.s32.totalorder %s50, %s64
    %p66 = scmp.eq.s32.totalorder %s19, 0
    %p67 = por %p65, %p66
    %s69 = sadd.s32 %s68, 1
    %p72 = scmp.eq.s32.totalorder %s13, 1
    %p73 = scmp.ne.s32.totalorder %s68, %s70
    %p74 = scmp.eq.s32.totalorder %s13, 0
    %p75 = por %p73, %p74
    %p76 = scmp.ne.s32.totalorder %s68, %s70
    %p77 = scmp.eq.s32.totalorder %s18, 1
    %p78 = por %p76, %p77
    %p79 = scmp.ne.s32.totalorder %s70, %s71
    %p80 = scmp.eq.s32.totalorder %s18, 0
    %p81 = por %p79, %p80
    %p82 = scmp.ne.s32.totalorder %s70, %s71
    %p83 = scmp.eq.s32.totalorder %s19, 1
    %p84 = por %p82, %p83
    %p86 = scmp.ne.s32.totalorder %s71, %s85
    %p87 = scmp.eq.s32.totalorder %s19, 0
    %p88 = por %p86, %p87
    %s90 = sadd.s32 %s89, 1
    %p93 = scmp.eq.s32.totalorder %s13, 1
    %p94 = scmp.ne.s32.totalorder %s89, %s91
    %p95 = scmp.eq.s32.totalorder %s13, 0
    %p96 = por %p94, %p95
    %p97 = scmp.ne.s32.totalorder %s89, %s91
    %p98 = scmp.eq.s32.totalorder %s18, 1
    %p99 = por %p97, %p98
    %p100 = scmp.ne.s32.totalorder %s91, %s92
    %p101 = scmp.eq.s32.totalorder %s18, 0
    %p102 = por %p100, %p101
    %p103 = scmp.ne.s32.totalorder %s91, %s92
    %p104 = scmp.eq.s32.totalorder %s19, 1
    %p105 = por %p103, %p104
    %p107 = scmp.ne.s32.totalorder %s92, %s106
    %p108 = scmp.eq.s32.totalorder %s19, 0
    %p109 = por %p107, %p108
    %s110 = ssub.s32 %s13, %s20
    %p111 = scmp.eq.s32.totalorder %s110, 0
    %s113 = sadd.s32 %s112, 1
    %s114 = scalar_select %p111, %s112, %s113
    %p117 = pneg %p111
    %p118 = scmp.eq.s32.totalorder %s13, 1
    %p119 = por %p117, %p118
    %p120 = scmp.ne.s32.totalorder %s112, %s115
    %p121 = scmp.eq.s32.totalorder %s13, 0
    %p122 = por %p120, %p121
    %p123 = scmp.ne.s32.totalorder %s112, %s115
    %p124 = scmp.eq.s32.totalorder %s18, 1
    %p125 = por %p123, %p124
    %p126 = scmp.ne.s32.totalorder %s115, %s116
    %p127 = scmp.eq.s32.totalorder %s18, 0
    %p128 = por %p126, %p127
    %p129 = scmp.ne.s32.totalorder %s115, %s116
    %p130 = scmp.eq.s32.totalorder %s19, 1
    %p131 = por %p129, %p130
    %p133 = scmp.ne.s32.totalorder %s116, %s132
    %p134 = scmp.eq.s32.totalorder %s19, 0
    %p135 = por %p133, %p134
    %s136 = ssub.s32 %s13, %s20
    %p137 = scmp.eq.s32.totalorder %s136, 0
    %s139 = sadd.s32 %s138, 1
    %s140 = scalar_select %p137, %s138, %s139
    %p143 = pneg %p137
    %p144 = scmp.eq.s32.totalorder %s13, 1
    %p145 = por %p143, %p144
    %p146 = scmp.ne.s32.totalorder %s138, %s141
    %p147 = scmp.eq.s32.totalorder %s13, 0
    %p148 = por %p146, %p147
    %p149 = scmp.ne.s32.totalorder %s138, %s141
    %p150 = scmp.eq.s32.totalorder %s18, 1
    %p151 = por %p149, %p150
    %p152 = scmp.ne.s32.totalorder %s141, %s142
    %p153 = scmp.eq.s32.totalorder %s18, 0
    %p154 = por %p152, %p153
    %p155 = scmp.ne.s32.totalorder %s141, %s142
    %p156 = scmp.eq.s32.totalorder %s19, 1
    %p157 = por %p155, %p156
    %p159 = scmp.ne.s32.totalorder %s142, %s158
    %p160 = scmp.eq.s32.totalorder %s19, 0
    %p161 = por %p159, %p160
    %s162 = ssub.s32 %s13, %s20
    %p163 = scmp.eq.s32.totalorder %s162, 0
    %s165 = sadd.s32 %s164, 1
    %s166 = scalar_select %p163, %s164, %s165
    %p169 = pneg %p163
    %p170 = scmp.eq.s32.totalorder %s13, 1
    %p171 = por %p169, %p170
    %p172 = scmp.ne.s32.totalorder %s164, %s167
    %p173 = scmp.eq.s32.totalorder %s13, 0
    %p174 = por %p172, %p173
    %p175 = scmp.ne.s32.totalorder %s164, %s167
    %p176 = scmp.eq.s32.totalorder %s18, 1
    %p177 = por %p175, %p176
    %p178 = scmp.ne.s32.totalorder %s167, %s168
    %p179 = scmp.eq.s32.totalorder %s18, 0
    %p180 = por %p178, %p179
    %p181 = scmp.ne.s32.totalorder %s167, %s168
    %p182 = scmp.eq.s32.totalorder %s19, 1
    %p183 = por %p181, %p182
    %p185 = scmp.ne.s32.totalorder %s168, %s184
    %p186 = scmp.eq.s32.totalorder %s19, 0
    %p187 = por %p185, %p186
    %p188 = scmp.le.s32.totalorder 1, %s13
    %p189 = scmp.lt.s32.totalorder %s13, 3
    %p190 = pnand %p188, %p189
    %p191 = pneg %p190
    // Predicated region
    $region9: #{tpu_custom_call.1} parent=5 // pred_check
      _
    $region10: #{tpu_custom_call.1} parent=5 // pred_check_branch
      %193 = sbr.rel (%p190) target = $region12
    $region11: #{tpu_custom_call.1} parent=5 // pred_region
      %s194 = ssub.s32 %s13, 1
      // Predicated region
      $region13: #{tpu_custom_call.1} parent=11 // pred_check
        %p195 = pneg %p60
      $region14: #{tpu_custom_call.1} parent=11 // pred_check_branch
        %197 = sbr.rel (%p195) target = $region16
      $region15: #{tpu_custom_call.1} parent=11 // pred_region
        _
      $region16: #{tpu_custom_call.1} parent=11 // pred_fallthru
        _
      // Predicated region
      $region17: #{tpu_custom_call.1} parent=11 // pred_check
        %p198 = pneg %p81
      $region18: #{tpu_custom_call.1} parent=11 // pred_check_branch
        %200 = sbr.rel (%p198) target = $region20
      $region19: #{tpu_custom_call.1} parent=11 // pred_region
        _
      $region20: #{tpu_custom_call.1} parent=11 // pred_fallthru
        _
      // Predicated region
      $region21: #{tpu_custom_call.1} parent=11 // pred_check
        %p201 = pneg %p102
      $region22: #{tpu_custom_call.1} parent=11 // pred_check_branch
        %203 = sbr.rel (%p201) target = $region24
      $region23: #{tpu_custom_call.1} parent=11 // pred_region
        _
      $region24: #{tpu_custom_call.1} parent=11 // pred_fallthru
        _
    $region12: #{tpu_custom_call.1} parent=5 // pred_fallthru
      _
    %p204 = scmp.lt.s32.totalorder %s13, 2
    // Predicated region
    $region25: #{tpu_custom_call.1} parent=5 // pred_check
      %p205 = pneg %p204
    $region26: #{tpu_custom_call.1} parent=5 // pred_check_branch
      %207 = sbr.rel (%p205) target = $region28
    $region27: #{tpu_custom_call.1} parent=5 // pred_region
      // Predicated region
      $region29: #{tpu_custom_call.1} parent=27 // pred_check
        %p208 = pneg %p33
      $region30: #{tpu_custom_call.1} parent=27 // pred_check_branch
        %210 = sbr.rel (%p208) target = $region32
      $region31: #{tpu_custom_call.1} parent=27 // pred_region
        %s211 = smul.u32 32, %s13
        %p212 = scmp.lt.s32.totalorder %s211, 63
        %s213 = scalar_select %p212, %s211, 63
        %s214 = smul.addr %s213, 8
        %s215 = scalar_lea.vmem %s0, %s214
        %s216 = smul.u32 32, %s13
      $region32: #{tpu_custom_call.1} parent=27 // pred_fallthru
        _
    $region28: #{tpu_custom_call.1} parent=5 // pred_fallthru
      _
    %p217 = scmp.le.s32.totalorder 1, %s13
    %p218 = scmp.lt.s32.totalorder %s13, 3
    %p219 = pnand %p217, %p218
    %p220 = pneg %p219
    // Predicated region
    $region33: #{tpu_custom_call.1} parent=5 // pred_check
      _
    $region34: #{tpu_custom_call.1} parent=5 // pred_check_branch
      %222 = sbr.rel (%p219) target = $region36
    $region35: #{tpu_custom_call.1} parent=5 // pred_region
      %s223 = ssub.s32 %s13, 1
      %s224 = smul.u32 32, %s18
      %p225 = scmp.lt.s32.totalorder %s224, 63
      %s226 = scalar_select %p225, %s224, 63
      %s227 = smul.addr %s226, 8
      %s228 = scalar_lea.vmem %s0, %s227
      %p229 = pneg %p39
      %p230 = pneg %p36
      %p231 = pneg %p60
      %p232 = pneg %p57
      %p233 = pneg %p81
      %p234 = pneg %p78
      %p235 = pneg %p102
      %p236 = pneg %p99
      %p237 = pneg %p128
      %p238 = pneg %p125
      %s239 = smul.u32 32, %s18
      %p240 = scmp.lt.s32.totalorder %s239, 63
      %s241 = scalar_select %p240, %s239, 63
      %s242 = smul.addr %s241, 4
      %s243 = scalar_lea.vmem %s4, %s242
      %p244 = pneg %p154
      %p245 = pneg %p151
      %s246 = smul.u32 32, %s18
      %p247 = scmp.lt.s32.totalorder %s246, 63
      %s248 = scalar_select %p247, %s246, 63
      %s249 = smul.addr %s248, 4
      %s250 = scalar_lea.vmem %s5, %s249
      %p251 = pneg %p180
      %p252 = pneg %p177
      %s253 = smul.u32 32, %s18
      %p254 = scmp.lt.s32.totalorder %s253, 63
      %s255 = scalar_select %p254, %s253, 63
      %s256 = smul.addr %s255, 4
      %s257 = scalar_lea.vmem %s6, %s256
      %s258 = smul.u32 32, %s18
      %p259 = scmp.lt.s32.totalorder %s258, 63
      %s260 = scalar_select %p259, %s258, 63
      %s261 = smul.addr %s260, 8
      %s262 = scalar_lea.vmem %s0, %s261
      %s263 = smul.u32 32, %s18
      %s264 = smul.u32 32, %s18
      %p265 = scmp.lt.s32.totalorder %s264, 63
      %s266 = scalar_select %p265, %s264, 63
      %s267 = smul.addr %s266, 4
      %s268 = scalar_lea.vmem %s4, %s267
      %s269 = smul.u32 32, %s18
      %s270 = smul.u32 32, %s18
      %p271 = scmp.lt.s32.totalorder %s270, 63
      %s272 = scalar_select %p271, %s270, 63
      %s273 = smul.addr %s272, 4
      %s274 = scalar_lea.vmem %s5, %s273
      %s275 = smul.u32 32, %s18
      %s276 = smul.u32 32, %s18
      %p277 = scmp.lt.s32.totalorder %s276, 63
      %s278 = scalar_select %p277, %s276, 63
      %s279 = smul.addr %s278, 4
      %s280 = scalar_lea.vmem %s6, %s279
      %s281 = smul.u32 32, %s18
      %v282 = vld [vmem:[%s262] sm:$0xff]
      %v283 = vld [vmem:[%s262 + $0x8] sm:$0xff]
      %v284 = vld [vmem:[%s262 + $0x10] sm:$0xff]
      %v285 = vld [vmem:[%s262 + $0x18] sm:$0xff]
      %v286 = vld [vmem:[%s262 + $0x20] sm:$0xff]
      %v287 = vld [vmem:[%s262 + $0x28] sm:$0xff]
      %v288 = vld [vmem:[%s262 + $0x30] sm:$0xff]
      %v289 = vld [vmem:[%s262 + $0x38] sm:$0xff]
      %v290 = vld [vmem:[%s262 + $0x40] sm:$0xff]
      %v291 = vld [vmem:[%s262 + $0x48] sm:$0xff]
      %v292 = vld [vmem:[%s262 + $0x50] sm:$0xff]
      %v293 = vld [vmem:[%s262 + $0x58] sm:$0xff]
      %v294 = vld [vmem:[%s262 + $0x60] sm:$0xff]
      %v295 = vld [vmem:[%s262 + $0x68] sm:$0xff]
      %v296 = vld [vmem:[%s262 + $0x70] sm:$0xff]
      %v297 = vld [vmem:[%s262 + $0x78] sm:$0xff]
      %v298 = vld [vmem:[%s262 + $0x80] sm:$0xff]
      %v299 = vld [vmem:[%s262 + $0x88] sm:$0xff]
      %v300 = vld [vmem:[%s262 + $0x90] sm:$0xff]
      %v301 = vld [vmem:[%s262 + $0x98] sm:$0xff]
      %v302 = vld [vmem:[%s262 + $0xa0] sm:$0xff]
      %v303 = vld [vmem:[%s262 + $0xa8] sm:$0xff]
      %v304 = vld [vmem:[%s262 + $0xb0] sm:$0xff]
      %v305 = vld [vmem:[%s262 + $0xb8] sm:$0xff]
      %v306 = vld [vmem:[%s262 + $0xc0] sm:$0xff]
      %v307 = vld [vmem:[%s262 + $0xc8] sm:$0xff]
      %v308 = vld [vmem:[%s262 + $0xd0] sm:$0xff]
      %v309 = vld [vmem:[%s262 + $0xd8] sm:$0xff]
      %v310 = vld [vmem:[%s262 + $0xe0] sm:$0xff]
      %v311 = vld [vmem:[%s262 + $0xe8] sm:$0xff]
      %v312 = vld [vmem:[%s262 + $0xf0] sm:$0xff]
      %v313 = vld [vmem:[%s262 + $0xf8] sm:$0xff]
      %v314 = vld [vmem:[%s1] sm:$0xff]
      %v315 = vld [vmem:[%s1 + $0x8] sm:$0xff]
      %v316 = vld [vmem:[%s1 + $0x10] sm:$0xff]
      %v317 = vld [vmem:[%s1 + $0x18] sm:$0xff]
      %vm318 = vcmask 261120
      %v320 = vsel %vm318, %v282, 0
      %v323 = vsel %vm318, %v283, 0
      %v326 = vsel %vm318, %v284, 0
      %v329 = vsel %vm318, %v285, 0
      %v332 = vsel %vm318, %v286, 0
      %v335 = vsel %vm318, %v287, 0
      %v338 = vsel %vm318, %v288, 0
      %v341 = vsel %vm318, %v289, 0
      %v344 = vsel %vm318, %v290, 0
      %v347 = vsel %vm318, %v291, 0
      %v350 = vsel %vm318, %v292, 0
      %v353 = vsel %vm318, %v293, 0
      %v356 = vsel %vm318, %v294, 0
      %v359 = vsel %vm318, %v295, 0
      %v362 = vsel %vm318, %v296, 0
      %v365 = vsel %vm318, %v297, 0
      %v368 = vsel %vm318, %v298, 0
      %v371 = vsel %vm318, %v299, 0
      %v374 = vsel %vm318, %v300, 0
      %v377 = vsel %vm318, %v301, 0
      %v380 = vsel %vm318, %v302, 0
      %v383 = vsel %vm318, %v303, 0
      %v386 = vsel %vm318, %v304, 0
      %v389 = vsel %vm318, %v305, 0
      %v392 = vsel %vm318, %v306, 0
      %v395 = vsel %vm318, %v307, 0
      %v398 = vsel %vm318, %v308, 0
      %v401 = vsel %vm318, %v309, 0
      %v404 = vsel %vm318, %v310, 0
      %v407 = vsel %vm318, %v311, 0
      %v410 = vsel %vm318, %v312, 0
      %v413 = vsel %vm318, %v313, 0
      %415 = vmatpush.msra.mxu0 0.0
      %416 = vmatpush.msra.mxu0 0.0
      %417 = vmatpush.msra.mxu0 0.0
      %418 = vmatpush.msra.mxu0 0.0
      %419 = vmatpush.msra.mxu0 0.0
      %420 = vmatpush.msra.mxu0 0.0
      %421 = vmatpush.msra.mxu0 0.0
      %422 = vmatpush.msra.mxu0 0.0
      %423 = vmatpush.msra.mxu0 0.0
      %424 = vmatpush.msra.mxu0 0.0
      %425 = vmatpush.msra.mxu0 0.0
      %426 = vmatpush.msra.mxu0 0.0
      %v427 = vand.u32 %v317, 4294901760
      %428 = vmatpush.msra.mxu0 %v427
      %v429 = vand.u32 %v316, 4294901760
      %430 = vmatpush.msra.mxu0 %v429
      %v431 = vand.u32 %v315, 4294901760
      %432 = vmatpush.msra.mxu0 %v431
      %v433 = vand.u32 %v314, 4294901760
      %434 = vmatpush.msra.mxu0 %v433
      %v435 = vand.u32 %v320, 4294901760
      %v436 = vsub.f32 %v320, %v435
      %v437 = vand.u32 %v436, 4294901760
      %v438 = vsub.f32 %v436, %v437
      %v439 = vand.u32 %v438, 4294901760
      %440 = vmatmul.f32.gmra.mxu0 %v439
      %v441 = vpop.f32.mrf.mxu0
      %v442 = vadd.f32 0.0, %v441
      %v443 = vand.u32 %v323, 4294901760
      %v444 = vsub.f32 %v323, %v443
      %v445 = vand.u32 %v444, 4294901760
      %v446 = vsub.f32 %v444, %v445
      %v447 = vand.u32 %v446, 4294901760
      %448 = vmatmul.f32.gmra.mxu0 %v447
      %v449 = vpop.f32.mrf.mxu0
      %v450 = vadd.f32 0.0, %v449
      %v451 = vand.u32 %v326, 4294901760
      %v452 = vsub.f32 %v326, %v451
      %v453 = vand.u32 %v452, 4294901760
      %v454 = vsub.f32 %v452, %v453
      %v455 = vand.u32 %v454, 4294901760
      %456 = vmatmul.f32.gmra.mxu0 %v455
      %v457 = vpop.f32.mrf.mxu0
      %v458 = vadd.f32 0.0, %v457
      %v459 = vand.u32 %v329, 4294901760
      %v460 = vsub.f32 %v329, %v459
      %v461 = vand.u32 %v460, 4294901760
      %v462 = vsub.f32 %v460, %v461
      %v463 = vand.u32 %v462, 4294901760
      %464 = vmatmul.f32.gmra.mxu0 %v463
      %v465 = vpop.f32.mrf.mxu0
      %v466 = vadd.f32 0.0, %v465
      %v467 = vand.u32 %v332, 4294901760
      %v468 = vsub.f32 %v332, %v467
      %v469 = vand.u32 %v468, 4294901760
      %v470 = vsub.f32 %v468, %v469
      %v471 = vand.u32 %v470, 4294901760
      %472 = vmatmul.f32.gmra.mxu0 %v471
      %v473 = vpop.f32.mrf.mxu0
      %v474 = vadd.f32 0.0, %v473
      %v475 = vand.u32 %v335, 4294901760
      %v476 = vsub.f32 %v335, %v475
      %v477 = vand.u32 %v476, 4294901760
      %v478 = vsub.f32 %v476, %v477
      %v479 = vand.u32 %v478, 4294901760
      %480 = vmatmul.f32.gmra.mxu0 %v479
      %v481 = vpop.f32.mrf.mxu0
      %v482 = vadd.f32 0.0, %v481
      %v483 = vand.u32 %v338, 4294901760
      %v484 = vsub.f32 %v338, %v483
      %v485 = vand.u32 %v484, 4294901760
      %v486 = vsub.f32 %v484, %v485
      %v487 = vand.u32 %v486, 4294901760
      %488 = vmatmul.f32.gmra.mxu0 %v487
      %v489 = vpop.f32.mrf.mxu0
      %v490 = vadd.f32 0.0, %v489
      %v491 = vand.u32 %v341, 4294901760
      %v492 = vsub.f32 %v341, %v491
      %v493 = vand.u32 %v492, 4294901760
      %v494 = vsub.f32 %v492, %v493
      %v495 = vand.u32 %v494, 4294901760
      %496 = vmatmul.f32.gmra.mxu0 %v495
      %v497 = vpop.f32.mrf.mxu0
      %v498 = vadd.f32 0.0, %v497
      %v499 = vand.u32 %v344, 4294901760
      %v500 = vsub.f32 %v344, %v499
      %v501 = vand.u32 %v500, 4294901760
      %v502 = vsub.f32 %v500, %v501
      %v503 = vand.u32 %v502, 4294901760
      %504 = vmatmul.f32.gmra.mxu0 %v503
      %v505 = vpop.f32.mrf.mxu0
      %v506 = vadd.f32 0.0, %v505
      %v507 = vand.u32 %v347, 4294901760
      %v508 = vsub.f32 %v347, %v507
      %v509 = vand.u32 %v508, 4294901760
      %v510 = vsub.f32 %v508, %v509
      %v511 = vand.u32 %v510, 4294901760
      %512 = vmatmul.f32.gmra.mxu0 %v511
      %v513 = vpop.f32.mrf.mxu0
      %v514 = vadd.f32 0.0, %v513
      %v515 = vand.u32 %v350, 4294901760
      %v516 = vsub.f32 %v350, %v515
      %v517 = vand.u32 %v516, 4294901760
      %v518 = vsub.f32 %v516, %v517
      %v519 = vand.u32 %v518, 4294901760
      %520 = vmatmul.f32.gmra.mxu0 %v519
      %v521 = vpop.f32.mrf.mxu0
      %v522 = vadd.f32 0.0, %v521
      %v523 = vand.u32 %v353, 4294901760
      %v524 = vsub.f32 %v353, %v523
      %v525 = vand.u32 %v524, 4294901760
      %v526 = vsub.f32 %v524, %v525
      %v527 = vand.u32 %v526, 4294901760
      %528 = vmatmul.f32.gmra.mxu0 %v527
      %v529 = vpop.f32.mrf.mxu0
      %v530 = vadd.f32 0.0, %v529
      %v531 = vand.u32 %v356, 4294901760
      %v532 = vsub.f32 %v356, %v531
      %v533 = vand.u32 %v532, 4294901760
      %v534 = vsub.f32 %v532, %v533
      %v535 = vand.u32 %v534, 4294901760
      %536 = vmatmul.f32.gmra.mxu0 %v535
      %v537 = vpop.f32.mrf.mxu0
      %v538 = vadd.f32 0.0, %v537
      %v539 = vand.u32 %v359, 4294901760
      %v540 = vsub.f32 %v359, %v539
      %v541 = vand.u32 %v540, 4294901760
      %v542 = vsub.f32 %v540, %v541
      %v543 = vand.u32 %v542, 4294901760
      %544 = vmatmul.f32.gmra.mxu0 %v543
      %v545 = vpop.f32.mrf.mxu0
      %v546 = vadd.f32 0.0, %v545
      %v547 = vand.u32 %v362, 4294901760
      %v548 = vsub.f32 %v362, %v547
      %v549 = vand.u32 %v548, 4294901760
      %v550 = vsub.f32 %v548, %v549
      %v551 = vand.u32 %v550, 4294901760
      %552 = vmatmul.f32.gmra.mxu0 %v551
      %v553 = vpop.f32.mrf.mxu0
      %v554 = vadd.f32 0.0, %v553
      %v555 = vand.u32 %v365, 4294901760
      %v556 = vsub.f32 %v365, %v555
      %v557 = vand.u32 %v556, 4294901760
      %v558 = vsub.f32 %v556, %v557
      %v559 = vand.u32 %v558, 4294901760
      %560 = vmatmul.f32.gmra.mxu0 %v559
      %v561 = vpop.f32.mrf.mxu0
      %v562 = vadd.f32 0.0, %v561
      %v563 = vand.u32 %v368, 4294901760
      %v564 = vsub.f32 %v368, %v563
      %v565 = vand.u32 %v564, 4294901760
      %v566 = vsub.f32 %v564, %v565
      %v567 = vand.u32 %v566, 4294901760
      %568 = vmatmul.f32.gmra.mxu0 %v567
      %v569 = vpop.f32.mrf.mxu0
      %v570 = vadd.f32 0.0, %v569
      %v571 = vand.u32 %v371, 4294901760
      %v572 = vsub.f32 %v371, %v571
      %v573 = vand.u32 %v572, 4294901760
      %v574 = vsub.f32 %v572, %v573
      %v575 = vand.u32 %v574, 4294901760
      %576 = vmatmul.f32.gmra.mxu0 %v575
      %v577 = vpop.f32.mrf.mxu0
      %v578 = vadd.f32 0.0, %v577
      %v579 = vand.u32 %v374, 4294901760
      %v580 = vsub.f32 %v374, %v579
      %v581 = vand.u32 %v580, 4294901760
      %v582 = vsub.f32 %v580, %v581
      %v583 = vand.u32 %v582, 4294901760
      %584 = vmatmul.f32.gmra.mxu0 %v583
      %v585 = vpop.f32.mrf.mxu0
      %v586 = vadd.f32 0.0, %v585
      %v587 = vand.u32 %v377, 4294901760
      %v588 = vsub.f32 %v377, %v587
      %v589 = vand.u32 %v588, 4294901760
      %v590 = vsub.f32 %v588, %v589
      %v591 = vand.u32 %v590, 4294901760
      %592 = vmatmul.f32.gmra.mxu0 %v591
      %v593 = vpop.f32.mrf.mxu0
      %v594 = vadd.f32 0.0, %v593
      %v595 = vand.u32 %v380, 4294901760
      %v596 = vsub.f32 %v380, %v595
      %v597 = vand.u32 %v596, 4294901760
      %v598 = vsub.f32 %v596, %v597
      %v599 = vand.u32 %v598, 4294901760
      %600 = vmatmul.f32.gmra.mxu0 %v599
      %v601 = vpop.f32.mrf.mxu0
      %v602 = vadd.f32 0.0, %v601
      %v603 = vand.u32 %v383, 4294901760
      %v604 = vsub.f32 %v383, %v603
      %v605 = vand.u32 %v604, 4294901760
      %v606 = vsub.f32 %v604, %v605
      %v607 = vand.u32 %v606, 4294901760
      %608 = vmatmul.f32.gmra.mxu0 %v607
      %v609 = vpop.f32.mrf.mxu0
      %v610 = vadd.f32 0.0, %v609
      %v611 = vand.u32 %v386, 4294901760
      %v612 = vsub.f32 %v386, %v611
      %v613 = vand.u32 %v612, 4294901760
      %v614 = vsub.f32 %v612, %v613
      %v615 = vand.u32 %v614, 4294901760
      %616 = vmatmul.f32.gmra.mxu0 %v615
      %v617 = vpop.f32.mrf.mxu0
      %v618 = vadd.f32 0.0, %v617
      %v619 = vand.u32 %v389, 4294901760
      %v620 = vsub.f32 %v389, %v619
      %v621 = vand.u32 %v620, 4294901760
      %v622 = vsub.f32 %v620, %v621
      %v623 = vand.u32 %v622, 4294901760
      %624 = vmatmul.f32.gmra.mxu0 %v623
      %v625 = vpop.f32.mrf.mxu0
      %v626 = vadd.f32 0.0, %v625
      %v627 = vand.u32 %v392, 4294901760
      %v628 = vsub.f32 %v392, %v627
      %v629 = vand.u32 %v628, 4294901760
      %v630 = vsub.f32 %v628, %v629
      %v631 = vand.u32 %v630, 4294901760
      %632 = vmatmul.f32.gmra.mxu0 %v631
      %v633 = vpop.f32.mrf.mxu0
      %v634 = vadd.f32 0.0, %v633
      %v635 = vand.u32 %v395, 4294901760
      %v636 = vsub.f32 %v395, %v635
      %v637 = vand.u32 %v636, 4294901760
      %v638 = vsub.f32 %v636, %v637
      %v639 = vand.u32 %v638, 4294901760
      %640 = vmatmul.f32.gmra.mxu0 %v639
      %v641 = vpop.f32.mrf.mxu0
      %v642 = vadd.f32 0.0, %v641
      %v643 = vand.u32 %v398, 4294901760
      %v644 = vsub.f32 %v398, %v643
      %v645 = vand.u32 %v644, 4294901760
      %v646 = vsub.f32 %v644, %v645
      %v647 = vand.u32 %v646, 4294901760
      %648 = vmatmul.f32.gmra.mxu0 %v647
      %v649 = vpop.f32.mrf.mxu0
      %v650 = vadd.f32 0.0, %v649
      %v651 = vand.u32 %v401, 4294901760
      %v652 = vsub.f32 %v401, %v651
      %v653 = vand.u32 %v652, 4294901760
      %v654 = vsub.f32 %v652, %v653
      %v655 = vand.u32 %v654, 4294901760
      %656 = vmatmul.f32.gmra.mxu0 %v655
      %v657 = vpop.f32.mrf.mxu0
      %v658 = vadd.f32 0.0, %v657
      %v659 = vand.u32 %v404, 4294901760
      %v660 = vsub.f32 %v404, %v659
      %v661 = vand.u32 %v660, 4294901760
      %v662 = vsub.f32 %v660, %v661
      %v663 = vand.u32 %v662, 4294901760
      %664 = vmatmul.f32.gmra.mxu0 %v663
      %v665 = vpop.f32.mrf.mxu0
      %v666 = vadd.f32 0.0, %v665
      %v667 = vand.u32 %v407, 4294901760
      %v668 = vsub.f32 %v407, %v667
      %v669 = vand.u32 %v668, 4294901760
      %v670 = vsub.f32 %v668, %v669
      %v671 = vand.u32 %v670, 4294901760
      %672 = vmatmul.f32.gmra.mxu0 %v671
      %v673 = vpop.f32.mrf.mxu0
      %v674 = vadd.f32 0.0, %v673
      %v675 = vand.u32 %v410, 4294901760
      %v676 = vsub.f32 %v410, %v675
      %v677 = vand.u32 %v676, 4294901760
      %v678 = vsub.f32 %v676, %v677
      %v679 = vand.u32 %v678, 4294901760
      %680 = vmatmul.f32.gmra.mxu0 %v679
      %v681 = vpop.f32.mrf.mxu0
      %v682 = vadd.f32 0.0, %v681
      %v683 = vand.u32 %v413, 4294901760
      %v684 = vsub.f32 %v413, %v683
      %v685 = vand.u32 %v684, 4294901760
      %v686 = vsub.f32 %v684, %v685
      %v687 = vand.u32 %v686, 4294901760
      %688 = vmatmul.f32.gmra.mxu0 %v687
      %v689 = vpop.f32.mrf.mxu0
      %v690 = vadd.f32 0.0, %v689
      %691 = vdwg.mxu0
      %692 = vmatpush.msra.mxu0 0.0
      %693 = vmatpush.msra.mxu0 0.0
      %694 = vmatpush.msra.mxu0 0.0
      %695 = vmatpush.msra.mxu0 0.0
      %696 = vmatpush.msra.mxu0 0.0
      %697 = vmatpush.msra.mxu0 0.0
      %698 = vmatpush.msra.mxu0 0.0
      %699 = vmatpush.msra.mxu0 0.0
      %700 = vmatpush.msra.mxu0 0.0
      %701 = vmatpush.msra.mxu0 0.0
      %702 = vmatpush.msra.mxu0 0.0
      %703 = vmatpush.msra.mxu0 0.0
      %v704 = vand.u32 %v317, 4294901760
      %v705 = vsub.f32 %v317, %v704
      %v706 = vand.u32 %v705, 4294901760
      %v707 = vsub.f32 %v705, %v706
      %v708 = vand.u32 %v707, 4294901760
      %709 = vmatpush.msra.mxu0 %v708
      %v710 = vand.u32 %v316, 4294901760
      %v711 = vsub.f32 %v316, %v710
      %v712 = vand.u32 %v711, 4294901760
      %v713 = vsub.f32 %v711, %v712
      %v714 = vand.u32 %v713, 4294901760
      %715 = vmatpush.msra.mxu0 %v714
      %v716 = vand.u32 %v315, 4294901760
      %v717 = vsub.f32 %v315, %v716
      %v718 = vand.u32 %v717, 4294901760
      %v719 = vsub.f32 %v717, %v718
      %v720 = vand.u32 %v719, 4294901760
      %721 = vmatpush.msra.mxu0 %v720
      %v722 = vand.u32 %v314, 4294901760
      %v723 = vsub.f32 %v314, %v722
      %v724 = vand.u32 %v723, 4294901760
      %v725 = vsub.f32 %v723, %v724
      %v726 = vand.u32 %v725, 4294901760
      %727 = vmatpush.msra.mxu0 %v726
      %v728 = vand.u32 %v320, 4294901760
      %729 = vmatmul.f32.gmra.mxu0 %v728
      %v730 = vpop.f32.mrf.mxu0
      %v731 = vadd.f32 %v442, %v730
      %v732 = vand.u32 %v323, 4294901760
      %733 = vmatmul.f32.gmra.mxu0 %v732
      %v734 = vpop.f32.mrf.mxu0
      %v735 = vadd.f32 %v450, %v734
      %v736 = vand.u32 %v326, 4294901760
      %737 = vmatmul.f32.gmra.mxu0 %v736
      %v738 = vpop.f32.mrf.mxu0
      %v739 = vadd.f32 %v458, %v738
      %v740 = vand.u32 %v329, 4294901760
      %741 = vmatmul.f32.gmra.mxu0 %v740
      %v742 = vpop.f32.mrf.mxu0
      %v743 = vadd.f32 %v466, %v742
      %v744 = vand.u32 %v332, 4294901760
      %745 = vmatmul.f32.gmra.mxu0 %v744
      %v746 = vpop.f32.mrf.mxu0
      %v747 = vadd.f32 %v474, %v746
      %v748 = vand.u32 %v335, 4294901760
      %749 = vmatmul.f32.gmra.mxu0 %v748
      %v750 = vpop.f32.mrf.mxu0
      %v751 = vadd.f32 %v482, %v750
      %v752 = vand.u32 %v338, 4294901760
      %753 = vmatmul.f32.gmra.mxu0 %v752
      %v754 = vpop.f32.mrf.mxu0
      %v755 = vadd.f32 %v490, %v754
      %v756 = vand.u32 %v341, 4294901760
      %757 = vmatmul.f32.gmra.mxu0 %v756
      %v758 = vpop.f32.mrf.mxu0
      %v759 = vadd.f32 %v498, %v758
      %v760 = vand.u32 %v344, 4294901760
      %761 = vmatmul.f32.gmra.mxu0 %v760
      %v762 = vpop.f32.mrf.mxu0
      %v763 = vadd.f32 %v506, %v762
      %v764 = vand.u32 %v347, 4294901760
      %765 = vmatmul.f32.gmra.mxu0 %v764
      %v766 = vpop.f32.mrf.mxu0
      %v767 = vadd.f32 %v514, %v766
      %v768 = vand.u32 %v350, 4294901760
      %769 = vmatmul.f32.gmra.mxu0 %v768
      %v770 = vpop.f32.mrf.mxu0
      %v771 = vadd.f32 %v522, %v770
      %v772 = vand.u32 %v353, 4294901760
      %773 = vmatmul.f32.gmra.mxu0 %v772
      %v774 = vpop.f32.mrf.mxu0
      %v775 = vadd.f32 %v530, %v774
      %v776 = vand.u32 %v356, 4294901760
      %777 = vmatmul.f32.gmra.mxu0 %v776
      %v778 = vpop.f32.mrf.mxu0
      %v779 = vadd.f32 %v538, %v778
      %v780 = vand.u32 %v359, 4294901760
      %781 = vmatmul.f32.gmra.mxu0 %v780
      %v782 = vpop.f32.mrf.mxu0
      %v783 = vadd.f32 %v546, %v782
      %v784 = vand.u32 %v362, 4294901760
      %785 = vmatmul.f32.gmra.mxu0 %v784
      %v786 = vpop.f32.mrf.mxu0
      %v787 = vadd.f32 %v554, %v786
      %v788 = vand.u32 %v365, 4294901760
      %789 = vmatmul.f32.gmra.mxu0 %v788
      %v790 = vpop.f32.mrf.mxu0
      %v791 = vadd.f32 %v562, %v790
      %v792 = vand.u32 %v368, 4294901760
      %793 = vmatmul.f32.gmra.mxu0 %v792
      %v794 = vpop.f32.mrf.mxu0
      %v795 = vadd.f32 %v570, %v794
      %v796 = vand.u32 %v371, 4294901760
      %797 = vmatmul.f32.gmra.mxu0 %v796
      %v798 = vpop.f32.mrf.mxu0
      %v799 = vadd.f32 %v578, %v798
      %v800 = vand.u32 %v374, 4294901760
      %801 = vmatmul.f32.gmra.mxu0 %v800
      %v802 = vpop.f32.mrf.mxu0
      %v803 = vadd.f32 %v586, %v802
      %v804 = vand.u32 %v377, 4294901760
      %805 = vmatmul.f32.gmra.mxu0 %v804
      %v806 = vpop.f32.mrf.mxu0
      %v807 = vadd.f32 %v594, %v806
      %v808 = vand.u32 %v380, 4294901760
      %809 = vmatmul.f32.gmra.mxu0 %v808
      %v810 = vpop.f32.mrf.mxu0
      %v811 = vadd.f32 %v602, %v810
      %v812 = vand.u32 %v383, 4294901760
      %813 = vmatmul.f32.gmra.mxu0 %v812
      %v814 = vpop.f32.mrf.mxu0
      %v815 = vadd.f32 %v610, %v814
      %v816 = vand.u32 %v386, 4294901760
      %817 = vmatmul.f32.gmra.mxu0 %v816
      %v818 = vpop.f32.mrf.mxu0
      %v819 = vadd.f32 %v618, %v818
      %v820 = vand.u32 %v389, 4294901760
      %821 = vmatmul.f32.gmra.mxu0 %v820
      %v822 = vpop.f32.mrf.mxu0
      %v823 = vadd.f32 %v626, %v822
      %v824 = vand.u32 %v392, 4294901760
      %825 = vmatmul.f32.gmra.mxu0 %v824
      %v826 = vpop.f32.mrf.mxu0
      %v827 = vadd.f32 %v634, %v826
      %v828 = vand.u32 %v395, 4294901760
      %829 = vmatmul.f32.gmra.mxu0 %v828
      %v830 = vpop.f32.mrf.mxu0
      %v831 = vadd.f32 %v642, %v830
      %v832 = vand.u32 %v398, 4294901760
      %833 = vmatmul.f32.gmra.mxu0 %v832
      %v834 = vpop.f32.mrf.mxu0
      %v835 = vadd.f32 %v650, %v834
      %v836 = vand.u32 %v401, 4294901760
      %837 = vmatmul.f32.gmra.mxu0 %v836
      %v838 = vpop.f32.mrf.mxu0
      %v839 = vadd.f32 %v658, %v838
      %v840 = vand.u32 %v404, 4294901760
      %841 = vmatmul.f32.gmra.mxu0 %v840
      %v842 = vpop.f32.mrf.mxu0
      %v843 = vadd.f32 %v666, %v842
      %v844 = vand.u32 %v407, 4294901760
      %845 = vmatmul.f32.gmra.mxu0 %v844
      %v846 = vpop.f32.mrf.mxu0
      %v847 = vadd.f32 %v674, %v846
      %v848 = vand.u32 %v410, 4294901760
      %849 = vmatmul.f32.gmra.mxu0 %v848
      %v850 = vpop.f32.mrf.mxu0
      %v851 = vadd.f32 %v682, %v850
      %v852 = vand.u32 %v413, 4294901760
      %853 = vmatmul.f32.gmra.mxu0 %v852
      %v854 = vpop.f32.mrf.mxu0
      %v855 = vadd.f32 %v690, %v854
      %856 = vdwg.mxu0
      %857 = vmatpush.msra.mxu0 0.0
      %858 = vmatpush.msra.mxu0 0.0
      %859 = vmatpush.msra.mxu0 0.0
      %860 = vmatpush.msra.mxu0 0.0
      %861 = vmatpush.msra.mxu0 0.0
      %862 = vmatpush.msra.mxu0 0.0
      %863 = vmatpush.msra.mxu0 0.0
      %864 = vmatpush.msra.mxu0 0.0
      %865 = vmatpush.msra.mxu0 0.0
      %866 = vmatpush.msra.mxu0 0.0
      %867 = vmatpush.msra.mxu0 0.0
      %868 = vmatpush.msra.mxu0 0.0
      %v869 = vand.u32 %v317, 4294901760
      %v870 = vsub.f32 %v317, %v869
      %871 = vmatpush.msra.mxu0 %v870
      %v872 = vand.u32 %v316, 4294901760
      %v873 = vsub.f32 %v316, %v872
      %874 = vmatpush.msra.mxu0 %v873
      %v875 = vand.u32 %v315, 4294901760
      %v876 = vsub.f32 %v315, %v875
      %877 = vmatpush.msra.mxu0 %v876
      %v878 = vand.u32 %v314, 4294901760
      %v879 = vsub.f32 %v314, %v878
      %880 = vmatpush.msra.mxu0 %v879
      %v881 = vand.u32 %v320, 4294901760
      %v882 = vsub.f32 %v320, %v881
      %883 = vmatmul.f32.gmra.mxu0 %v882
      %v884 = vpop.f32.mrf.mxu0
      %v885 = vadd.f32 %v731, %v884
      %v886 = vand.u32 %v323, 4294901760
      %v887 = vsub.f32 %v323, %v886
      %888 = vmatmul.f32.gmra.mxu0 %v887
      %v889 = vpop.f32.mrf.mxu0
      %v890 = vadd.f32 %v735, %v889
      %v891 = vand.u32 %v326, 4294901760
      %v892 = vsub.f32 %v326, %v891
      %893 = vmatmul.f32.gmra.mxu0 %v892
      %v894 = vpop.f32.mrf.mxu0
      %v895 = vadd.f32 %v739, %v894
      %v896 = vand.u32 %v329, 4294901760
      %v897 = vsub.f32 %v329, %v896
      %898 = vmatmul.f32.gmra.mxu0 %v897
      %v899 = vpop.f32.mrf.mxu0
      %v900 = vadd.f32 %v743, %v899
      %v901 = vand.u32 %v332, 4294901760
      %v902 = vsub.f32 %v332, %v901
      %903 = vmatmul.f32.gmra.mxu0 %v902
      %v904 = vpop.f32.mrf.mxu0
      %v905 = vadd.f32 %v747, %v904
      %v906 = vand.u32 %v335, 4294901760
      %v907 = vsub.f32 %v335, %v906
      %908 = vmatmul.f32.gmra.mxu0 %v907
      %v909 = vpop.f32.mrf.mxu0
      %v910 = vadd.f32 %v751, %v909
      %v911 = vand.u32 %v338, 4294901760
      %v912 = vsub.f32 %v338, %v911
      %913 = vmatmul.f32.gmra.mxu0 %v912
      %v914 = vpop.f32.mrf.mxu0
      %v915 = vadd.f32 %v755, %v914
      %v916 = vand.u32 %v341, 4294901760
      %v917 = vsub.f32 %v341, %v916
      %918 = vmatmul.f32.gmra.mxu0 %v917
      %v919 = vpop.f32.mrf.mxu0
      %v920 = vadd.f32 %v759, %v919
      %v921 = vand.u32 %v344, 4294901760
      %v922 = vsub.f32 %v344, %v921
      %923 = vmatmul.f32.gmra.mxu0 %v922
      %v924 = vpop.f32.mrf.mxu0
      %v925 = vadd.f32 %v763, %v924
      %v926 = vand.u32 %v347, 4294901760
      %v927 = vsub.f32 %v347, %v926
      %928 = vmatmul.f32.gmra.mxu0 %v927
      %v929 = vpop.f32.mrf.mxu0
      %v930 = vadd.f32 %v767, %v929
      %v931 = vand.u32 %v350, 4294901760
      %v932 = vsub.f32 %v350, %v931
      %933 = vmatmul.f32.gmra.mxu0 %v932
      %v934 = vpop.f32.mrf.mxu0
      %v935 = vadd.f32 %v771, %v934
      %v936 = vand.u32 %v353, 4294901760
      %v937 = vsub.f32 %v353, %v936
      %938 = vmatmul.f32.gmra.mxu0 %v937
      %v939 = vpop.f32.mrf.mxu0
      %v940 = vadd.f32 %v775, %v939
      %v941 = vand.u32 %v356, 4294901760
      %v942 = vsub.f32 %v356, %v941
      %943 = vmatmul.f32.gmra.mxu0 %v942
      %v944 = vpop.f32.mrf.mxu0
      %v945 = vadd.f32 %v779, %v944
      %v946 = vand.u32 %v359, 4294901760
      %v947 = vsub.f32 %v359, %v946
      %948 = vmatmul.f32.gmra.mxu0 %v947
      %v949 = vpop.f32.mrf.mxu0
      %v950 = vadd.f32 %v783, %v949
      %v951 = vand.u32 %v362, 4294901760
      %v952 = vsub.f32 %v362, %v951
      %953 = vmatmul.f32.gmra.mxu0 %v952
      %v954 = vpop.f32.mrf.mxu0
      %v955 = vadd.f32 %v787, %v954
      %v956 = vand.u32 %v365, 4294901760
      %v957 = vsub.f32 %v365, %v956
      %958 = vmatmul.f32.gmra.mxu0 %v957
      %v959 = vpop.f32.mrf.mxu0
      %v960 = vadd.f32 %v791, %v959
      %v961 = vand.u32 %v368, 4294901760
      %v962 = vsub.f32 %v368, %v961
      %963 = vmatmul.f32.gmra.mxu0 %v962
      %v964 = vpop.f32.mrf.mxu0
      %v965 = vadd.f32 %v795, %v964
      %v966 = vand.u32 %v371, 4294901760
      %v967 = vsub.f32 %v371, %v966
      %968 = vmatmul.f32.gmra.mxu0 %v967
      %v969 = vpop.f32.mrf.mxu0
      %v970 = vadd.f32 %v799, %v969
      %v971 = vand.u32 %v374, 4294901760
      %v972 = vsub.f32 %v374, %v971
      %973 = vmatmul.f32.gmra.mxu0 %v972
      %v974 = vpop.f32.mrf.mxu0
      %v975 = vadd.f32 %v803, %v974
      %v976 = vand.u32 %v377, 4294901760
      %v977 = vsub.f32 %v377, %v976
      %978 = vmatmul.f32.gmra.mxu0 %v977
      %v979 = vpop.f32.mrf.mxu0
      %v980 = vadd.f32 %v807, %v979
      %v981 = vand.u32 %v380, 4294901760
      %v982 = vsub.f32 %v380, %v981
      %983 = vmatmul.f32.gmra.mxu0 %v982
      %v984 = vpop.f32.mrf.mxu0
      %v985 = vadd.f32 %v811, %v984
      %v986 = vand.u32 %v383, 4294901760
      %v987 = vsub.f32 %v383, %v986
      %988 = vmatmul.f32.gmra.mxu0 %v987
      %v989 = vpop.f32.mrf.mxu0
      %v990 = vadd.f32 %v815, %v989
      %v991 = vand.u32 %v386, 4294901760
      %v992 = vsub.f32 %v386, %v991
      %993 = vmatmul.f32.gmra.mxu0 %v992
      %v994 = vpop.f32.mrf.mxu0
      %v995 = vadd.f32 %v819, %v994
      %v996 = vand.u32 %v389, 4294901760
      %v997 = vsub.f32 %v389, %v996
      %998 = vmatmul.f32.gmra.mxu0 %v997
      %v999 = vpop.f32.mrf.mxu0
      %v1000 = vadd.f32 %v823, %v999
      %v1001 = vand.u32 %v392, 4294901760
      %v1002 = vsub.f32 %v392, %v1001
      %1003 = vmatmul.f32.gmra.mxu0 %v1002
      %v1004 = vpop.f32.mrf.mxu0
      %v1005 = vadd.f32 %v827, %v1004
      %v1006 = vand.u32 %v395, 4294901760
      %v1007 = vsub.f32 %v395, %v1006
      %1008 = vmatmul.f32.gmra.mxu0 %v1007
      %v1009 = vpop.f32.mrf.mxu0
      %v1010 = vadd.f32 %v831, %v1009
      %v1011 = vand.u32 %v398, 4294901760
      %v1012 = vsub.f32 %v398, %v1011
      %1013 = vmatmul.f32.gmra.mxu0 %v1012
      %v1014 = vpop.f32.mrf.mxu0
      %v1015 = vadd.f32 %v835, %v1014
      %v1016 = vand.u32 %v401, 4294901760
      %v1017 = vsub.f32 %v401, %v1016
      %1018 = vmatmul.f32.gmra.mxu0 %v1017
      %v1019 = vpop.f32.mrf.mxu0
      %v1020 = vadd.f32 %v839, %v1019
      %v1021 = vand.u32 %v404, 4294901760
      %v1022 = vsub.f32 %v404, %v1021
      %1023 = vmatmul.f32.gmra.mxu0 %v1022
      %v1024 = vpop.f32.mrf.mxu0
      %v1025 = vadd.f32 %v843, %v1024
      %v1026 = vand.u32 %v407, 4294901760
      %v1027 = vsub.f32 %v407, %v1026
      %1028 = vmatmul.f32.gmra.mxu0 %v1027
      %v1029 = vpop.f32.mrf.mxu0
      %v1030 = vadd.f32 %v847, %v1029
      %v1031 = vand.u32 %v410, 4294901760
      %v1032 = vsub.f32 %v410, %v1031
      %1033 = vmatmul.f32.gmra.mxu0 %v1032
      %v1034 = vpop.f32.mrf.mxu0
      %v1035 = vadd.f32 %v851, %v1034
      %v1036 = vand.u32 %v413, 4294901760
      %v1037 = vsub.f32 %v413, %v1036
      %1038 = vmatmul.f32.gmra.mxu0 %v1037
      %v1039 = vpop.f32.mrf.mxu0
      %v1040 = vadd.f32 %v855, %v1039
      %1041 = vdwg.mxu0
      %1042 = vmatpush.msra.mxu0 0.0
      %1043 = vmatpush.msra.mxu0 0.0
      %1044 = vmatpush.msra.mxu0 0.0
      %1045 = vmatpush.msra.mxu0 0.0
      %1046 = vmatpush.msra.mxu0 0.0
      %1047 = vmatpush.msra.mxu0 0.0
      %1048 = vmatpush.msra.mxu0 0.0
      %1049 = vmatpush.msra.mxu0 0.0
      %1050 = vmatpush.msra.mxu0 0.0
      %1051 = vmatpush.msra.mxu0 0.0
      %1052 = vmatpush.msra.mxu0 0.0
      %1053 = vmatpush.msra.mxu0 0.0
      %v1054 = vand.u32 %v317, 4294901760
      %1055 = vmatpush.msra.mxu0 %v1054
      %v1056 = vand.u32 %v316, 4294901760
      %1057 = vmatpush.msra.mxu0 %v1056
      %v1058 = vand.u32 %v315, 4294901760
      %1059 = vmatpush.msra.mxu0 %v1058
      %v1060 = vand.u32 %v314, 4294901760
      %1061 = vmatpush.msra.mxu0 %v1060
      %v1062 = vand.u32 %v320, 4294901760
      %v1063 = vsub.f32 %v320, %v1062
      %v1064 = vand.u32 %v1063, 4294901760
      %1065 = vmatmul.f32.gmra.mxu0 %v1064
      %v1066 = vpop.f32.mrf.mxu0
      %v1067 = vadd.f32 %v885, %v1066
      %v1068 = vand.u32 %v323, 4294901760
      %v1069 = vsub.f32 %v323, %v1068
      %v1070 = vand.u32 %v1069, 4294901760
      %1071 = vmatmul.f32.gmra.mxu0 %v1070
      %v1072 = vpop.f32.mrf.mxu0
      %v1073 = vadd.f32 %v890, %v1072
      %v1074 = vand.u32 %v326, 4294901760
      %v1075 = vsub.f32 %v326, %v1074
      %v1076 = vand.u32 %v1075, 4294901760
      %1077 = vmatmul.f32.gmra.mxu0 %v1076
      %v1078 = vpop.f32.mrf.mxu0
      %v1079 = vadd.f32 %v895, %v1078
      %v1080 = vand.u32 %v329, 4294901760
      %v1081 = vsub.f32 %v329, %v1080
      %v1082 = vand.u32 %v1081, 4294901760
      %1083 = vmatmul.f32.gmra.mxu0 %v1082
      %v1084 = vpop.f32.mrf.mxu0
      %v1085 = vadd.f32 %v900, %v1084
      %v1086 = vand.u32 %v332, 4294901760
      %v1087 = vsub.f32 %v332, %v1086
      %v1088 = vand.u32 %v1087, 4294901760
      %1089 = vmatmul.f32.gmra.mxu0 %v1088
      %v1090 = vpop.f32.mrf.mxu0
      %v1091 = vadd.f32 %v905, %v1090
      %v1092 = vand.u32 %v335, 4294901760
      %v1093 = vsub.f32 %v335, %v1092
      %v1094 = vand.u32 %v1093, 4294901760
      %1095 = vmatmul.f32.gmra.mxu0 %v1094
      %v1096 = vpop.f32.mrf.mxu0
      %v1097 = vadd.f32 %v910, %v1096
      %v1098 = vand.u32 %v338, 4294901760
      %v1099 = vsub.f32 %v338, %v1098
      %v1100 = vand.u32 %v1099, 4294901760
      %1101 = vmatmul.f32.gmra.mxu0 %v1100
      %v1102 = vpop.f32.mrf.mxu0
      %v1103 = vadd.f32 %v915, %v1102
      %v1104 = vand.u32 %v341, 4294901760
      %v1105 = vsub.f32 %v341, %v1104
      %v1106 = vand.u32 %v1105, 4294901760
      %1107 = vmatmul.f32.gmra.mxu0 %v1106
      %v1108 = vpop.f32.mrf.mxu0
      %v1109 = vadd.f32 %v920, %v1108
      %v1110 = vand.u32 %v344, 4294901760
      %v1111 = vsub.f32 %v344, %v1110
      %v1112 = vand.u32 %v1111, 4294901760
      %1113 = vmatmul.f32.gmra.mxu0 %v1112
      %v1114 = vpop.f32.mrf.mxu0
      %v1115 = vadd.f32 %v925, %v1114
      %v1116 = vand.u32 %v347, 4294901760
      %v1117 = vsub.f32 %v347, %v1116
      %v1118 = vand.u32 %v1117, 4294901760
      %1119 = vmatmul.f32.gmra.mxu0 %v1118
      %v1120 = vpop.f32.mrf.mxu0
      %v1121 = vadd.f32 %v930, %v1120
      %v1122 = vand.u32 %v350, 4294901760
      %v1123 = vsub.f32 %v350, %v1122
      %v1124 = vand.u32 %v1123, 4294901760
      %1125 = vmatmul.f32.gmra.mxu0 %v1124
      %v1126 = vpop.f32.mrf.mxu0
      %v1127 = vadd.f32 %v935, %v1126
      %v1128 = vand.u32 %v353, 4294901760
      %v1129 = vsub.f32 %v353, %v1128
      %v1130 = vand.u32 %v1129, 4294901760
      %1131 = vmatmul.f32.gmra.mxu0 %v1130
      %v1132 = vpop.f32.mrf.mxu0
      %v1133 = vadd.f32 %v940, %v1132
      %v1134 = vand.u32 %v356, 4294901760
      %v1135 = vsub.f32 %v356, %v1134
      %v1136 = vand.u32 %v1135, 4294901760
      %1137 = vmatmul.f32.gmra.mxu0 %v1136
      %v1138 = vpop.f32.mrf.mxu0
      %v1139 = vadd.f32 %v945, %v1138
      %v1140 = vand.u32 %v359, 4294901760
      %v1141 = vsub.f32 %v359, %v1140
      %v1142 = vand.u32 %v1141, 4294901760
      %1143 = vmatmul.f32.gmra.mxu0 %v1142
      %v1144 = vpop.f32.mrf.mxu0
      %v1145 = vadd.f32 %v950, %v1144
      %v1146 = vand.u32 %v362, 4294901760
      %v1147 = vsub.f32 %v362, %v1146
      %v1148 = vand.u32 %v1147, 4294901760
      %1149 = vmatmul.f32.gmra.mxu0 %v1148
      %v1150 = vpop.f32.mrf.mxu0
      %v1151 = vadd.f32 %v955, %v1150
      %v1152 = vand.u32 %v365, 4294901760
      %v1153 = vsub.f32 %v365, %v1152
      %v1154 = vand.u32 %v1153, 4294901760
      %1155 = vmatmul.f32.gmra.mxu0 %v1154
      %v1156 = vpop.f32.mrf.mxu0
      %v1157 = vadd.f32 %v960, %v1156
      %v1158 = vand.u32 %v368, 4294901760
      %v1159 = vsub.f32 %v368, %v1158
      %v1160 = vand.u32 %v1159, 4294901760
      %1161 = vmatmul.f32.gmra.mxu0 %v1160
      %v1162 = vpop.f32.mrf.mxu0
      %v1163 = vadd.f32 %v965, %v1162
      %v1164 = vand.u32 %v371, 4294901760
      %v1165 = vsub.f32 %v371, %v1164
      %v1166 = vand.u32 %v1165, 4294901760
      %1167 = vmatmul.f32.gmra.mxu0 %v1166
      %v1168 = vpop.f32.mrf.mxu0
      %v1169 = vadd.f32 %v970, %v1168
      %v1170 = vand.u32 %v374, 4294901760
      %v1171 = vsub.f32 %v374, %v1170
      %v1172 = vand.u32 %v1171, 4294901760
      %1173 = vmatmul.f32.gmra.mxu0 %v1172
      %v1174 = vpop.f32.mrf.mxu0
      %v1175 = vadd.f32 %v975, %v1174
      %v1176 = vand.u32 %v377, 4294901760
      %v1177 = vsub.f32 %v377, %v1176
      %v1178 = vand.u32 %v1177, 4294901760
      %1179 = vmatmul.f32.gmra.mxu0 %v1178
      %v1180 = vpop.f32.mrf.mxu0
      %v1181 = vadd.f32 %v980, %v1180
      %v1182 = vand.u32 %v380, 4294901760
      %v1183 = vsub.f32 %v380, %v1182
      %v1184 = vand.u32 %v1183, 4294901760
      %1185 = vmatmul.f32.gmra.mxu0 %v1184
      %v1186 = vpop.f32.mrf.mxu0
      %v1187 = vadd.f32 %v985, %v1186
      %v1188 = vand.u32 %v383, 4294901760
      %v1189 = vsub.f32 %v383, %v1188
      %v1190 = vand.u32 %v1189, 4294901760
      %1191 = vmatmul.f32.gmra.mxu0 %v1190
      %v1192 = vpop.f32.mrf.mxu0
      %v1193 = vadd.f32 %v990, %v1192
      %v1194 = vand.u32 %v386, 4294901760
      %v1195 = vsub.f32 %v386, %v1194
      %v1196 = vand.u32 %v1195, 4294901760
      %1197 = vmatmul.f32.gmra.mxu0 %v1196
      %v1198 = vpop.f32.mrf.mxu0
      %v1199 = vadd.f32 %v995, %v1198
      %v1200 = vand.u32 %v389, 4294901760
      %v1201 = vsub.f32 %v389, %v1200
      %v1202 = vand.u32 %v1201, 4294901760
      %1203 = vmatmul.f32.gmra.mxu0 %v1202
      %v1204 = vpop.f32.mrf.mxu0
      %v1205 = vadd.f32 %v1000, %v1204
      %v1206 = vand.u32 %v392, 4294901760
      %v1207 = vsub.f32 %v392, %v1206
      %v1208 = vand.u32 %v1207, 4294901760
      %1209 = vmatmul.f32.gmra.mxu0 %v1208
      %v1210 = vpop.f32.mrf.mxu0
      %v1211 = vadd.f32 %v1005, %v1210
      %v1212 = vand.u32 %v395, 4294901760
      %v1213 = vsub.f32 %v395, %v1212
      %v1214 = vand.u32 %v1213, 4294901760
      %1215 = vmatmul.f32.gmra.mxu0 %v1214
      %v1216 = vpop.f32.mrf.mxu0
      %v1217 = vadd.f32 %v1010, %v1216
      %v1218 = vand.u32 %v398, 4294901760
      %v1219 = vsub.f32 %v398, %v1218
      %v1220 = vand.u32 %v1219, 4294901760
      %1221 = vmatmul.f32.gmra.mxu0 %v1220
      %v1222 = vpop.f32.mrf.mxu0
      %v1223 = vadd.f32 %v1015, %v1222
      %v1224 = vand.u32 %v401, 4294901760
      %v1225 = vsub.f32 %v401, %v1224
      %v1226 = vand.u32 %v1225, 4294901760
      %1227 = vmatmul.f32.gmra.mxu0 %v1226
      %v1228 = vpop.f32.mrf.mxu0
      %v1229 = vadd.f32 %v1020, %v1228
      %v1230 = vand.u32 %v404, 4294901760
      %v1231 = vsub.f32 %v404, %v1230
      %v1232 = vand.u32 %v1231, 4294901760
      %1233 = vmatmul.f32.gmra.mxu0 %v1232
      %v1234 = vpop.f32.mrf.mxu0
      %v1235 = vadd.f32 %v1025, %v1234
      %v1236 = vand.u32 %v407, 4294901760
      %v1237 = vsub.f32 %v407, %v1236
      %v1238 = vand.u32 %v1237, 4294901760
      %1239 = vmatmul.f32.gmra.mxu0 %v1238
      %v1240 = vpop.f32.mrf.mxu0
      %v1241 = vadd.f32 %v1030, %v1240
      %v1242 = vand.u32 %v410, 4294901760
      %v1243 = vsub.f32 %v410, %v1242
      %v1244 = vand.u32 %v1243, 4294901760
      %1245 = vmatmul.f32.gmra.mxu0 %v1244
      %v1246 = vpop.f32.mrf.mxu0
      %v1247 = vadd.f32 %v1035, %v1246
      %v1248 = vand.u32 %v413, 4294901760
      %v1249 = vsub.f32 %v413, %v1248
      %v1250 = vand.u32 %v1249, 4294901760
      %1251 = vmatmul.f32.gmra.mxu0 %v1250
      %v1252 = vpop.f32.mrf.mxu0
      %v1253 = vadd.f32 %v1040, %v1252
      %1254 = vdwg.mxu0
      %1255 = vmatpush.msra.mxu0 0.0
      %1256 = vmatpush.msra.mxu0 0.0
      %1257 = vmatpush.msra.mxu0 0.0
      %1258 = vmatpush.msra.mxu0 0.0
      %1259 = vmatpush.msra.mxu0 0.0
      %1260 = vmatpush.msra.mxu0 0.0
      %1261 = vmatpush.msra.mxu0 0.0
      %1262 = vmatpush.msra.mxu0 0.0
      %1263 = vmatpush.msra.mxu0 0.0
      %1264 = vmatpush.msra.mxu0 0.0
      %1265 = vmatpush.msra.mxu0 0.0
      %1266 = vmatpush.msra.mxu0 0.0
      %v1267 = vand.u32 %v317, 4294901760
      %v1268 = vsub.f32 %v317, %v1267
      %v1269 = vand.u32 %v1268, 4294901760
      %1270 = vmatpush.msra.mxu0 %v1269
      %v1271 = vand.u32 %v316, 4294901760
      %v1272 = vsub.f32 %v316, %v1271
      %v1273 = vand.u32 %v1272, 4294901760
      %1274 = vmatpush.msra.mxu0 %v1273
      %v1275 = vand.u32 %v315, 4294901760
      %v1276 = vsub.f32 %v315, %v1275
      %v1277 = vand.u32 %v1276, 4294901760
      %1278 = vmatpush.msra.mxu0 %v1277
      %v1279 = vand.u32 %v314, 4294901760
      %v1280 = vsub.f32 %v314, %v1279
      %v1281 = vand.u32 %v1280, 4294901760
      %1282 = vmatpush.msra.mxu0 %v1281
      %v1283 = vand.u32 %v320, 4294901760
      %1284 = vmatmul.f32.gmra.mxu0 %v1283
      %v1285 = vpop.f32.mrf.mxu0
      %v1286 = vadd.f32 %v1067, %v1285
      %v1287 = vand.u32 %v323, 4294901760
      %1288 = vmatmul.f32.gmra.mxu0 %v1287
      %v1289 = vpop.f32.mrf.mxu0
      %v1290 = vadd.f32 %v1073, %v1289
      %v1291 = vand.u32 %v326, 4294901760
      %1292 = vmatmul.f32.gmra.mxu0 %v1291
      %v1293 = vpop.f32.mrf.mxu0
      %v1294 = vadd.f32 %v1079, %v1293
      %v1295 = vand.u32 %v329, 4294901760
      %1296 = vmatmul.f32.gmra.mxu0 %v1295
      %v1297 = vpop.f32.mrf.mxu0
      %v1298 = vadd.f32 %v1085, %v1297
      %v1299 = vand.u32 %v332, 4294901760
      %1300 = vmatmul.f32.gmra.mxu0 %v1299
      %v1301 = vpop.f32.mrf.mxu0
      %v1302 = vadd.f32 %v1091, %v1301
      %v1303 = vand.u32 %v335, 4294901760
      %1304 = vmatmul.f32.gmra.mxu0 %v1303
      %v1305 = vpop.f32.mrf.mxu0
      %v1306 = vadd.f32 %v1097, %v1305
      %v1307 = vand.u32 %v338, 4294901760
      %1308 = vmatmul.f32.gmra.mxu0 %v1307
      %v1309 = vpop.f32.mrf.mxu0
      %v1310 = vadd.f32 %v1103, %v1309
      %v1311 = vand.u32 %v341, 4294901760
      %1312 = vmatmul.f32.gmra.mxu0 %v1311
      %v1313 = vpop.f32.mrf.mxu0
      %v1314 = vadd.f32 %v1109, %v1313
      %v1315 = vand.u32 %v344, 4294901760
      %1316 = vmatmul.f32.gmra.mxu0 %v1315
      %v1317 = vpop.f32.mrf.mxu0
      %v1318 = vadd.f32 %v1115, %v1317
      %v1319 = vand.u32 %v347, 4294901760
      %1320 = vmatmul.f32.gmra.mxu0 %v1319
      %v1321 = vpop.f32.mrf.mxu0
      %v1322 = vadd.f32 %v1121, %v1321
      %v1323 = vand.u32 %v350, 4294901760
      %1324 = vmatmul.f32.gmra.mxu0 %v1323
      %v1325 = vpop.f32.mrf.mxu0
      %v1326 = vadd.f32 %v1127, %v1325
      %v1327 = vand.u32 %v353, 4294901760
      %1328 = vmatmul.f32.gmra.mxu0 %v1327
      %v1329 = vpop.f32.mrf.mxu0
      %v1330 = vadd.f32 %v1133, %v1329
      %v1331 = vand.u32 %v356, 4294901760
      %1332 = vmatmul.f32.gmra.mxu0 %v1331
      %v1333 = vpop.f32.mrf.mxu0
      %v1334 = vadd.f32 %v1139, %v1333
      %v1335 = vand.u32 %v359, 4294901760
      %1336 = vmatmul.f32.gmra.mxu0 %v1335
      %v1337 = vpop.f32.mrf.mxu0
      %v1338 = vadd.f32 %v1145, %v1337
      %v1339 = vand.u32 %v362, 4294901760
      %1340 = vmatmul.f32.gmra.mxu0 %v1339
      %v1341 = vpop.f32.mrf.mxu0
      %v1342 = vadd.f32 %v1151, %v1341
      %v1343 = vand.u32 %v365, 4294901760
      %1344 = vmatmul.f32.gmra.mxu0 %v1343
      %v1345 = vpop.f32.mrf.mxu0
      %v1346 = vadd.f32 %v1157, %v1345
      %v1347 = vand.u32 %v368, 4294901760
      %1348 = vmatmul.f32.gmra.mxu0 %v1347
      %v1349 = vpop.f32.mrf.mxu0
      %v1350 = vadd.f32 %v1163, %v1349
      %v1351 = vand.u32 %v371, 4294901760
      %1352 = vmatmul.f32.gmra.mxu0 %v1351
      %v1353 = vpop.f32.mrf.mxu0
      %v1354 = vadd.f32 %v1169, %v1353
      %v1355 = vand.u32 %v374, 4294901760
      %1356 = vmatmul.f32.gmra.mxu0 %v1355
      %v1357 = vpop.f32.mrf.mxu0
      %v1358 = vadd.f32 %v1175, %v1357
      %v1359 = vand.u32 %v377, 4294901760
      %1360 = vmatmul.f32.gmra.mxu0 %v1359
      %v1361 = vpop.f32.mrf.mxu0
      %v1362 = vadd.f32 %v1181, %v1361
      %v1363 = vand.u32 %v380, 4294901760
      %1364 = vmatmul.f32.gmra.mxu0 %v1363
      %v1365 = vpop.f32.mrf.mxu0
      %v1366 = vadd.f32 %v1187, %v1365
      %v1367 = vand.u32 %v383, 4294901760
      %1368 = vmatmul.f32.gmra.mxu0 %v1367
      %v1369 = vpop.f32.mrf.mxu0
      %v1370 = vadd.f32 %v1193, %v1369
      %v1371 = vand.u32 %v386, 4294901760
      %1372 = vmatmul.f32.gmra.mxu0 %v1371
      %v1373 = vpop.f32.mrf.mxu0
      %v1374 = vadd.f32 %v1199, %v1373
      %v1375 = vand.u32 %v389, 4294901760
      %1376 = vmatmul.f32.gmra.mxu0 %v1375
      %v1377 = vpop.f32.mrf.mxu0
      %v1378 = vadd.f32 %v1205, %v1377
      %v1379 = vand.u32 %v392, 4294901760
      %1380 = vmatmul.f32.gmra.mxu0 %v1379
      %v1381 = vpop.f32.mrf.mxu0
      %v1382 = vadd.f32 %v1211, %v1381
      %v1383 = vand.u32 %v395, 4294901760
      %1384 = vmatmul.f32.gmra.mxu0 %v1383
      %v1385 = vpop.f32.mrf.mxu0
      %v1386 = vadd.f32 %v1217, %v1385
      %v1387 = vand.u32 %v398, 4294901760
      %1388 = vmatmul.f32.gmra.mxu0 %v1387
      %v1389 = vpop.f32.mrf.mxu0
      %v1390 = vadd.f32 %v1223, %v1389
      %v1391 = vand.u32 %v401, 4294901760
      %1392 = vmatmul.f32.gmra.mxu0 %v1391
      %v1393 = vpop.f32.mrf.mxu0
      %v1394 = vadd.f32 %v1229, %v1393
      %v1395 = vand.u32 %v404, 4294901760
      %1396 = vmatmul.f32.gmra.mxu0 %v1395
      %v1397 = vpop.f32.mrf.mxu0
      %v1398 = vadd.f32 %v1235, %v1397
      %v1399 = vand.u32 %v407, 4294901760
      %1400 = vmatmul.f32.gmra.mxu0 %v1399
      %v1401 = vpop.f32.mrf.mxu0
      %v1402 = vadd.f32 %v1241, %v1401
      %v1403 = vand.u32 %v410, 4294901760
      %1404 = vmatmul.f32.gmra.mxu0 %v1403
      %v1405 = vpop.f32.mrf.mxu0
      %v1406 = vadd.f32 %v1247, %v1405
      %v1407 = vand.u32 %v413, 4294901760
      %1408 = vmatmul.f32.gmra.mxu0 %v1407
      %v1409 = vpop.f32.mrf.mxu0
      %v1410 = vadd.f32 %v1253, %v1409
      %1411 = vdwg.mxu0
      %1412 = vmatpush.msra.mxu0 0.0
      %1413 = vmatpush.msra.mxu0 0.0
      %1414 = vmatpush.msra.mxu0 0.0
      %1415 = vmatpush.msra.mxu0 0.0
      %1416 = vmatpush.msra.mxu0 0.0
      %1417 = vmatpush.msra.mxu0 0.0
      %1418 = vmatpush.msra.mxu0 0.0
      %1419 = vmatpush.msra.mxu0 0.0
      %1420 = vmatpush.msra.mxu0 0.0
      %1421 = vmatpush.msra.mxu0 0.0
      %1422 = vmatpush.msra.mxu0 0.0
      %1423 = vmatpush.msra.mxu0 0.0
      %v1424 = vand.u32 %v317, 4294901760
      %1425 = vmatpush.msra.mxu0 %v1424
      %v1426 = vand.u32 %v316, 4294901760
      %1427 = vmatpush.msra.mxu0 %v1426
      %v1428 = vand.u32 %v315, 4294901760
      %1429 = vmatpush.msra.mxu0 %v1428
      %v1430 = vand.u32 %v314, 4294901760
      %1431 = vmatpush.msra.mxu0 %v1430
      %v1432 = vand.u32 %v320, 4294901760
      %1433 = vmatmul.f32.gmra.mxu0 %v1432
      %v1434 = vpop.f32.mrf.mxu0
      %v1435 = vadd.f32 %v1286, %v1434
      %v1436 = vand.u32 %v323, 4294901760
      %1437 = vmatmul.f32.gmra.mxu0 %v1436
      %v1438 = vpop.f32.mrf.mxu0
      %v1439 = vadd.f32 %v1290, %v1438
      %v1440 = vand.u32 %v326, 4294901760
      %1441 = vmatmul.f32.gmra.mxu0 %v1440
      %v1442 = vpop.f32.mrf.mxu0
      %v1443 = vadd.f32 %v1294, %v1442
      %v1444 = vand.u32 %v329, 4294901760
      %1445 = vmatmul.f32.gmra.mxu0 %v1444
      %v1446 = vpop.f32.mrf.mxu0
      %v1447 = vadd.f32 %v1298, %v1446
      %v1448 = vand.u32 %v332, 4294901760
      %1449 = vmatmul.f32.gmra.mxu0 %v1448
      %v1450 = vpop.f32.mrf.mxu0
      %v1451 = vadd.f32 %v1302, %v1450
      %v1452 = vand.u32 %v335, 4294901760
      %1453 = vmatmul.f32.gmra.mxu0 %v1452
      %v1454 = vpop.f32.mrf.mxu0
      %v1455 = vadd.f32 %v1306, %v1454
      %v1456 = vand.u32 %v338, 4294901760
      %1457 = vmatmul.f32.gmra.mxu0 %v1456
      %v1458 = vpop.f32.mrf.mxu0
      %v1459 = vadd.f32 %v1310, %v1458
      %v1460 = vand.u32 %v341, 4294901760
      %1461 = vmatmul.f32.gmra.mxu0 %v1460
      %v1462 = vpop.f32.mrf.mxu0
      %v1463 = vadd.f32 %v1314, %v1462
      %v1464 = vand.u32 %v344, 4294901760
      %1465 = vmatmul.f32.gmra.mxu0 %v1464
      %v1466 = vpop.f32.mrf.mxu0
      %v1467 = vadd.f32 %v1318, %v1466
      %v1468 = vand.u32 %v347, 4294901760
      %1469 = vmatmul.f32.gmra.mxu0 %v1468
      %v1470 = vpop.f32.mrf.mxu0
      %v1471 = vadd.f32 %v1322, %v1470
      %v1472 = vand.u32 %v350, 4294901760
      %1473 = vmatmul.f32.gmra.mxu0 %v1472
      %v1474 = vpop.f32.mrf.mxu0
      %v1475 = vadd.f32 %v1326, %v1474
      %v1476 = vand.u32 %v353, 4294901760
      %1477 = vmatmul.f32.gmra.mxu0 %v1476
      %v1478 = vpop.f32.mrf.mxu0
      %v1479 = vadd.f32 %v1330, %v1478
      %v1480 = vand.u32 %v356, 4294901760
      %1481 = vmatmul.f32.gmra.mxu0 %v1480
      %v1482 = vpop.f32.mrf.mxu0
      %v1483 = vadd.f32 %v1334, %v1482
      %v1484 = vand.u32 %v359, 4294901760
      %1485 = vmatmul.f32.gmra.mxu0 %v1484
      %v1486 = vpop.f32.mrf.mxu0
      %v1487 = vadd.f32 %v1338, %v1486
      %v1488 = vand.u32 %v362, 4294901760
      %1489 = vmatmul.f32.gmra.mxu0 %v1488
      %v1490 = vpop.f32.mrf.mxu0
      %v1491 = vadd.f32 %v1342, %v1490
      %v1492 = vand.u32 %v365, 4294901760
      %1493 = vmatmul.f32.gmra.mxu0 %v1492
      %v1494 = vpop.f32.mrf.mxu0
      %v1495 = vadd.f32 %v1346, %v1494
      %v1496 = vand.u32 %v368, 4294901760
      %1497 = vmatmul.f32.gmra.mxu0 %v1496
      %v1498 = vpop.f32.mrf.mxu0
      %v1499 = vadd.f32 %v1350, %v1498
      %v1500 = vand.u32 %v371, 4294901760
      %1501 = vmatmul.f32.gmra.mxu0 %v1500
      %v1502 = vpop.f32.mrf.mxu0
      %v1503 = vadd.f32 %v1354, %v1502
      %v1504 = vand.u32 %v374, 4294901760
      %1505 = vmatmul.f32.gmra.mxu0 %v1504
      %v1506 = vpop.f32.mrf.mxu0
      %v1507 = vadd.f32 %v1358, %v1506
      %v1508 = vand.u32 %v377, 4294901760
      %1509 = vmatmul.f32.gmra.mxu0 %v1508
      %v1510 = vpop.f32.mrf.mxu0
      %v1511 = vadd.f32 %v1362, %v1510
      %v1512 = vand.u32 %v380, 4294901760
      %1513 = vmatmul.f32.gmra.mxu0 %v1512
      %v1514 = vpop.f32.mrf.mxu0
      %v1515 = vadd.f32 %v1366, %v1514
      %v1516 = vand.u32 %v383, 4294901760
      %1517 = vmatmul.f32.gmra.mxu0 %v1516
      %v1518 = vpop.f32.mrf.mxu0
      %v1519 = vadd.f32 %v1370, %v1518
      %v1520 = vand.u32 %v386, 4294901760
      %1521 = vmatmul.f32.gmra.mxu0 %v1520
      %v1522 = vpop.f32.mrf.mxu0
      %v1523 = vadd.f32 %v1374, %v1522
      %v1524 = vand.u32 %v389, 4294901760
      %1525 = vmatmul.f32.gmra.mxu0 %v1524
      %v1526 = vpop.f32.mrf.mxu0
      %v1527 = vadd.f32 %v1378, %v1526
      %v1528 = vand.u32 %v392, 4294901760
      %1529 = vmatmul.f32.gmra.mxu0 %v1528
      %v1530 = vpop.f32.mrf.mxu0
      %v1531 = vadd.f32 %v1382, %v1530
      %v1532 = vand.u32 %v395, 4294901760
      %1533 = vmatmul.f32.gmra.mxu0 %v1532
      %v1534 = vpop.f32.mrf.mxu0
      %v1535 = vadd.f32 %v1386, %v1534
      %v1536 = vand.u32 %v398, 4294901760
      %1537 = vmatmul.f32.gmra.mxu0 %v1536
      %v1538 = vpop.f32.mrf.mxu0
      %v1539 = vadd.f32 %v1390, %v1538
      %v1540 = vand.u32 %v401, 4294901760
      %1541 = vmatmul.f32.gmra.mxu0 %v1540
      %v1542 = vpop.f32.mrf.mxu0
      %v1543 = vadd.f32 %v1394, %v1542
      %v1544 = vand.u32 %v404, 4294901760
      %1545 = vmatmul.f32.gmra.mxu0 %v1544
      %v1546 = vpop.f32.mrf.mxu0
      %v1547 = vadd.f32 %v1398, %v1546
      %v1548 = vand.u32 %v407, 4294901760
      %1549 = vmatmul.f32.gmra.mxu0 %v1548
      %v1550 = vpop.f32.mrf.mxu0
      %v1551 = vadd.f32 %v1402, %v1550
      %v1552 = vand.u32 %v410, 4294901760
      %1553 = vmatmul.f32.gmra.mxu0 %v1552
      %v1554 = vpop.f32.mrf.mxu0
      %v1555 = vadd.f32 %v1406, %v1554
      %v1556 = vand.u32 %v413, 4294901760
      %1557 = vmatmul.f32.gmra.mxu0 %v1556
      %v1558 = vpop.f32.mrf.mxu0
      %v1559 = vadd.f32 %v1410, %v1558
      %1560 = vdwg.mxu0
      %v1561 = vpack.c.bf16 %v1435, %v1435
      %v1562 = vpack.c.bf16 %v1439, %v1439
      %v1563 = vpack.c.bf16 %v1443, %v1443
      %v1564 = vpack.c.bf16 %v1447, %v1447
      %v1565 = vpack.c.bf16 %v1451, %v1451
      %v1566 = vpack.c.bf16 %v1455, %v1455
      %v1567 = vpack.c.bf16 %v1459, %v1459
      %v1568 = vpack.c.bf16 %v1463, %v1463
      %v1569 = vpack.c.bf16 %v1467, %v1467
      %v1570 = vpack.c.bf16 %v1471, %v1471
      %v1571 = vpack.c.bf16 %v1475, %v1475
      %v1572 = vpack.c.bf16 %v1479, %v1479
      %v1573 = vpack.c.bf16 %v1483, %v1483
      %v1574 = vpack.c.bf16 %v1487, %v1487
      %v1575 = vpack.c.bf16 %v1491, %v1491
      %v1576 = vpack.c.bf16 %v1495, %v1495
      %v1577 = vpack.c.bf16 %v1499, %v1499
      %v1578 = vpack.c.bf16 %v1503, %v1503
      %v1579 = vpack.c.bf16 %v1507, %v1507
      %v1580 = vpack.c.bf16 %v1511, %v1511
      %v1581 = vpack.c.bf16 %v1515, %v1515
      %v1582 = vpack.c.bf16 %v1519, %v1519
      %v1583 = vpack.c.bf16 %v1523, %v1523
      %v1584 = vpack.c.bf16 %v1527, %v1527
      %v1585 = vpack.c.bf16 %v1531, %v1531
      %v1586 = vpack.c.bf16 %v1535, %v1535
      %v1587 = vpack.c.bf16 %v1539, %v1539
      %v1588 = vpack.c.bf16 %v1543, %v1543
      %v1589 = vpack.c.bf16 %v1547, %v1547
      %v1590 = vpack.c.bf16 %v1551, %v1551
      %v1591 = vpack.c.bf16 %v1555, %v1555
      %v1592 = vpack.c.bf16 %v1559, %v1559
      %vm1593 = vcmask 257024
      %1594 = vst.msk [vmem:[%s268] sm:$0xf] %vm1593, %v1561
      %1595 = vst.msk [vmem:[%s268 + $0x4] sm:$0xf] %vm1593, %v1562
      %1596 = vst.msk [vmem:[%s268 + $0x8] sm:$0xf] %vm1593, %v1563
      %1597 = vst.msk [vmem:[%s268 + $0xc] sm:$0xf] %vm1593, %v1564
      %1598 = vst.msk [vmem:[%s268 + $0x10] sm:$0xf] %vm1593, %v1565
      %1599 = vst.msk [vmem:[%s268 + $0x14] sm:$0xf] %vm1593, %v1566
      %1600 = vst.msk [vmem:[%s268 + $0x18] sm:$0xf] %vm1593, %v1567
      %1601 = vst.msk [vmem:[%s268 + $0x1c] sm:$0xf] %vm1593, %v1568
      %1602 = vst.msk [vmem:[%s268 + $0x20] sm:$0xf] %vm1593, %v1569
      %1603 = vst.msk [vmem:[%s268 + $0x24] sm:$0xf] %vm1593, %v1570
      %1604 = vst.msk [vmem:[%s268 + $0x28] sm:$0xf] %vm1593, %v1571
      %1605 = vst.msk [vmem:[%s268 + $0x2c] sm:$0xf] %vm1593, %v1572
      %1606 = vst.msk [vmem:[%s268 + $0x30] sm:$0xf] %vm1593, %v1573
      %1607 = vst.msk [vmem:[%s268 + $0x34] sm:$0xf] %vm1593, %v1574
      %1608 = vst.msk [vmem:[%s268 + $0x38] sm:$0xf] %vm1593, %v1575
      %1609 = vst.msk [vmem:[%s268 + $0x3c] sm:$0xf] %vm1593, %v1576
      %1610 = vst.msk [vmem:[%s268 + $0x40] sm:$0xf] %vm1593, %v1577
      %1611 = vst.msk [vmem:[%s268 + $0x44] sm:$0xf] %vm1593, %v1578
      %1612 = vst.msk [vmem:[%s268 + $0x48] sm:$0xf] %vm1593, %v1579
      %1613 = vst.msk [vmem:[%s268 + $0x4c] sm:$0xf] %vm1593, %v1580
      %1614 = vst.msk [vmem:[%s268 + $0x50] sm:$0xf] %vm1593, %v1581
      %1615 = vst.msk [vmem:[%s268 + $0x54] sm:$0xf] %vm1593, %v1582
      %1616 = vst.msk [vmem:[%s268 + $0x58] sm:$0xf] %vm1593, %v1583
      %1617 = vst.msk [vmem:[%s268 + $0x5c] sm:$0xf] %vm1593, %v1584
      %1618 = vst.msk [vmem:[%s268 + $0x60] sm:$0xf] %vm1593, %v1585
      %1619 = vst.msk [vmem:[%s268 + $0x64] sm:$0xf] %vm1593, %v1586
      %1620 = vst.msk [vmem:[%s268 + $0x68] sm:$0xf] %vm1593, %v1587
      %1621 = vst.msk [vmem:[%s268 + $0x6c] sm:$0xf] %vm1593, %v1588
      %1622 = vst.msk [vmem:[%s268 + $0x70] sm:$0xf] %vm1593, %v1589
      %1623 = vst.msk [vmem:[%s268 + $0x74] sm:$0xf] %vm1593, %v1590
      %1624 = vst.msk [vmem:[%s268 + $0x78] sm:$0xf] %vm1593, %v1591
      %1625 = vst.msk [vmem:[%s268 + $0x7c] sm:$0xf] %vm1593, %v1592
      %v1626 = vld [vmem:[%s2] sm:$0xff]
      %v1627 = vld [vmem:[%s2 + $0x8] sm:$0xff]
      %v1628 = vld [vmem:[%s2 + $0x10] sm:$0xff]
      %v1629 = vld [vmem:[%s2 + $0x18] sm:$0xff]
      %1630 = vmatpush.msra.mxu0 0.0
      %1631 = vmatpush.msra.mxu0 0.0
      %1632 = vmatpush.msra.mxu0 0.0
      %1633 = vmatpush.msra.mxu0 0.0
      %1634 = vmatpush.msra.mxu0 0.0
      %1635 = vmatpush.msra.mxu0 0.0
      %1636 = vmatpush.msra.mxu0 0.0
      %1637 = vmatpush.msra.mxu0 0.0
      %1638 = vmatpush.msra.mxu0 0.0
      %1639 = vmatpush.msra.mxu0 0.0
      %1640 = vmatpush.msra.mxu0 0.0
      %1641 = vmatpush.msra.mxu0 0.0
      %v1642 = vand.u32 %v1629, 4294901760
      %1643 = vmatpush.msra.mxu0 %v1642
      %v1644 = vand.u32 %v1628, 4294901760
      %1645 = vmatpush.msra.mxu0 %v1644
      %v1646 = vand.u32 %v1627, 4294901760
      %1647 = vmatpush.msra.mxu0 %v1646
      %v1648 = vand.u32 %v1626, 4294901760
      %1649 = vmatpush.msra.mxu0 %v1648
      %v1650 = vand.u32 %v320, 4294901760
      %v1651 = vsub.f32 %v320, %v1650
      %v1652 = vand.u32 %v1651, 4294901760
      %v1653 = vsub.f32 %v1651, %v1652
      %v1654 = vand.u32 %v1653, 4294901760
      %1655 = vmatmul.f32.gmra.mxu0 %v1654
      %v1656 = vpop.f32.mrf.mxu0
      %v1657 = vadd.f32 0.0, %v1656
      %v1658 = vand.u32 %v323, 4294901760
      %v1659 = vsub.f32 %v323, %v1658
      %v1660 = vand.u32 %v1659, 4294901760
      %v1661 = vsub.f32 %v1659, %v1660
      %v1662 = vand.u32 %v1661, 4294901760
      %1663 = vmatmul.f32.gmra.mxu0 %v1662
      %v1664 = vpop.f32.mrf.mxu0
      %v1665 = vadd.f32 0.0, %v1664
      %v1666 = vand.u32 %v326, 4294901760
      %v1667 = vsub.f32 %v326, %v1666
      %v1668 = vand.u32 %v1667, 4294901760
      %v1669 = vsub.f32 %v1667, %v1668
      %v1670 = vand.u32 %v1669, 4294901760
      %1671 = vmatmul.f32.gmra.mxu0 %v1670
      %v1672 = vpop.f32.mrf.mxu0
      %v1673 = vadd.f32 0.0, %v1672
      %v1674 = vand.u32 %v329, 4294901760
      %v1675 = vsub.f32 %v329, %v1674
      %v1676 = vand.u32 %v1675, 4294901760
      %v1677 = vsub.f32 %v1675, %v1676
      %v1678 = vand.u32 %v1677, 4294901760
      %1679 = vmatmul.f32.gmra.mxu0 %v1678
      %v1680 = vpop.f32.mrf.mxu0
      %v1681 = vadd.f32 0.0, %v1680
      %v1682 = vand.u32 %v332, 4294901760
      %v1683 = vsub.f32 %v332, %v1682
      %v1684 = vand.u32 %v1683, 4294901760
      %v1685 = vsub.f32 %v1683, %v1684
      %v1686 = vand.u32 %v1685, 4294901760
      %1687 = vmatmul.f32.gmra.mxu0 %v1686
      %v1688 = vpop.f32.mrf.mxu0
      %v1689 = vadd.f32 0.0, %v1688
      %v1690 = vand.u32 %v335, 4294901760
      %v1691 = vsub.f32 %v335, %v1690
      %v1692 = vand.u32 %v1691, 4294901760
      %v1693 = vsub.f32 %v1691, %v1692
      %v1694 = vand.u32 %v1693, 4294901760
      %1695 = vmatmul.f32.gmra.mxu0 %v1694
      %v1696 = vpop.f32.mrf.mxu0
      %v1697 = vadd.f32 0.0, %v1696
      %v1698 = vand.u32 %v338, 4294901760
      %v1699 = vsub.f32 %v338, %v1698
      %v1700 = vand.u32 %v1699, 4294901760
      %v1701 = vsub.f32 %v1699, %v1700
      %v1702 = vand.u32 %v1701, 4294901760
      %1703 = vmatmul.f32.gmra.mxu0 %v1702
      %v1704 = vpop.f32.mrf.mxu0
      %v1705 = vadd.f32 0.0, %v1704
      %v1706 = vand.u32 %v341, 4294901760
      %v1707 = vsub.f32 %v341, %v1706
      %v1708 = vand.u32 %v1707, 4294901760
      %v1709 = vsub.f32 %v1707, %v1708
      %v1710 = vand.u32 %v1709, 4294901760
      %1711 = vmatmul.f32.gmra.mxu0 %v1710
      %v1712 = vpop.f32.mrf.mxu0
      %v1713 = vadd.f32 0.0, %v1712
      %v1714 = vand.u32 %v344, 4294901760
      %v1715 = vsub.f32 %v344, %v1714
      %v1716 = vand.u32 %v1715, 4294901760
      %v1717 = vsub.f32 %v1715, %v1716
      %v1718 = vand.u32 %v1717, 4294901760
      %1719 = vmatmul.f32.gmra.mxu0 %v1718
      %v1720 = vpop.f32.mrf.mxu0
      %v1721 = vadd.f32 0.0, %v1720
      %v1722 = vand.u32 %v347, 4294901760
      %v1723 = vsub.f32 %v347, %v1722
      %v1724 = vand.u32 %v1723, 4294901760
      %v1725 = vsub.f32 %v1723, %v1724
      %v1726 = vand.u32 %v1725, 4294901760
      %1727 = vmatmul.f32.gmra.mxu0 %v1726
      %v1728 = vpop.f32.mrf.mxu0
      %v1729 = vadd.f32 0.0, %v1728
      %v1730 = vand.u32 %v350, 4294901760
      %v1731 = vsub.f32 %v350, %v1730
      %v1732 = vand.u32 %v1731, 4294901760
      %v1733 = vsub.f32 %v1731, %v1732
      %v1734 = vand.u32 %v1733, 4294901760
      %1735 = vmatmul.f32.gmra.mxu0 %v1734
      %v1736 = vpop.f32.mrf.mxu0
      %v1737 = vadd.f32 0.0, %v1736
      %v1738 = vand.u32 %v353, 4294901760
      %v1739 = vsub.f32 %v353, %v1738
      %v1740 = vand.u32 %v1739, 4294901760
      %v1741 = vsub.f32 %v1739, %v1740
      %v1742 = vand.u32 %v1741, 4294901760
      %1743 = vmatmul.f32.gmra.mxu0 %v1742
      %v1744 = vpop.f32.mrf.mxu0
      %v1745 = vadd.f32 0.0, %v1744
      %v1746 = vand.u32 %v356, 4294901760
      %v1747 = vsub.f32 %v356, %v1746
      %v1748 = vand.u32 %v1747, 4294901760
      %v1749 = vsub.f32 %v1747, %v1748
      %v1750 = vand.u32 %v1749, 4294901760
      %1751 = vmatmul.f32.gmra.mxu0 %v1750
      %v1752 = vpop.f32.mrf.mxu0
      %v1753 = vadd.f32 0.0, %v1752
      %v1754 = vand.u32 %v359, 4294901760
      %v1755 = vsub.f32 %v359, %v1754
      %v1756 = vand.u32 %v1755, 4294901760
      %v1757 = vsub.f32 %v1755, %v1756
      %v1758 = vand.u32 %v1757, 4294901760
      %1759 = vmatmul.f32.gmra.mxu0 %v1758
      %v1760 = vpop.f32.mrf.mxu0
      %v1761 = vadd.f32 0.0, %v1760
      %v1762 = vand.u32 %v362, 4294901760
      %v1763 = vsub.f32 %v362, %v1762
      %v1764 = vand.u32 %v1763, 4294901760
      %v1765 = vsub.f32 %v1763, %v1764
      %v1766 = vand.u32 %v1765, 4294901760
      %1767 = vmatmul.f32.gmra.mxu0 %v1766
      %v1768 = vpop.f32.mrf.mxu0
      %v1769 = vadd.f32 0.0, %v1768
      %v1770 = vand.u32 %v365, 4294901760
      %v1771 = vsub.f32 %v365, %v1770
      %v1772 = vand.u32 %v1771, 4294901760
      %v1773 = vsub.f32 %v1771, %v1772
      %v1774 = vand.u32 %v1773, 4294901760
      %1775 = vmatmul.f32.gmra.mxu0 %v1774
      %v1776 = vpop.f32.mrf.mxu0
      %v1777 = vadd.f32 0.0, %v1776
      %v1778 = vand.u32 %v368, 4294901760
      %v1779 = vsub.f32 %v368, %v1778
      %v1780 = vand.u32 %v1779, 4294901760
      %v1781 = vsub.f32 %v1779, %v1780
      %v1782 = vand.u32 %v1781, 4294901760
      %1783 = vmatmul.f32.gmra.mxu0 %v1782
      %v1784 = vpop.f32.mrf.mxu0
      %v1785 = vadd.f32 0.0, %v1784
      %v1786 = vand.u32 %v371, 4294901760
      %v1787 = vsub.f32 %v371, %v1786
      %v1788 = vand.u32 %v1787, 4294901760
      %v1789 = vsub.f32 %v1787, %v1788
      %v1790 = vand.u32 %v1789, 4294901760
      %1791 = vmatmul.f32.gmra.mxu0 %v1790
      %v1792 = vpop.f32.mrf.mxu0
      %v1793 = vadd.f32 0.0, %v1792
      %v1794 = vand.u32 %v374, 4294901760
      %v1795 = vsub.f32 %v374, %v1794
      %v1796 = vand.u32 %v1795, 4294901760
      %v1797 = vsub.f32 %v1795, %v1796
      %v1798 = vand.u32 %v1797, 4294901760
      %1799 = vmatmul.f32.gmra.mxu0 %v1798
      %v1800 = vpop.f32.mrf.mxu0
      %v1801 = vadd.f32 0.0, %v1800
      %v1802 = vand.u32 %v377, 4294901760
      %v1803 = vsub.f32 %v377, %v1802
      %v1804 = vand.u32 %v1803, 4294901760
      %v1805 = vsub.f32 %v1803, %v1804
      %v1806 = vand.u32 %v1805, 4294901760
      %1807 = vmatmul.f32.gmra.mxu0 %v1806
      %v1808 = vpop.f32.mrf.mxu0
      %v1809 = vadd.f32 0.0, %v1808
      %v1810 = vand.u32 %v380, 4294901760
      %v1811 = vsub.f32 %v380, %v1810
      %v1812 = vand.u32 %v1811, 4294901760
      %v1813 = vsub.f32 %v1811, %v1812
      %v1814 = vand.u32 %v1813, 4294901760
      %1815 = vmatmul.f32.gmra.mxu0 %v1814
      %v1816 = vpop.f32.mrf.mxu0
      %v1817 = vadd.f32 0.0, %v1816
      %v1818 = vand.u32 %v383, 4294901760
      %v1819 = vsub.f32 %v383, %v1818
      %v1820 = vand.u32 %v1819, 4294901760
      %v1821 = vsub.f32 %v1819, %v1820
      %v1822 = vand.u32 %v1821, 4294901760
      %1823 = vmatmul.f32.gmra.mxu0 %v1822
      %v1824 = vpop.f32.mrf.mxu0
      %v1825 = vadd.f32 0.0, %v1824
      %v1826 = vand.u32 %v386, 4294901760
      %v1827 = vsub.f32 %v386, %v1826
      %v1828 = vand.u32 %v1827, 4294901760
      %v1829 = vsub.f32 %v1827, %v1828
      %v1830 = vand.u32 %v1829, 4294901760
      %1831 = vmatmul.f32.gmra.mxu0 %v1830
      %v1832 = vpop.f32.mrf.mxu0
      %v1833 = vadd.f32 0.0, %v1832
      %v1834 = vand.u32 %v389, 4294901760
      %v1835 = vsub.f32 %v389, %v1834
      %v1836 = vand.u32 %v1835, 4294901760
      %v1837 = vsub.f32 %v1835, %v1836
      %v1838 = vand.u32 %v1837, 4294901760
      %1839 = vmatmul.f32.gmra.mxu0 %v1838
      %v1840 = vpop.f32.mrf.mxu0
      %v1841 = vadd.f32 0.0, %v1840
      %v1842 = vand.u32 %v392, 4294901760
      %v1843 = vsub.f32 %v392, %v1842
      %v1844 = vand.u32 %v1843, 4294901760
      %v1845 = vsub.f32 %v1843, %v1844
      %v1846 = vand.u32 %v1845, 4294901760
      %1847 = vmatmul.f32.gmra.mxu0 %v1846
      %v1848 = vpop.f32.mrf.mxu0
      %v1849 = vadd.f32 0.0, %v1848
      %v1850 = vand.u32 %v395, 4294901760
      %v1851 = vsub.f32 %v395, %v1850
      %v1852 = vand.u32 %v1851, 4294901760
      %v1853 = vsub.f32 %v1851, %v1852
      %v1854 = vand.u32 %v1853, 4294901760
      %1855 = vmatmul.f32.gmra.mxu0 %v1854
      %v1856 = vpop.f32.mrf.mxu0
      %v1857 = vadd.f32 0.0, %v1856
      %v1858 = vand.u32 %v398, 4294901760
      %v1859 = vsub.f32 %v398, %v1858
      %v1860 = vand.u32 %v1859, 4294901760
      %v1861 = vsub.f32 %v1859, %v1860
      %v1862 = vand.u32 %v1861, 4294901760
      %1863 = vmatmul.f32.gmra.mxu0 %v1862
      %v1864 = vpop.f32.mrf.mxu0
      %v1865 = vadd.f32 0.0, %v1864
      %v1866 = vand.u32 %v401, 4294901760
      %v1867 = vsub.f32 %v401, %v1866
      %v1868 = vand.u32 %v1867, 4294901760
      %v1869 = vsub.f32 %v1867, %v1868
      %v1870 = vand.u32 %v1869, 4294901760
      %1871 = vmatmul.f32.gmra.mxu0 %v1870
      %v1872 = vpop.f32.mrf.mxu0
      %v1873 = vadd.f32 0.0, %v1872
      %v1874 = vand.u32 %v404, 4294901760
      %v1875 = vsub.f32 %v404, %v1874
      %v1876 = vand.u32 %v1875, 4294901760
      %v1877 = vsub.f32 %v1875, %v1876
      %v1878 = vand.u32 %v1877, 4294901760
      %1879 = vmatmul.f32.gmra.mxu0 %v1878
      %v1880 = vpop.f32.mrf.mxu0
      %v1881 = vadd.f32 0.0, %v1880
      %v1882 = vand.u32 %v407, 4294901760
      %v1883 = vsub.f32 %v407, %v1882
      %v1884 = vand.u32 %v1883, 4294901760
      %v1885 = vsub.f32 %v1883, %v1884
      %v1886 = vand.u32 %v1885, 4294901760
      %1887 = vmatmul.f32.gmra.mxu0 %v1886
      %v1888 = vpop.f32.mrf.mxu0
      %v1889 = vadd.f32 0.0, %v1888
      %v1890 = vand.u32 %v410, 4294901760
      %v1891 = vsub.f32 %v410, %v1890
      %v1892 = vand.u32 %v1891, 4294901760
      %v1893 = vsub.f32 %v1891, %v1892
      %v1894 = vand.u32 %v1893, 4294901760
      %1895 = vmatmul.f32.gmra.mxu0 %v1894
      %v1896 = vpop.f32.mrf.mxu0
      %v1897 = vadd.f32 0.0, %v1896
      %v1898 = vand.u32 %v413, 4294901760
      %v1899 = vsub.f32 %v413, %v1898
      %v1900 = vand.u32 %v1899, 4294901760
      %v1901 = vsub.f32 %v1899, %v1900
      %v1902 = vand.u32 %v1901, 4294901760
      %1903 = vmatmul.f32.gmra.mxu0 %v1902
      %v1904 = vpop.f32.mrf.mxu0
      %v1905 = vadd.f32 0.0, %v1904
      %1906 = vdwg.mxu0
      %1907 = vmatpush.msra.mxu0 0.0
      %1908 = vmatpush.msra.mxu0 0.0
      %1909 = vmatpush.msra.mxu0 0.0
      %1910 = vmatpush.msra.mxu0 0.0
      %1911 = vmatpush.msra.mxu0 0.0
      %1912 = vmatpush.msra.mxu0 0.0
      %1913 = vmatpush.msra.mxu0 0.0
      %1914 = vmatpush.msra.mxu0 0.0
      %1915 = vmatpush.msra.mxu0 0.0
      %1916 = vmatpush.msra.mxu0 0.0
      %1917 = vmatpush.msra.mxu0 0.0
      %1918 = vmatpush.msra.mxu0 0.0
      %v1919 = vand.u32 %v1629, 4294901760
      %v1920 = vsub.f32 %v1629, %v1919
      %v1921 = vand.u32 %v1920, 4294901760
      %v1922 = vsub.f32 %v1920, %v1921
      %v1923 = vand.u32 %v1922, 4294901760
      %1924 = vmatpush.msra.mxu0 %v1923
      %v1925 = vand.u32 %v1628, 4294901760
      %v1926 = vsub.f32 %v1628, %v1925
      %v1927 = vand.u32 %v1926, 4294901760
      %v1928 = vsub.f32 %v1926, %v1927
      %v1929 = vand.u32 %v1928, 4294901760
      %1930 = vmatpush.msra.mxu0 %v1929
      %v1931 = vand.u32 %v1627, 4294901760
      %v1932 = vsub.f32 %v1627, %v1931
      %v1933 = vand.u32 %v1932, 4294901760
      %v1934 = vsub.f32 %v1932, %v1933
      %v1935 = vand.u32 %v1934, 4294901760
      %1936 = vmatpush.msra.mxu0 %v1935
      %v1937 = vand.u32 %v1626, 4294901760
      %v1938 = vsub.f32 %v1626, %v1937
      %v1939 = vand.u32 %v1938, 4294901760
      %v1940 = vsub.f32 %v1938, %v1939
      %v1941 = vand.u32 %v1940, 4294901760
      %1942 = vmatpush.msra.mxu0 %v1941
      %v1943 = vand.u32 %v320, 4294901760
      %1944 = vmatmul.f32.gmra.mxu0 %v1943
      %v1945 = vpop.f32.mrf.mxu0
      %v1946 = vadd.f32 %v1657, %v1945
      %v1947 = vand.u32 %v323, 4294901760
      %1948 = vmatmul.f32.gmra.mxu0 %v1947
      %v1949 = vpop.f32.mrf.mxu0
      %v1950 = vadd.f32 %v1665, %v1949
      %v1951 = vand.u32 %v326, 4294901760
      %1952 = vmatmul.f32.gmra.mxu0 %v1951
      %v1953 = vpop.f32.mrf.mxu0
      %v1954 = vadd.f32 %v1673, %v1953
      %v1955 = vand.u32 %v329, 4294901760
      %1956 = vmatmul.f32.gmra.mxu0 %v1955
      %v1957 = vpop.f32.mrf.mxu0
      %v1958 = vadd.f32 %v1681, %v1957
      %v1959 = vand.u32 %v332, 4294901760
      %1960 = vmatmul.f32.gmra.mxu0 %v1959
      %v1961 = vpop.f32.mrf.mxu0
      %v1962 = vadd.f32 %v1689, %v1961
      %v1963 = vand.u32 %v335, 4294901760
      %1964 = vmatmul.f32.gmra.mxu0 %v1963
      %v1965 = vpop.f32.mrf.mxu0
      %v1966 = vadd.f32 %v1697, %v1965
      %v1967 = vand.u32 %v338, 4294901760
      %1968 = vmatmul.f32.gmra.mxu0 %v1967
      %v1969 = vpop.f32.mrf.mxu0
      %v1970 = vadd.f32 %v1705, %v1969
      %v1971 = vand.u32 %v341, 4294901760
      %1972 = vmatmul.f32.gmra.mxu0 %v1971
      %v1973 = vpop.f32.mrf.mxu0
      %v1974 = vadd.f32 %v1713, %v1973
      %v1975 = vand.u32 %v344, 4294901760
      %1976 = vmatmul.f32.gmra.mxu0 %v1975
      %v1977 = vpop.f32.mrf.mxu0
      %v1978 = vadd.f32 %v1721, %v1977
      %v1979 = vand.u32 %v347, 4294901760
      %1980 = vmatmul.f32.gmra.mxu0 %v1979
      %v1981 = vpop.f32.mrf.mxu0
      %v1982 = vadd.f32 %v1729, %v1981
      %v1983 = vand.u32 %v350, 4294901760
      %1984 = vmatmul.f32.gmra.mxu0 %v1983
      %v1985 = vpop.f32.mrf.mxu0
      %v1986 = vadd.f32 %v1737, %v1985
      %v1987 = vand.u32 %v353, 4294901760
      %1988 = vmatmul.f32.gmra.mxu0 %v1987
      %v1989 = vpop.f32.mrf.mxu0
      %v1990 = vadd.f32 %v1745, %v1989
      %v1991 = vand.u32 %v356, 4294901760
      %1992 = vmatmul.f32.gmra.mxu0 %v1991
      %v1993 = vpop.f32.mrf.mxu0
      %v1994 = vadd.f32 %v1753, %v1993
      %v1995 = vand.u32 %v359, 4294901760
      %1996 = vmatmul.f32.gmra.mxu0 %v1995
      %v1997 = vpop.f32.mrf.mxu0
      %v1998 = vadd.f32 %v1761, %v1997
      %v1999 = vand.u32 %v362, 4294901760
      %2000 = vmatmul.f32.gmra.mxu0 %v1999
      %v2001 = vpop.f32.mrf.mxu0
      %v2002 = vadd.f32 %v1769, %v2001
      %v2003 = vand.u32 %v365, 4294901760
      %2004 = vmatmul.f32.gmra.mxu0 %v2003
      %v2005 = vpop.f32.mrf.mxu0
      %v2006 = vadd.f32 %v1777, %v2005
      %v2007 = vand.u32 %v368, 4294901760
      %2008 = vmatmul.f32.gmra.mxu0 %v2007
      %v2009 = vpop.f32.mrf.mxu0
      %v2010 = vadd.f32 %v1785, %v2009
      %v2011 = vand.u32 %v371, 4294901760
      %2012 = vmatmul.f32.gmra.mxu0 %v2011
      %v2013 = vpop.f32.mrf.mxu0
      %v2014 = vadd.f32 %v1793, %v2013
      %v2015 = vand.u32 %v374, 4294901760
      %2016 = vmatmul.f32.gmra.mxu0 %v2015
      %v2017 = vpop.f32.mrf.mxu0
      %v2018 = vadd.f32 %v1801, %v2017
      %v2019 = vand.u32 %v377, 4294901760
      %2020 = vmatmul.f32.gmra.mxu0 %v2019
      %v2021 = vpop.f32.mrf.mxu0
      %v2022 = vadd.f32 %v1809, %v2021
      %v2023 = vand.u32 %v380, 4294901760
      %2024 = vmatmul.f32.gmra.mxu0 %v2023
      %v2025 = vpop.f32.mrf.mxu0
      %v2026 = vadd.f32 %v1817, %v2025
      %v2027 = vand.u32 %v383, 4294901760
      %2028 = vmatmul.f32.gmra.mxu0 %v2027
      %v2029 = vpop.f32.mrf.mxu0
      %v2030 = vadd.f32 %v1825, %v2029
      %v2031 = vand.u32 %v386, 4294901760
      %2032 = vmatmul.f32.gmra.mxu0 %v2031
      %v2033 = vpop.f32.mrf.mxu0
      %v2034 = vadd.f32 %v1833, %v2033
      %v2035 = vand.u32 %v389, 4294901760
      %2036 = vmatmul.f32.gmra.mxu0 %v2035
      %v2037 = vpop.f32.mrf.mxu0
      %v2038 = vadd.f32 %v1841, %v2037
      %v2039 = vand.u32 %v392, 4294901760
      %2040 = vmatmul.f32.gmra.mxu0 %v2039
      %v2041 = vpop.f32.mrf.mxu0
      %v2042 = vadd.f32 %v1849, %v2041
      %v2043 = vand.u32 %v395, 4294901760
      %2044 = vmatmul.f32.gmra.mxu0 %v2043
      %v2045 = vpop.f32.mrf.mxu0
      %v2046 = vadd.f32 %v1857, %v2045
      %v2047 = vand.u32 %v398, 4294901760
      %2048 = vmatmul.f32.gmra.mxu0 %v2047
      %v2049 = vpop.f32.mrf.mxu0
      %v2050 = vadd.f32 %v1865, %v2049
      %v2051 = vand.u32 %v401, 4294901760
      %2052 = vmatmul.f32.gmra.mxu0 %v2051
      %v2053 = vpop.f32.mrf.mxu0
      %v2054 = vadd.f32 %v1873, %v2053
      %v2055 = vand.u32 %v404, 4294901760
      %2056 = vmatmul.f32.gmra.mxu0 %v2055
      %v2057 = vpop.f32.mrf.mxu0
      %v2058 = vadd.f32 %v1881, %v2057
      %v2059 = vand.u32 %v407, 4294901760
      %2060 = vmatmul.f32.gmra.mxu0 %v2059
      %v2061 = vpop.f32.mrf.mxu0
      %v2062 = vadd.f32 %v1889, %v2061
      %v2063 = vand.u32 %v410, 4294901760
      %2064 = vmatmul.f32.gmra.mxu0 %v2063
      %v2065 = vpop.f32.mrf.mxu0
      %v2066 = vadd.f32 %v1897, %v2065
      %v2067 = vand.u32 %v413, 4294901760
      %2068 = vmatmul.f32.gmra.mxu0 %v2067
      %v2069 = vpop.f32.mrf.mxu0
      %v2070 = vadd.f32 %v1905, %v2069
      %2071 = vdwg.mxu0
      %2072 = vmatpush.msra.mxu0 0.0
      %2073 = vmatpush.msra.mxu0 0.0
      %2074 = vmatpush.msra.mxu0 0.0
      %2075 = vmatpush.msra.mxu0 0.0
      %2076 = vmatpush.msra.mxu0 0.0
      %2077 = vmatpush.msra.mxu0 0.0
      %2078 = vmatpush.msra.mxu0 0.0
      %2079 = vmatpush.msra.mxu0 0.0
      %2080 = vmatpush.msra.mxu0 0.0
      %2081 = vmatpush.msra.mxu0 0.0
      %2082 = vmatpush.msra.mxu0 0.0
      %2083 = vmatpush.msra.mxu0 0.0
      %v2084 = vand.u32 %v1629, 4294901760
      %v2085 = vsub.f32 %v1629, %v2084
      %2086 = vmatpush.msra.mxu0 %v2085
      %v2087 = vand.u32 %v1628, 4294901760
      %v2088 = vsub.f32 %v1628, %v2087
      %2089 = vmatpush.msra.mxu0 %v2088
      %v2090 = vand.u32 %v1627, 4294901760
      %v2091 = vsub.f32 %v1627, %v2090
      %2092 = vmatpush.msra.mxu0 %v2091
      %v2093 = vand.u32 %v1626, 4294901760
      %v2094 = vsub.f32 %v1626, %v2093
      %2095 = vmatpush.msra.mxu0 %v2094
      %v2096 = vand.u32 %v320, 4294901760
      %v2097 = vsub.f32 %v320, %v2096
      %2098 = vmatmul.f32.gmra.mxu0 %v2097
      %v2099 = vpop.f32.mrf.mxu0
      %v2100 = vadd.f32 %v1946, %v2099
      %v2101 = vand.u32 %v323, 4294901760
      %v2102 = vsub.f32 %v323, %v2101
      %2103 = vmatmul.f32.gmra.mxu0 %v2102
      %v2104 = vpop.f32.mrf.mxu0
      %v2105 = vadd.f32 %v1950, %v2104
      %v2106 = vand.u32 %v326, 4294901760
      %v2107 = vsub.f32 %v326, %v2106
      %2108 = vmatmul.f32.gmra.mxu0 %v2107
      %v2109 = vpop.f32.mrf.mxu0
      %v2110 = vadd.f32 %v1954, %v2109
      %v2111 = vand.u32 %v329, 4294901760
      %v2112 = vsub.f32 %v329, %v2111
      %2113 = vmatmul.f32.gmra.mxu0 %v2112
      %v2114 = vpop.f32.mrf.mxu0
      %v2115 = vadd.f32 %v1958, %v2114
      %v2116 = vand.u32 %v332, 4294901760
      %v2117 = vsub.f32 %v332, %v2116
      %2118 = vmatmul.f32.gmra.mxu0 %v2117
      %v2119 = vpop.f32.mrf.mxu0
      %v2120 = vadd.f32 %v1962, %v2119
      %v2121 = vand.u32 %v335, 4294901760
      %v2122 = vsub.f32 %v335, %v2121
      %2123 = vmatmul.f32.gmra.mxu0 %v2122
      %v2124 = vpop.f32.mrf.mxu0
      %v2125 = vadd.f32 %v1966, %v2124
      %v2126 = vand.u32 %v338, 4294901760
      %v2127 = vsub.f32 %v338, %v2126
      %2128 = vmatmul.f32.gmra.mxu0 %v2127
      %v2129 = vpop.f32.mrf.mxu0
      %v2130 = vadd.f32 %v1970, %v2129
      %v2131 = vand.u32 %v341, 4294901760
      %v2132 = vsub.f32 %v341, %v2131
      %2133 = vmatmul.f32.gmra.mxu0 %v2132
      %v2134 = vpop.f32.mrf.mxu0
      %v2135 = vadd.f32 %v1974, %v2134
      %v2136 = vand.u32 %v344, 4294901760
      %v2137 = vsub.f32 %v344, %v2136
      %2138 = vmatmul.f32.gmra.mxu0 %v2137
      %v2139 = vpop.f32.mrf.mxu0
      %v2140 = vadd.f32 %v1978, %v2139
      %v2141 = vand.u32 %v347, 4294901760
      %v2142 = vsub.f32 %v347, %v2141
      %2143 = vmatmul.f32.gmra.mxu0 %v2142
      %v2144 = vpop.f32.mrf.mxu0
      %v2145 = vadd.f32 %v1982, %v2144
      %v2146 = vand.u32 %v350, 4294901760
      %v2147 = vsub.f32 %v350, %v2146
      %2148 = vmatmul.f32.gmra.mxu0 %v2147
      %v2149 = vpop.f32.mrf.mxu0
      %v2150 = vadd.f32 %v1986, %v2149
      %v2151 = vand.u32 %v353, 4294901760
      %v2152 = vsub.f32 %v353, %v2151
      %2153 = vmatmul.f32.gmra.mxu0 %v2152
      %v2154 = vpop.f32.mrf.mxu0
      %v2155 = vadd.f32 %v1990, %v2154
      %v2156 = vand.u32 %v356, 4294901760
      %v2157 = vsub.f32 %v356, %v2156
      %2158 = vmatmul.f32.gmra.mxu0 %v2157
      %v2159 = vpop.f32.mrf.mxu0
      %v2160 = vadd.f32 %v1994, %v2159
      %v2161 = vand.u32 %v359, 4294901760
      %v2162 = vsub.f32 %v359, %v2161
      %2163 = vmatmul.f32.gmra.mxu0 %v2162
      %v2164 = vpop.f32.mrf.mxu0
      %v2165 = vadd.f32 %v1998, %v2164
      %v2166 = vand.u32 %v362, 4294901760
      %v2167 = vsub.f32 %v362, %v2166
      %2168 = vmatmul.f32.gmra.mxu0 %v2167
      %v2169 = vpop.f32.mrf.mxu0
      %v2170 = vadd.f32 %v2002, %v2169
      %v2171 = vand.u32 %v365, 4294901760
      %v2172 = vsub.f32 %v365, %v2171
      %2173 = vmatmul.f32.gmra.mxu0 %v2172
      %v2174 = vpop.f32.mrf.mxu0
      %v2175 = vadd.f32 %v2006, %v2174
      %v2176 = vand.u32 %v368, 4294901760
      %v2177 = vsub.f32 %v368, %v2176
      %2178 = vmatmul.f32.gmra.mxu0 %v2177
      %v2179 = vpop.f32.mrf.mxu0
      %v2180 = vadd.f32 %v2010, %v2179
      %v2181 = vand.u32 %v371, 4294901760
      %v2182 = vsub.f32 %v371, %v2181
      %2183 = vmatmul.f32.gmra.mxu0 %v2182
      %v2184 = vpop.f32.mrf.mxu0
      %v2185 = vadd.f32 %v2014, %v2184
      %v2186 = vand.u32 %v374, 4294901760
      %v2187 = vsub.f32 %v374, %v2186
      %2188 = vmatmul.f32.gmra.mxu0 %v2187
      %v2189 = vpop.f32.mrf.mxu0
      %v2190 = vadd.f32 %v2018, %v2189
      %v2191 = vand.u32 %v377, 4294901760
      %v2192 = vsub.f32 %v377, %v2191
      %2193 = vmatmul.f32.gmra.mxu0 %v2192
      %v2194 = vpop.f32.mrf.mxu0
      %v2195 = vadd.f32 %v2022, %v2194
      %v2196 = vand.u32 %v380, 4294901760
      %v2197 = vsub.f32 %v380, %v2196
      %2198 = vmatmul.f32.gmra.mxu0 %v2197
      %v2199 = vpop.f32.mrf.mxu0
      %v2200 = vadd.f32 %v2026, %v2199
      %v2201 = vand.u32 %v383, 4294901760
      %v2202 = vsub.f32 %v383, %v2201
      %2203 = vmatmul.f32.gmra.mxu0 %v2202
      %v2204 = vpop.f32.mrf.mxu0
      %v2205 = vadd.f32 %v2030, %v2204
      %v2206 = vand.u32 %v386, 4294901760
      %v2207 = vsub.f32 %v386, %v2206
      %2208 = vmatmul.f32.gmra.mxu0 %v2207
      %v2209 = vpop.f32.mrf.mxu0
      %v2210 = vadd.f32 %v2034, %v2209
      %v2211 = vand.u32 %v389, 4294901760
      %v2212 = vsub.f32 %v389, %v2211
      %2213 = vmatmul.f32.gmra.mxu0 %v2212
      %v2214 = vpop.f32.mrf.mxu0
      %v2215 = vadd.f32 %v2038, %v2214
      %v2216 = vand.u32 %v392, 4294901760
      %v2217 = vsub.f32 %v392, %v2216
      %2218 = vmatmul.f32.gmra.mxu0 %v2217
      %v2219 = vpop.f32.mrf.mxu0
      %v2220 = vadd.f32 %v2042, %v2219
      %v2221 = vand.u32 %v395, 4294901760
      %v2222 = vsub.f32 %v395, %v2221
      %2223 = vmatmul.f32.gmra.mxu0 %v2222
      %v2224 = vpop.f32.mrf.mxu0
      %v2225 = vadd.f32 %v2046, %v2224
      %v2226 = vand.u32 %v398, 4294901760
      %v2227 = vsub.f32 %v398, %v2226
      %2228 = vmatmul.f32.gmra.mxu0 %v2227
      %v2229 = vpop.f32.mrf.mxu0
      %v2230 = vadd.f32 %v2050, %v2229
      %v2231 = vand.u32 %v401, 4294901760
      %v2232 = vsub.f32 %v401, %v2231
      %2233 = vmatmul.f32.gmra.mxu0 %v2232
      %v2234 = vpop.f32.mrf.mxu0
      %v2235 = vadd.f32 %v2054, %v2234
      %v2236 = vand.u32 %v404, 4294901760
      %v2237 = vsub.f32 %v404, %v2236
      %2238 = vmatmul.f32.gmra.mxu0 %v2237
      %v2239 = vpop.f32.mrf.mxu0
      %v2240 = vadd.f32 %v2058, %v2239
      %v2241 = vand.u32 %v407, 4294901760
      %v2242 = vsub.f32 %v407, %v2241
      %2243 = vmatmul.f32.gmra.mxu0 %v2242
      %v2244 = vpop.f32.mrf.mxu0
      %v2245 = vadd.f32 %v2062, %v2244
      %v2246 = vand.u32 %v410, 4294901760
      %v2247 = vsub.f32 %v410, %v2246
      %2248 = vmatmul.f32.gmra.mxu0 %v2247
      %v2249 = vpop.f32.mrf.mxu0
      %v2250 = vadd.f32 %v2066, %v2249
      %v2251 = vand.u32 %v413, 4294901760
      %v2252 = vsub.f32 %v413, %v2251
      %2253 = vmatmul.f32.gmra.mxu0 %v2252
      %v2254 = vpop.f32.mrf.mxu0
      %v2255 = vadd.f32 %v2070, %v2254
      %2256 = vdwg.mxu0
      %2257 = vmatpush.msra.mxu0 0.0
      %2258 = vmatpush.msra.mxu0 0.0
      %2259 = vmatpush.msra.mxu0 0.0
      %2260 = vmatpush.msra.mxu0 0.0
      %2261 = vmatpush.msra.mxu0 0.0
      %2262 = vmatpush.msra.mxu0 0.0
      %2263 = vmatpush.msra.mxu0 0.0
      %2264 = vmatpush.msra.mxu0 0.0
      %2265 = vmatpush.msra.mxu0 0.0
      %2266 = vmatpush.msra.mxu0 0.0
      %2267 = vmatpush.msra.mxu0 0.0
      %2268 = vmatpush.msra.mxu0 0.0
      %v2269 = vand.u32 %v1629, 4294901760
      %2270 = vmatpush.msra.mxu0 %v2269
      %v2271 = vand.u32 %v1628, 4294901760
      %2272 = vmatpush.msra.mxu0 %v2271
      %v2273 = vand.u32 %v1627, 4294901760
      %2274 = vmatpush.msra.mxu0 %v2273
      %v2275 = vand.u32 %v1626, 4294901760
      %2276 = vmatpush.msra.mxu0 %v2275
      %v2277 = vand.u32 %v320, 4294901760
      %v2278 = vsub.f32 %v320, %v2277
      %v2279 = vand.u32 %v2278, 4294901760
      %2280 = vmatmul.f32.gmra.mxu0 %v2279
      %v2281 = vpop.f32.mrf.mxu0
      %v2282 = vadd.f32 %v2100, %v2281
      %v2283 = vand.u32 %v323, 4294901760
      %v2284 = vsub.f32 %v323, %v2283
      %v2285 = vand.u32 %v2284, 4294901760
      %2286 = vmatmul.f32.gmra.mxu0 %v2285
      %v2287 = vpop.f32.mrf.mxu0
      %v2288 = vadd.f32 %v2105, %v2287
      %v2289 = vand.u32 %v326, 4294901760
      %v2290 = vsub.f32 %v326, %v2289
      %v2291 = vand.u32 %v2290, 4294901760
      %2292 = vmatmul.f32.gmra.mxu0 %v2291
      %v2293 = vpop.f32.mrf.mxu0
      %v2294 = vadd.f32 %v2110, %v2293
      %v2295 = vand.u32 %v329, 4294901760
      %v2296 = vsub.f32 %v329, %v2295
      %v2297 = vand.u32 %v2296, 4294901760
      %2298 = vmatmul.f32.gmra.mxu0 %v2297
      %v2299 = vpop.f32.mrf.mxu0
      %v2300 = vadd.f32 %v2115, %v2299
      %v2301 = vand.u32 %v332, 4294901760
      %v2302 = vsub.f32 %v332, %v2301
      %v2303 = vand.u32 %v2302, 4294901760
      %2304 = vmatmul.f32.gmra.mxu0 %v2303
      %v2305 = vpop.f32.mrf.mxu0
      %v2306 = vadd.f32 %v2120, %v2305
      %v2307 = vand.u32 %v335, 4294901760
      %v2308 = vsub.f32 %v335, %v2307
      %v2309 = vand.u32 %v2308, 4294901760
      %2310 = vmatmul.f32.gmra.mxu0 %v2309
      %v2311 = vpop.f32.mrf.mxu0
      %v2312 = vadd.f32 %v2125, %v2311
      %v2313 = vand.u32 %v338, 4294901760
      %v2314 = vsub.f32 %v338, %v2313
      %v2315 = vand.u32 %v2314, 4294901760
      %2316 = vmatmul.f32.gmra.mxu0 %v2315
      %v2317 = vpop.f32.mrf.mxu0
      %v2318 = vadd.f32 %v2130, %v2317
      %v2319 = vand.u32 %v341, 4294901760
      %v2320 = vsub.f32 %v341, %v2319
      %v2321 = vand.u32 %v2320, 4294901760
      %2322 = vmatmul.f32.gmra.mxu0 %v2321
      %v2323 = vpop.f32.mrf.mxu0
      %v2324 = vadd.f32 %v2135, %v2323
      %v2325 = vand.u32 %v344, 4294901760
      %v2326 = vsub.f32 %v344, %v2325
      %v2327 = vand.u32 %v2326, 4294901760
      %2328 = vmatmul.f32.gmra.mxu0 %v2327
      %v2329 = vpop.f32.mrf.mxu0
      %v2330 = vadd.f32 %v2140, %v2329
      %v2331 = vand.u32 %v347, 4294901760
      %v2332 = vsub.f32 %v347, %v2331
      %v2333 = vand.u32 %v2332, 4294901760
      %2334 = vmatmul.f32.gmra.mxu0 %v2333
      %v2335 = vpop.f32.mrf.mxu0
      %v2336 = vadd.f32 %v2145, %v2335
      %v2337 = vand.u32 %v350, 4294901760
      %v2338 = vsub.f32 %v350, %v2337
      %v2339 = vand.u32 %v2338, 4294901760
      %2340 = vmatmul.f32.gmra.mxu0 %v2339
      %v2341 = vpop.f32.mrf.mxu0
      %v2342 = vadd.f32 %v2150, %v2341
      %v2343 = vand.u32 %v353, 4294901760
      %v2344 = vsub.f32 %v353, %v2343
      %v2345 = vand.u32 %v2344, 4294901760
      %2346 = vmatmul.f32.gmra.mxu0 %v2345
      %v2347 = vpop.f32.mrf.mxu0
      %v2348 = vadd.f32 %v2155, %v2347
      %v2349 = vand.u32 %v356, 4294901760
      %v2350 = vsub.f32 %v356, %v2349
      %v2351 = vand.u32 %v2350, 4294901760
      %2352 = vmatmul.f32.gmra.mxu0 %v2351
      %v2353 = vpop.f32.mrf.mxu0
      %v2354 = vadd.f32 %v2160, %v2353
      %v2355 = vand.u32 %v359, 4294901760
      %v2356 = vsub.f32 %v359, %v2355
      %v2357 = vand.u32 %v2356, 4294901760
      %2358 = vmatmul.f32.gmra.mxu0 %v2357
      %v2359 = vpop.f32.mrf.mxu0
      %v2360 = vadd.f32 %v2165, %v2359
      %v2361 = vand.u32 %v362, 4294901760
      %v2362 = vsub.f32 %v362, %v2361
      %v2363 = vand.u32 %v2362, 4294901760
      %2364 = vmatmul.f32.gmra.mxu0 %v2363
      %v2365 = vpop.f32.mrf.mxu0
      %v2366 = vadd.f32 %v2170, %v2365
      %v2367 = vand.u32 %v365, 4294901760
      %v2368 = vsub.f32 %v365, %v2367
      %v2369 = vand.u32 %v2368, 4294901760
      %2370 = vmatmul.f32.gmra.mxu0 %v2369
      %v2371 = vpop.f32.mrf.mxu0
      %v2372 = vadd.f32 %v2175, %v2371
      %v2373 = vand.u32 %v368, 4294901760
      %v2374 = vsub.f32 %v368, %v2373
      %v2375 = vand.u32 %v2374, 4294901760
      %2376 = vmatmul.f32.gmra.mxu0 %v2375
      %v2377 = vpop.f32.mrf.mxu0
      %v2378 = vadd.f32 %v2180, %v2377
      %v2379 = vand.u32 %v371, 4294901760
      %v2380 = vsub.f32 %v371, %v2379
      %v2381 = vand.u32 %v2380, 4294901760
      %2382 = vmatmul.f32.gmra.mxu0 %v2381
      %v2383 = vpop.f32.mrf.mxu0
      %v2384 = vadd.f32 %v2185, %v2383
      %v2385 = vand.u32 %v374, 4294901760
      %v2386 = vsub.f32 %v374, %v2385
      %v2387 = vand.u32 %v2386, 4294901760
      %2388 = vmatmul.f32.gmra.mxu0 %v2387
      %v2389 = vpop.f32.mrf.mxu0
      %v2390 = vadd.f32 %v2190, %v2389
      %v2391 = vand.u32 %v377, 4294901760
      %v2392 = vsub.f32 %v377, %v2391
      %v2393 = vand.u32 %v2392, 4294901760
      %2394 = vmatmul.f32.gmra.mxu0 %v2393
      %v2395 = vpop.f32.mrf.mxu0
      %v2396 = vadd.f32 %v2195, %v2395
      %v2397 = vand.u32 %v380, 4294901760
      %v2398 = vsub.f32 %v380, %v2397
      %v2399 = vand.u32 %v2398, 4294901760
      %2400 = vmatmul.f32.gmra.mxu0 %v2399
      %v2401 = vpop.f32.mrf.mxu0
      %v2402 = vadd.f32 %v2200, %v2401
      %v2403 = vand.u32 %v383, 4294901760
      %v2404 = vsub.f32 %v383, %v2403
      %v2405 = vand.u32 %v2404, 4294901760
      %2406 = vmatmul.f32.gmra.mxu0 %v2405
      %v2407 = vpop.f32.mrf.mxu0
      %v2408 = vadd.f32 %v2205, %v2407
      %v2409 = vand.u32 %v386, 4294901760
      %v2410 = vsub.f32 %v386, %v2409
      %v2411 = vand.u32 %v2410, 4294901760
      %2412 = vmatmul.f32.gmra.mxu0 %v2411
      %v2413 = vpop.f32.mrf.mxu0
      %v2414 = vadd.f32 %v2210, %v2413
      %v2415 = vand.u32 %v389, 4294901760
      %v2416 = vsub.f32 %v389, %v2415
      %v2417 = vand.u32 %v2416, 4294901760
      %2418 = vmatmul.f32.gmra.mxu0 %v2417
      %v2419 = vpop.f32.mrf.mxu0
      %v2420 = vadd.f32 %v2215, %v2419
      %v2421 = vand.u32 %v392, 4294901760
      %v2422 = vsub.f32 %v392, %v2421
      %v2423 = vand.u32 %v2422, 4294901760
      %2424 = vmatmul.f32.gmra.mxu0 %v2423
      %v2425 = vpop.f32.mrf.mxu0
      %v2426 = vadd.f32 %v2220, %v2425
      %v2427 = vand.u32 %v395, 4294901760
      %v2428 = vsub.f32 %v395, %v2427
      %v2429 = vand.u32 %v2428, 4294901760
      %2430 = vmatmul.f32.gmra.mxu0 %v2429
      %v2431 = vpop.f32.mrf.mxu0
      %v2432 = vadd.f32 %v2225, %v2431
      %v2433 = vand.u32 %v398, 4294901760
      %v2434 = vsub.f32 %v398, %v2433
      %v2435 = vand.u32 %v2434, 4294901760
      %2436 = vmatmul.f32.gmra.mxu0 %v2435
      %v2437 = vpop.f32.mrf.mxu0
      %v2438 = vadd.f32 %v2230, %v2437
      %v2439 = vand.u32 %v401, 4294901760
      %v2440 = vsub.f32 %v401, %v2439
      %v2441 = vand.u32 %v2440, 4294901760
      %2442 = vmatmul.f32.gmra.mxu0 %v2441
      %v2443 = vpop.f32.mrf.mxu0
      %v2444 = vadd.f32 %v2235, %v2443
      %v2445 = vand.u32 %v404, 4294901760
      %v2446 = vsub.f32 %v404, %v2445
      %v2447 = vand.u32 %v2446, 4294901760
      %2448 = vmatmul.f32.gmra.mxu0 %v2447
      %v2449 = vpop.f32.mrf.mxu0
      %v2450 = vadd.f32 %v2240, %v2449
      %v2451 = vand.u32 %v407, 4294901760
      %v2452 = vsub.f32 %v407, %v2451
      %v2453 = vand.u32 %v2452, 4294901760
      %2454 = vmatmul.f32.gmra.mxu0 %v2453
      %v2455 = vpop.f32.mrf.mxu0
      %v2456 = vadd.f32 %v2245, %v2455
      %v2457 = vand.u32 %v410, 4294901760
      %v2458 = vsub.f32 %v410, %v2457
      %v2459 = vand.u32 %v2458, 4294901760
      %2460 = vmatmul.f32.gmra.mxu0 %v2459
      %v2461 = vpop.f32.mrf.mxu0
      %v2462 = vadd.f32 %v2250, %v2461
      %v2463 = vand.u32 %v413, 4294901760
      %v2464 = vsub.f32 %v413, %v2463
      %v2465 = vand.u32 %v2464, 4294901760
      %2466 = vmatmul.f32.gmra.mxu0 %v2465
      %v2467 = vpop.f32.mrf.mxu0
      %v2468 = vadd.f32 %v2255, %v2467
      %2469 = vdwg.mxu0
      %2470 = vmatpush.msra.mxu0 0.0
      %2471 = vmatpush.msra.mxu0 0.0
      %2472 = vmatpush.msra.mxu0 0.0
      %2473 = vmatpush.msra.mxu0 0.0
      %2474 = vmatpush.msra.mxu0 0.0
      %2475 = vmatpush.msra.mxu0 0.0
      %2476 = vmatpush.msra.mxu0 0.0
      %2477 = vmatpush.msra.mxu0 0.0
      %2478 = vmatpush.msra.mxu0 0.0
      %2479 = vmatpush.msra.mxu0 0.0
      %2480 = vmatpush.msra.mxu0 0.0
      %2481 = vmatpush.msra.mxu0 0.0
      %v2482 = vand.u32 %v1629, 4294901760
      %v2483 = vsub.f32 %v1629, %v2482
      %v2484 = vand.u32 %v2483, 4294901760
      %2485 = vmatpush.msra.mxu0 %v2484
      %v2486 = vand.u32 %v1628, 4294901760
      %v2487 = vsub.f32 %v1628, %v2486
      %v2488 = vand.u32 %v2487, 4294901760
      %2489 = vmatpush.msra.mxu0 %v2488
      %v2490 = vand.u32 %v1627, 4294901760
      %v2491 = vsub.f32 %v1627, %v2490
      %v2492 = vand.u32 %v2491, 4294901760
      %2493 = vmatpush.msra.mxu0 %v2492
      %v2494 = vand.u32 %v1626, 4294901760
      %v2495 = vsub.f32 %v1626, %v2494
      %v2496 = vand.u32 %v2495, 4294901760
      %2497 = vmatpush.msra.mxu0 %v2496
      %v2498 = vand.u32 %v320, 4294901760
      %2499 = vmatmul.f32.gmra.mxu0 %v2498
      %v2500 = vpop.f32.mrf.mxu0
      %v2501 = vadd.f32 %v2282, %v2500
      %v2502 = vand.u32 %v323, 4294901760
      %2503 = vmatmul.f32.gmra.mxu0 %v2502
      %v2504 = vpop.f32.mrf.mxu0
      %v2505 = vadd.f32 %v2288, %v2504
      %v2506 = vand.u32 %v326, 4294901760
      %2507 = vmatmul.f32.gmra.mxu0 %v2506
      %v2508 = vpop.f32.mrf.mxu0
      %v2509 = vadd.f32 %v2294, %v2508
      %v2510 = vand.u32 %v329, 4294901760
      %2511 = vmatmul.f32.gmra.mxu0 %v2510
      %v2512 = vpop.f32.mrf.mxu0
      %v2513 = vadd.f32 %v2300, %v2512
      %v2514 = vand.u32 %v332, 4294901760
      %2515 = vmatmul.f32.gmra.mxu0 %v2514
      %v2516 = vpop.f32.mrf.mxu0
      %v2517 = vadd.f32 %v2306, %v2516
      %v2518 = vand.u32 %v335, 4294901760
      %2519 = vmatmul.f32.gmra.mxu0 %v2518
      %v2520 = vpop.f32.mrf.mxu0
      %v2521 = vadd.f32 %v2312, %v2520
      %v2522 = vand.u32 %v338, 4294901760
      %2523 = vmatmul.f32.gmra.mxu0 %v2522
      %v2524 = vpop.f32.mrf.mxu0
      %v2525 = vadd.f32 %v2318, %v2524
      %v2526 = vand.u32 %v341, 4294901760
      %2527 = vmatmul.f32.gmra.mxu0 %v2526
      %v2528 = vpop.f32.mrf.mxu0
      %v2529 = vadd.f32 %v2324, %v2528
      %v2530 = vand.u32 %v344, 4294901760
      %2531 = vmatmul.f32.gmra.mxu0 %v2530
      %v2532 = vpop.f32.mrf.mxu0
      %v2533 = vadd.f32 %v2330, %v2532
      %v2534 = vand.u32 %v347, 4294901760
      %2535 = vmatmul.f32.gmra.mxu0 %v2534
      %v2536 = vpop.f32.mrf.mxu0
      %v2537 = vadd.f32 %v2336, %v2536
      %v2538 = vand.u32 %v350, 4294901760
      %2539 = vmatmul.f32.gmra.mxu0 %v2538
      %v2540 = vpop.f32.mrf.mxu0
      %v2541 = vadd.f32 %v2342, %v2540
      %v2542 = vand.u32 %v353, 4294901760
      %2543 = vmatmul.f32.gmra.mxu0 %v2542
      %v2544 = vpop.f32.mrf.mxu0
      %v2545 = vadd.f32 %v2348, %v2544
      %v2546 = vand.u32 %v356, 4294901760
      %2547 = vmatmul.f32.gmra.mxu0 %v2546
      %v2548 = vpop.f32.mrf.mxu0
      %v2549 = vadd.f32 %v2354, %v2548
      %v2550 = vand.u32 %v359, 4294901760
      %2551 = vmatmul.f32.gmra.mxu0 %v2550
      %v2552 = vpop.f32.mrf.mxu0
      %v2553 = vadd.f32 %v2360, %v2552
      %v2554 = vand.u32 %v362, 4294901760
      %2555 = vmatmul.f32.gmra.mxu0 %v2554
      %v2556 = vpop.f32.mrf.mxu0
      %v2557 = vadd.f32 %v2366, %v2556
      %v2558 = vand.u32 %v365, 4294901760
      %2559 = vmatmul.f32.gmra.mxu0 %v2558
      %v2560 = vpop.f32.mrf.mxu0
      %v2561 = vadd.f32 %v2372, %v2560
      %v2562 = vand.u32 %v368, 4294901760
      %2563 = vmatmul.f32.gmra.mxu0 %v2562
      %v2564 = vpop.f32.mrf.mxu0
      %v2565 = vadd.f32 %v2378, %v2564
      %v2566 = vand.u32 %v371, 4294901760
      %2567 = vmatmul.f32.gmra.mxu0 %v2566
      %v2568 = vpop.f32.mrf.mxu0
      %v2569 = vadd.f32 %v2384, %v2568
      %v2570 = vand.u32 %v374, 4294901760
      %2571 = vmatmul.f32.gmra.mxu0 %v2570
      %v2572 = vpop.f32.mrf.mxu0
      %v2573 = vadd.f32 %v2390, %v2572
      %v2574 = vand.u32 %v377, 4294901760
      %2575 = vmatmul.f32.gmra.mxu0 %v2574
      %v2576 = vpop.f32.mrf.mxu0
      %v2577 = vadd.f32 %v2396, %v2576
      %v2578 = vand.u32 %v380, 4294901760
      %2579 = vmatmul.f32.gmra.mxu0 %v2578
      %v2580 = vpop.f32.mrf.mxu0
      %v2581 = vadd.f32 %v2402, %v2580
      %v2582 = vand.u32 %v383, 4294901760
      %2583 = vmatmul.f32.gmra.mxu0 %v2582
      %v2584 = vpop.f32.mrf.mxu0
      %v2585 = vadd.f32 %v2408, %v2584
      %v2586 = vand.u32 %v386, 4294901760
      %2587 = vmatmul.f32.gmra.mxu0 %v2586
      %v2588 = vpop.f32.mrf.mxu0
      %v2589 = vadd.f32 %v2414, %v2588
      %v2590 = vand.u32 %v389, 4294901760
      %2591 = vmatmul.f32.gmra.mxu0 %v2590
      %v2592 = vpop.f32.mrf.mxu0
      %v2593 = vadd.f32 %v2420, %v2592
      %v2594 = vand.u32 %v392, 4294901760
      %2595 = vmatmul.f32.gmra.mxu0 %v2594
      %v2596 = vpop.f32.mrf.mxu0
      %v2597 = vadd.f32 %v2426, %v2596
      %v2598 = vand.u32 %v395, 4294901760
      %2599 = vmatmul.f32.gmra.mxu0 %v2598
      %v2600 = vpop.f32.mrf.mxu0
      %v2601 = vadd.f32 %v2432, %v2600
      %v2602 = vand.u32 %v398, 4294901760
      %2603 = vmatmul.f32.gmra.mxu0 %v2602
      %v2604 = vpop.f32.mrf.mxu0
      %v2605 = vadd.f32 %v2438, %v2604
      %v2606 = vand.u32 %v401, 4294901760
      %2607 = vmatmul.f32.gmra.mxu0 %v2606
      %v2608 = vpop.f32.mrf.mxu0
      %v2609 = vadd.f32 %v2444, %v2608
      %v2610 = vand.u32 %v404, 4294901760
      %2611 = vmatmul.f32.gmra.mxu0 %v2610
      %v2612 = vpop.f32.mrf.mxu0
      %v2613 = vadd.f32 %v2450, %v2612
      %v2614 = vand.u32 %v407, 4294901760
      %2615 = vmatmul.f32.gmra.mxu0 %v2614
      %v2616 = vpop.f32.mrf.mxu0
      %v2617 = vadd.f32 %v2456, %v2616
      %v2618 = vand.u32 %v410, 4294901760
      %2619 = vmatmul.f32.gmra.mxu0 %v2618
      %v2620 = vpop.f32.mrf.mxu0
      %v2621 = vadd.f32 %v2462, %v2620
      %v2622 = vand.u32 %v413, 4294901760
      %2623 = vmatmul.f32.gmra.mxu0 %v2622
      %v2624 = vpop.f32.mrf.mxu0
      %v2625 = vadd.f32 %v2468, %v2624
      %2626 = vdwg.mxu0
      %2627 = vmatpush.msra.mxu0 0.0
      %2628 = vmatpush.msra.mxu0 0.0
      %2629 = vmatpush.msra.mxu0 0.0
      %2630 = vmatpush.msra.mxu0 0.0
      %2631 = vmatpush.msra.mxu0 0.0
      %2632 = vmatpush.msra.mxu0 0.0
      %2633 = vmatpush.msra.mxu0 0.0
      %2634 = vmatpush.msra.mxu0 0.0
      %2635 = vmatpush.msra.mxu0 0.0
      %2636 = vmatpush.msra.mxu0 0.0
      %2637 = vmatpush.msra.mxu0 0.0
      %2638 = vmatpush.msra.mxu0 0.0
      %v2639 = vand.u32 %v1629, 4294901760
      %2640 = vmatpush.msra.mxu0 %v2639
      %v2641 = vand.u32 %v1628, 4294901760
      %2642 = vmatpush.msra.mxu0 %v2641
      %v2643 = vand.u32 %v1627, 4294901760
      %2644 = vmatpush.msra.mxu0 %v2643
      %v2645 = vand.u32 %v1626, 4294901760
      %2646 = vmatpush.msra.mxu0 %v2645
      %v2647 = vand.u32 %v320, 4294901760
      %2648 = vmatmul.f32.gmra.mxu0 %v2647
      %v2649 = vpop.f32.mrf.mxu0
      %v2650 = vadd.f32 %v2501, %v2649
      %v2651 = vand.u32 %v323, 4294901760
      %2652 = vmatmul.f32.gmra.mxu0 %v2651
      %v2653 = vpop.f32.mrf.mxu0
      %v2654 = vadd.f32 %v2505, %v2653
      %v2655 = vand.u32 %v326, 4294901760
      %2656 = vmatmul.f32.gmra.mxu0 %v2655
      %v2657 = vpop.f32.mrf.mxu0
      %v2658 = vadd.f32 %v2509, %v2657
      %v2659 = vand.u32 %v329, 4294901760
      %2660 = vmatmul.f32.gmra.mxu0 %v2659
      %v2661 = vpop.f32.mrf.mxu0
      %v2662 = vadd.f32 %v2513, %v2661
      %v2663 = vand.u32 %v332, 4294901760
      %2664 = vmatmul.f32.gmra.mxu0 %v2663
      %v2665 = vpop.f32.mrf.mxu0
      %v2666 = vadd.f32 %v2517, %v2665
      %v2667 = vand.u32 %v335, 4294901760
      %2668 = vmatmul.f32.gmra.mxu0 %v2667
      %v2669 = vpop.f32.mrf.mxu0
      %v2670 = vadd.f32 %v2521, %v2669
      %v2671 = vand.u32 %v338, 4294901760
      %2672 = vmatmul.f32.gmra.mxu0 %v2671
      %v2673 = vpop.f32.mrf.mxu0
      %v2674 = vadd.f32 %v2525, %v2673
      %v2675 = vand.u32 %v341, 4294901760
      %2676 = vmatmul.f32.gmra.mxu0 %v2675
      %v2677 = vpop.f32.mrf.mxu0
      %v2678 = vadd.f32 %v2529, %v2677
      %v2679 = vand.u32 %v344, 4294901760
      %2680 = vmatmul.f32.gmra.mxu0 %v2679
      %v2681 = vpop.f32.mrf.mxu0
      %v2682 = vadd.f32 %v2533, %v2681
      %v2683 = vand.u32 %v347, 4294901760
      %2684 = vmatmul.f32.gmra.mxu0 %v2683
      %v2685 = vpop.f32.mrf.mxu0
      %v2686 = vadd.f32 %v2537, %v2685
      %v2687 = vand.u32 %v350, 4294901760
      %2688 = vmatmul.f32.gmra.mxu0 %v2687
      %v2689 = vpop.f32.mrf.mxu0
      %v2690 = vadd.f32 %v2541, %v2689
      %v2691 = vand.u32 %v353, 4294901760
      %2692 = vmatmul.f32.gmra.mxu0 %v2691
      %v2693 = vpop.f32.mrf.mxu0
      %v2694 = vadd.f32 %v2545, %v2693
      %v2695 = vand.u32 %v356, 4294901760
      %2696 = vmatmul.f32.gmra.mxu0 %v2695
      %v2697 = vpop.f32.mrf.mxu0
      %v2698 = vadd.f32 %v2549, %v2697
      %v2699 = vand.u32 %v359, 4294901760
      %2700 = vmatmul.f32.gmra.mxu0 %v2699
      %v2701 = vpop.f32.mrf.mxu0
      %v2702 = vadd.f32 %v2553, %v2701
      %v2703 = vand.u32 %v362, 4294901760
      %2704 = vmatmul.f32.gmra.mxu0 %v2703
      %v2705 = vpop.f32.mrf.mxu0
      %v2706 = vadd.f32 %v2557, %v2705
      %v2707 = vand.u32 %v365, 4294901760
      %2708 = vmatmul.f32.gmra.mxu0 %v2707
      %v2709 = vpop.f32.mrf.mxu0
      %v2710 = vadd.f32 %v2561, %v2709
      %v2711 = vand.u32 %v368, 4294901760
      %2712 = vmatmul.f32.gmra.mxu0 %v2711
      %v2713 = vpop.f32.mrf.mxu0
      %v2714 = vadd.f32 %v2565, %v2713
      %v2715 = vand.u32 %v371, 4294901760
      %2716 = vmatmul.f32.gmra.mxu0 %v2715
      %v2717 = vpop.f32.mrf.mxu0
      %v2718 = vadd.f32 %v2569, %v2717
      %v2719 = vand.u32 %v374, 4294901760
      %2720 = vmatmul.f32.gmra.mxu0 %v2719
      %v2721 = vpop.f32.mrf.mxu0
      %v2722 = vadd.f32 %v2573, %v2721
      %v2723 = vand.u32 %v377, 4294901760
      %2724 = vmatmul.f32.gmra.mxu0 %v2723
      %v2725 = vpop.f32.mrf.mxu0
      %v2726 = vadd.f32 %v2577, %v2725
      %v2727 = vand.u32 %v380, 4294901760
      %2728 = vmatmul.f32.gmra.mxu0 %v2727
      %v2729 = vpop.f32.mrf.mxu0
      %v2730 = vadd.f32 %v2581, %v2729
      %v2731 = vand.u32 %v383, 4294901760
      %2732 = vmatmul.f32.gmra.mxu0 %v2731
      %v2733 = vpop.f32.mrf.mxu0
      %v2734 = vadd.f32 %v2585, %v2733
      %v2735 = vand.u32 %v386, 4294901760
      %2736 = vmatmul.f32.gmra.mxu0 %v2735
      %v2737 = vpop.f32.mrf.mxu0
      %v2738 = vadd.f32 %v2589, %v2737
      %v2739 = vand.u32 %v389, 4294901760
      %2740 = vmatmul.f32.gmra.mxu0 %v2739
      %v2741 = vpop.f32.mrf.mxu0
      %v2742 = vadd.f32 %v2593, %v2741
      %v2743 = vand.u32 %v392, 4294901760
      %2744 = vmatmul.f32.gmra.mxu0 %v2743
      %v2745 = vpop.f32.mrf.mxu0
      %v2746 = vadd.f32 %v2597, %v2745
      %v2747 = vand.u32 %v395, 4294901760
      %2748 = vmatmul.f32.gmra.mxu0 %v2747
      %v2749 = vpop.f32.mrf.mxu0
      %v2750 = vadd.f32 %v2601, %v2749
      %v2751 = vand.u32 %v398, 4294901760
      %2752 = vmatmul.f32.gmra.mxu0 %v2751
      %v2753 = vpop.f32.mrf.mxu0
      %v2754 = vadd.f32 %v2605, %v2753
      %v2755 = vand.u32 %v401, 4294901760
      %2756 = vmatmul.f32.gmra.mxu0 %v2755
      %v2757 = vpop.f32.mrf.mxu0
      %v2758 = vadd.f32 %v2609, %v2757
      %v2759 = vand.u32 %v404, 4294901760
      %2760 = vmatmul.f32.gmra.mxu0 %v2759
      %v2761 = vpop.f32.mrf.mxu0
      %v2762 = vadd.f32 %v2613, %v2761
      %v2763 = vand.u32 %v407, 4294901760
      %2764 = vmatmul.f32.gmra.mxu0 %v2763
      %v2765 = vpop.f32.mrf.mxu0
      %v2766 = vadd.f32 %v2617, %v2765
      %v2767 = vand.u32 %v410, 4294901760
      %2768 = vmatmul.f32.gmra.mxu0 %v2767
      %v2769 = vpop.f32.mrf.mxu0
      %v2770 = vadd.f32 %v2621, %v2769
      %v2771 = vand.u32 %v413, 4294901760
      %2772 = vmatmul.f32.gmra.mxu0 %v2771
      %v2773 = vpop.f32.mrf.mxu0
      %v2774 = vadd.f32 %v2625, %v2773
      %2775 = vdwg.mxu0
      %v2776 = vpack.c.bf16 %v2650, %v2650
      %v2777 = vpack.c.bf16 %v2654, %v2654
      %v2778 = vpack.c.bf16 %v2658, %v2658
      %v2779 = vpack.c.bf16 %v2662, %v2662
      %v2780 = vpack.c.bf16 %v2666, %v2666
      %v2781 = vpack.c.bf16 %v2670, %v2670
      %v2782 = vpack.c.bf16 %v2674, %v2674
      %v2783 = vpack.c.bf16 %v2678, %v2678
      %v2784 = vpack.c.bf16 %v2682, %v2682
      %v2785 = vpack.c.bf16 %v2686, %v2686
      %v2786 = vpack.c.bf16 %v2690, %v2690
      %v2787 = vpack.c.bf16 %v2694, %v2694
      %v2788 = vpack.c.bf16 %v2698, %v2698
      %v2789 = vpack.c.bf16 %v2702, %v2702
      %v2790 = vpack.c.bf16 %v2706, %v2706
      %v2791 = vpack.c.bf16 %v2710, %v2710
      %v2792 = vpack.c.bf16 %v2714, %v2714
      %v2793 = vpack.c.bf16 %v2718, %v2718
      %v2794 = vpack.c.bf16 %v2722, %v2722
      %v2795 = vpack.c.bf16 %v2726, %v2726
      %v2796 = vpack.c.bf16 %v2730, %v2730
      %v2797 = vpack.c.bf16 %v2734, %v2734
      %v2798 = vpack.c.bf16 %v2738, %v2738
      %v2799 = vpack.c.bf16 %v2742, %v2742
      %v2800 = vpack.c.bf16 %v2746, %v2746
      %v2801 = vpack.c.bf16 %v2750, %v2750
      %v2802 = vpack.c.bf16 %v2754, %v2754
      %v2803 = vpack.c.bf16 %v2758, %v2758
      %v2804 = vpack.c.bf16 %v2762, %v2762
      %v2805 = vpack.c.bf16 %v2766, %v2766
      %v2806 = vpack.c.bf16 %v2770, %v2770
      %v2807 = vpack.c.bf16 %v2774, %v2774
      %2808 = vst.msk [vmem:[%s274] sm:$0xf] %vm1593, %v2776
      %2809 = vst.msk [vmem:[%s274 + $0x4] sm:$0xf] %vm1593, %v2777
      %2810 = vst.msk [vmem:[%s274 + $0x8] sm:$0xf] %vm1593, %v2778
      %2811 = vst.msk [vmem:[%s274 + $0xc] sm:$0xf] %vm1593, %v2779
      %2812 = vst.msk [vmem:[%s274 + $0x10] sm:$0xf] %vm1593, %v2780
      %2813 = vst.msk [vmem:[%s274 + $0x14] sm:$0xf] %vm1593, %v2781
      %2814 = vst.msk [vmem:[%s274 + $0x18] sm:$0xf] %vm1593, %v2782
      %2815 = vst.msk [vmem:[%s274 + $0x1c] sm:$0xf] %vm1593, %v2783
      %2816 = vst.msk [vmem:[%s274 + $0x20] sm:$0xf] %vm1593, %v2784
      %2817 = vst.msk [vmem:[%s274 + $0x24] sm:$0xf] %vm1593, %v2785
      %2818 = vst.msk [vmem:[%s274 + $0x28] sm:$0xf] %vm1593, %v2786
      %2819 = vst.msk [vmem:[%s274 + $0x2c] sm:$0xf] %vm1593, %v2787
      %2820 = vst.msk [vmem:[%s274 + $0x30] sm:$0xf] %vm1593, %v2788
      %2821 = vst.msk [vmem:[%s274 + $0x34] sm:$0xf] %vm1593, %v2789
      %2822 = vst.msk [vmem:[%s274 + $0x38] sm:$0xf] %vm1593, %v2790
      %2823 = vst.msk [vmem:[%s274 + $0x3c] sm:$0xf] %vm1593, %v2791
      %2824 = vst.msk [vmem:[%s274 + $0x40] sm:$0xf] %vm1593, %v2792
      %2825 = vst.msk [vmem:[%s274 + $0x44] sm:$0xf] %vm1593, %v2793
      %2826 = vst.msk [vmem:[%s274 + $0x48] sm:$0xf] %vm1593, %v2794
      %2827 = vst.msk [vmem:[%s274 + $0x4c] sm:$0xf] %vm1593, %v2795
      %2828 = vst.msk [vmem:[%s274 + $0x50] sm:$0xf] %vm1593, %v2796
      %2829 = vst.msk [vmem:[%s274 + $0x54] sm:$0xf] %vm1593, %v2797
      %2830 = vst.msk [vmem:[%s274 + $0x58] sm:$0xf] %vm1593, %v2798
      %2831 = vst.msk [vmem:[%s274 + $0x5c] sm:$0xf] %vm1593, %v2799
      %2832 = vst.msk [vmem:[%s274 + $0x60] sm:$0xf] %vm1593, %v2800
      %2833 = vst.msk [vmem:[%s274 + $0x64] sm:$0xf] %vm1593, %v2801
      %2834 = vst.msk [vmem:[%s274 + $0x68] sm:$0xf] %vm1593, %v2802
      %2835 = vst.msk [vmem:[%s274 + $0x6c] sm:$0xf] %vm1593, %v2803
      %2836 = vst.msk [vmem:[%s274 + $0x70] sm:$0xf] %vm1593, %v2804
      %2837 = vst.msk [vmem:[%s274 + $0x74] sm:$0xf] %vm1593, %v2805
      %2838 = vst.msk [vmem:[%s274 + $0x78] sm:$0xf] %vm1593, %v2806
      %2839 = vst.msk [vmem:[%s274 + $0x7c] sm:$0xf] %vm1593, %v2807
      %v2840 = vld [vmem:[%s3] sm:$0xff]
      %v2841 = vld [vmem:[%s3 + $0x8] sm:$0xff]
      %v2842 = vld [vmem:[%s3 + $0x10] sm:$0xff]
      %v2843 = vld [vmem:[%s3 + $0x18] sm:$0xff]
      %2844 = vmatpush.msra.mxu0 0.0
      %2845 = vmatpush.msra.mxu0 0.0
      %2846 = vmatpush.msra.mxu0 0.0
      %2847 = vmatpush.msra.mxu0 0.0
      %2848 = vmatpush.msra.mxu0 0.0
      %2849 = vmatpush.msra.mxu0 0.0
      %2850 = vmatpush.msra.mxu0 0.0
      %2851 = vmatpush.msra.mxu0 0.0
      %2852 = vmatpush.msra.mxu0 0.0
      %2853 = vmatpush.msra.mxu0 0.0
      %2854 = vmatpush.msra.mxu0 0.0
      %2855 = vmatpush.msra.mxu0 0.0
      %v2856 = vand.u32 %v2843, 4294901760
      %2857 = vmatpush.msra.mxu0 %v2856
      %v2858 = vand.u32 %v2842, 4294901760
      %2859 = vmatpush.msra.mxu0 %v2858
      %v2860 = vand.u32 %v2841, 4294901760
      %2861 = vmatpush.msra.mxu0 %v2860
      %v2862 = vand.u32 %v2840, 4294901760
      %2863 = vmatpush.msra.mxu0 %v2862
      %v2864 = vand.u32 %v320, 4294901760
      %v2865 = vsub.f32 %v320, %v2864
      %v2866 = vand.u32 %v2865, 4294901760
      %v2867 = vsub.f32 %v2865, %v2866
      %v2868 = vand.u32 %v2867, 4294901760
      %2869 = vmatmul.f32.gmra.mxu0 %v2868
      %v2870 = vpop.f32.mrf.mxu0
      %v2871 = vadd.f32 0.0, %v2870
      %v2872 = vand.u32 %v323, 4294901760
      %v2873 = vsub.f32 %v323, %v2872
      %v2874 = vand.u32 %v2873, 4294901760
      %v2875 = vsub.f32 %v2873, %v2874
      %v2876 = vand.u32 %v2875, 4294901760
      %2877 = vmatmul.f32.gmra.mxu0 %v2876
      %v2878 = vpop.f32.mrf.mxu0
      %v2879 = vadd.f32 0.0, %v2878
      %v2880 = vand.u32 %v326, 4294901760
      %v2881 = vsub.f32 %v326, %v2880
      %v2882 = vand.u32 %v2881, 4294901760
      %v2883 = vsub.f32 %v2881, %v2882
      %v2884 = vand.u32 %v2883, 4294901760
      %2885 = vmatmul.f32.gmra.mxu0 %v2884
      %v2886 = vpop.f32.mrf.mxu0
      %v2887 = vadd.f32 0.0, %v2886
      %v2888 = vand.u32 %v329, 4294901760
      %v2889 = vsub.f32 %v329, %v2888
      %v2890 = vand.u32 %v2889, 4294901760
      %v2891 = vsub.f32 %v2889, %v2890
      %v2892 = vand.u32 %v2891, 4294901760
      %2893 = vmatmul.f32.gmra.mxu0 %v2892
      %v2894 = vpop.f32.mrf.mxu0
      %v2895 = vadd.f32 0.0, %v2894
      %v2896 = vand.u32 %v332, 4294901760
      %v2897 = vsub.f32 %v332, %v2896
      %v2898 = vand.u32 %v2897, 4294901760
      %v2899 = vsub.f32 %v2897, %v2898
      %v2900 = vand.u32 %v2899, 4294901760
      %2901 = vmatmul.f32.gmra.mxu0 %v2900
      %v2902 = vpop.f32.mrf.mxu0
      %v2903 = vadd.f32 0.0, %v2902
      %v2904 = vand.u32 %v335, 4294901760
      %v2905 = vsub.f32 %v335, %v2904
      %v2906 = vand.u32 %v2905, 4294901760
      %v2907 = vsub.f32 %v2905, %v2906
      %v2908 = vand.u32 %v2907, 4294901760
      %2909 = vmatmul.f32.gmra.mxu0 %v2908
      %v2910 = vpop.f32.mrf.mxu0
      %v2911 = vadd.f32 0.0, %v2910
      %v2912 = vand.u32 %v338, 4294901760
      %v2913 = vsub.f32 %v338, %v2912
      %v2914 = vand.u32 %v2913, 4294901760
      %v2915 = vsub.f32 %v2913, %v2914
      %v2916 = vand.u32 %v2915, 4294901760
      %2917 = vmatmul.f32.gmra.mxu0 %v2916
      %v2918 = vpop.f32.mrf.mxu0
      %v2919 = vadd.f32 0.0, %v2918
      %v2920 = vand.u32 %v341, 4294901760
      %v2921 = vsub.f32 %v341, %v2920
      %v2922 = vand.u32 %v2921, 4294901760
      %v2923 = vsub.f32 %v2921, %v2922
      %v2924 = vand.u32 %v2923, 4294901760
      %2925 = vmatmul.f32.gmra.mxu0 %v2924
      %v2926 = vpop.f32.mrf.mxu0
      %v2927 = vadd.f32 0.0, %v2926
      %v2928 = vand.u32 %v344, 4294901760
      %v2929 = vsub.f32 %v344, %v2928
      %v2930 = vand.u32 %v2929, 4294901760
      %v2931 = vsub.f32 %v2929, %v2930
      %v2932 = vand.u32 %v2931, 4294901760
      %2933 = vmatmul.f32.gmra.mxu0 %v2932
      %v2934 = vpop.f32.mrf.mxu0
      %v2935 = vadd.f32 0.0, %v2934
      %v2936 = vand.u32 %v347, 4294901760
      %v2937 = vsub.f32 %v347, %v2936
      %v2938 = vand.u32 %v2937, 4294901760
      %v2939 = vsub.f32 %v2937, %v2938
      %v2940 = vand.u32 %v2939, 4294901760
      %2941 = vmatmul.f32.gmra.mxu0 %v2940
      %v2942 = vpop.f32.mrf.mxu0
      %v2943 = vadd.f32 0.0, %v2942
      %v2944 = vand.u32 %v350, 4294901760
      %v2945 = vsub.f32 %v350, %v2944
      %v2946 = vand.u32 %v2945, 4294901760
      %v2947 = vsub.f32 %v2945, %v2946
      %v2948 = vand.u32 %v2947, 4294901760
      %2949 = vmatmul.f32.gmra.mxu0 %v2948
      %v2950 = vpop.f32.mrf.mxu0
      %v2951 = vadd.f32 0.0, %v2950
      %v2952 = vand.u32 %v353, 4294901760
      %v2953 = vsub.f32 %v353, %v2952
      %v2954 = vand.u32 %v2953, 4294901760
      %v2955 = vsub.f32 %v2953, %v2954
      %v2956 = vand.u32 %v2955, 4294901760
      %2957 = vmatmul.f32.gmra.mxu0 %v2956
      %v2958 = vpop.f32.mrf.mxu0
      %v2959 = vadd.f32 0.0, %v2958
      %v2960 = vand.u32 %v356, 4294901760
      %v2961 = vsub.f32 %v356, %v2960
      %v2962 = vand.u32 %v2961, 4294901760
      %v2963 = vsub.f32 %v2961, %v2962
      %v2964 = vand.u32 %v2963, 4294901760
      %2965 = vmatmul.f32.gmra.mxu0 %v2964
      %v2966 = vpop.f32.mrf.mxu0
      %v2967 = vadd.f32 0.0, %v2966
      %v2968 = vand.u32 %v359, 4294901760
      %v2969 = vsub.f32 %v359, %v2968
      %v2970 = vand.u32 %v2969, 4294901760
      %v2971 = vsub.f32 %v2969, %v2970
      %v2972 = vand.u32 %v2971, 4294901760
      %2973 = vmatmul.f32.gmra.mxu0 %v2972
      %v2974 = vpop.f32.mrf.mxu0
      %v2975 = vadd.f32 0.0, %v2974
      %v2976 = vand.u32 %v362, 4294901760
      %v2977 = vsub.f32 %v362, %v2976
      %v2978 = vand.u32 %v2977, 4294901760
      %v2979 = vsub.f32 %v2977, %v2978
      %v2980 = vand.u32 %v2979, 4294901760
      %2981 = vmatmul.f32.gmra.mxu0 %v2980
      %v2982 = vpop.f32.mrf.mxu0
      %v2983 = vadd.f32 0.0, %v2982
      %v2984 = vand.u32 %v365, 4294901760
      %v2985 = vsub.f32 %v365, %v2984
      %v2986 = vand.u32 %v2985, 4294901760
      %v2987 = vsub.f32 %v2985, %v2986
      %v2988 = vand.u32 %v2987, 4294901760
      %2989 = vmatmul.f32.gmra.mxu0 %v2988
      %v2990 = vpop.f32.mrf.mxu0
      %v2991 = vadd.f32 0.0, %v2990
      %v2992 = vand.u32 %v368, 4294901760
      %v2993 = vsub.f32 %v368, %v2992
      %v2994 = vand.u32 %v2993, 4294901760
      %v2995 = vsub.f32 %v2993, %v2994
      %v2996 = vand.u32 %v2995, 4294901760
      %2997 = vmatmul.f32.gmra.mxu0 %v2996
      %v2998 = vpop.f32.mrf.mxu0
      %v2999 = vadd.f32 0.0, %v2998
      %v3000 = vand.u32 %v371, 4294901760
      %v3001 = vsub.f32 %v371, %v3000
      %v3002 = vand.u32 %v3001, 4294901760
      %v3003 = vsub.f32 %v3001, %v3002
      %v3004 = vand.u32 %v3003, 4294901760
      %3005 = vmatmul.f32.gmra.mxu0 %v3004
      %v3006 = vpop.f32.mrf.mxu0
      %v3007 = vadd.f32 0.0, %v3006
      %v3008 = vand.u32 %v374, 4294901760
      %v3009 = vsub.f32 %v374, %v3008
      %v3010 = vand.u32 %v3009, 4294901760
      %v3011 = vsub.f32 %v3009, %v3010
      %v3012 = vand.u32 %v3011, 4294901760
      %3013 = vmatmul.f32.gmra.mxu0 %v3012
      %v3014 = vpop.f32.mrf.mxu0
      %v3015 = vadd.f32 0.0, %v3014
      %v3016 = vand.u32 %v377, 4294901760
      %v3017 = vsub.f32 %v377, %v3016
      %v3018 = vand.u32 %v3017, 4294901760
      %v3019 = vsub.f32 %v3017, %v3018
      %v3020 = vand.u32 %v3019, 4294901760
      %3021 = vmatmul.f32.gmra.mxu0 %v3020
      %v3022 = vpop.f32.mrf.mxu0
      %v3023 = vadd.f32 0.0, %v3022
      %v3024 = vand.u32 %v380, 4294901760
      %v3025 = vsub.f32 %v380, %v3024
      %v3026 = vand.u32 %v3025, 4294901760
      %v3027 = vsub.f32 %v3025, %v3026
      %v3028 = vand.u32 %v3027, 4294901760
      %3029 = vmatmul.f32.gmra.mxu0 %v3028
      %v3030 = vpop.f32.mrf.mxu0
      %v3031 = vadd.f32 0.0, %v3030
      %v3032 = vand.u32 %v383, 4294901760
      %v3033 = vsub.f32 %v383, %v3032
      %v3034 = vand.u32 %v3033, 4294901760
      %v3035 = vsub.f32 %v3033, %v3034
      %v3036 = vand.u32 %v3035, 4294901760
      %3037 = vmatmul.f32.gmra.mxu0 %v3036
      %v3038 = vpop.f32.mrf.mxu0
      %v3039 = vadd.f32 0.0, %v3038
      %v3040 = vand.u32 %v386, 4294901760
      %v3041 = vsub.f32 %v386, %v3040
      %v3042 = vand.u32 %v3041, 4294901760
      %v3043 = vsub.f32 %v3041, %v3042
      %v3044 = vand.u32 %v3043, 4294901760
      %3045 = vmatmul.f32.gmra.mxu0 %v3044
      %v3046 = vpop.f32.mrf.mxu0
      %v3047 = vadd.f32 0.0, %v3046
      %v3048 = vand.u32 %v389, 4294901760
      %v3049 = vsub.f32 %v389, %v3048
      %v3050 = vand.u32 %v3049, 4294901760
      %v3051 = vsub.f32 %v3049, %v3050
      %v3052 = vand.u32 %v3051, 4294901760
      %3053 = vmatmul.f32.gmra.mxu0 %v3052
      %v3054 = vpop.f32.mrf.mxu0
      %v3055 = vadd.f32 0.0, %v3054
      %v3056 = vand.u32 %v392, 4294901760
      %v3057 = vsub.f32 %v392, %v3056
      %v3058 = vand.u32 %v3057, 4294901760
      %v3059 = vsub.f32 %v3057, %v3058
      %v3060 = vand.u32 %v3059, 4294901760
      %3061 = vmatmul.f32.gmra.mxu0 %v3060
      %v3062 = vpop.f32.mrf.mxu0
      %v3063 = vadd.f32 0.0, %v3062
      %v3064 = vand.u32 %v395, 4294901760
      %v3065 = vsub.f32 %v395, %v3064
      %v3066 = vand.u32 %v3065, 4294901760
      %v3067 = vsub.f32 %v3065, %v3066
      %v3068 = vand.u32 %v3067, 4294901760
      %3069 = vmatmul.f32.gmra.mxu0 %v3068
      %v3070 = vpop.f32.mrf.mxu0
      %v3071 = vadd.f32 0.0, %v3070
      %v3072 = vand.u32 %v398, 4294901760
      %v3073 = vsub.f32 %v398, %v3072
      %v3074 = vand.u32 %v3073, 4294901760
      %v3075 = vsub.f32 %v3073, %v3074
      %v3076 = vand.u32 %v3075, 4294901760
      %3077 = vmatmul.f32.gmra.mxu0 %v3076
      %v3078 = vpop.f32.mrf.mxu0
      %v3079 = vadd.f32 0.0, %v3078
      %v3080 = vand.u32 %v401, 4294901760
      %v3081 = vsub.f32 %v401, %v3080
      %v3082 = vand.u32 %v3081, 4294901760
      %v3083 = vsub.f32 %v3081, %v3082
      %v3084 = vand.u32 %v3083, 4294901760
      %3085 = vmatmul.f32.gmra.mxu0 %v3084
      %v3086 = vpop.f32.mrf.mxu0
      %v3087 = vadd.f32 0.0, %v3086
      %v3088 = vand.u32 %v404, 4294901760
      %v3089 = vsub.f32 %v404, %v3088
      %v3090 = vand.u32 %v3089, 4294901760
      %v3091 = vsub.f32 %v3089, %v3090
      %v3092 = vand.u32 %v3091, 4294901760
      %3093 = vmatmul.f32.gmra.mxu0 %v3092
      %v3094 = vpop.f32.mrf.mxu0
      %v3095 = vadd.f32 0.0, %v3094
      %v3096 = vand.u32 %v407, 4294901760
      %v3097 = vsub.f32 %v407, %v3096
      %v3098 = vand.u32 %v3097, 4294901760
      %v3099 = vsub.f32 %v3097, %v3098
      %v3100 = vand.u32 %v3099, 4294901760
      %3101 = vmatmul.f32.gmra.mxu0 %v3100
      %v3102 = vpop.f32.mrf.mxu0
      %v3103 = vadd.f32 0.0, %v3102
      %v3104 = vand.u32 %v410, 4294901760
      %v3105 = vsub.f32 %v410, %v3104
      %v3106 = vand.u32 %v3105, 4294901760
      %v3107 = vsub.f32 %v3105, %v3106
      %v3108 = vand.u32 %v3107, 4294901760
      %3109 = vmatmul.f32.gmra.mxu0 %v3108
      %v3110 = vpop.f32.mrf.mxu0
      %v3111 = vadd.f32 0.0, %v3110
      %v3112 = vand.u32 %v413, 4294901760
      %v3113 = vsub.f32 %v413, %v3112
      %v3114 = vand.u32 %v3113, 4294901760
      %v3115 = vsub.f32 %v3113, %v3114
      %v3116 = vand.u32 %v3115, 4294901760
      %3117 = vmatmul.f32.gmra.mxu0 %v3116
      %v3118 = vpop.f32.mrf.mxu0
      %v3119 = vadd.f32 0.0, %v3118
      %3120 = vdwg.mxu0
      %3121 = vmatpush.msra.mxu0 0.0
      %3122 = vmatpush.msra.mxu0 0.0
      %3123 = vmatpush.msra.mxu0 0.0
      %3124 = vmatpush.msra.mxu0 0.0
      %3125 = vmatpush.msra.mxu0 0.0
      %3126 = vmatpush.msra.mxu0 0.0
      %3127 = vmatpush.msra.mxu0 0.0
      %3128 = vmatpush.msra.mxu0 0.0
      %3129 = vmatpush.msra.mxu0 0.0
      %3130 = vmatpush.msra.mxu0 0.0
      %3131 = vmatpush.msra.mxu0 0.0
      %3132 = vmatpush.msra.mxu0 0.0
      %v3133 = vand.u32 %v2843, 4294901760
      %v3134 = vsub.f32 %v2843, %v3133
      %v3135 = vand.u32 %v3134, 4294901760
      %v3136 = vsub.f32 %v3134, %v3135
      %v3137 = vand.u32 %v3136, 4294901760
      %3138 = vmatpush.msra.mxu0 %v3137
      %v3139 = vand.u32 %v2842, 4294901760
      %v3140 = vsub.f32 %v2842, %v3139
      %v3141 = vand.u32 %v3140, 4294901760
      %v3142 = vsub.f32 %v3140, %v3141
      %v3143 = vand.u32 %v3142, 4294901760
      %3144 = vmatpush.msra.mxu0 %v3143
      %v3145 = vand.u32 %v2841, 4294901760
      %v3146 = vsub.f32 %v2841, %v3145
      %v3147 = vand.u32 %v3146, 4294901760
      %v3148 = vsub.f32 %v3146, %v3147
      %v3149 = vand.u32 %v3148, 4294901760
      %3150 = vmatpush.msra.mxu0 %v3149
      %v3151 = vand.u32 %v2840, 4294901760
      %v3152 = vsub.f32 %v2840, %v3151
      %v3153 = vand.u32 %v3152, 4294901760
      %v3154 = vsub.f32 %v3152, %v3153
      %v3155 = vand.u32 %v3154, 4294901760
      %3156 = vmatpush.msra.mxu0 %v3155
      %v3157 = vand.u32 %v320, 4294901760
      %3158 = vmatmul.f32.gmra.mxu0 %v3157
      %v3159 = vpop.f32.mrf.mxu0
      %v3160 = vadd.f32 %v2871, %v3159
      %v3161 = vand.u32 %v323, 4294901760
      %3162 = vmatmul.f32.gmra.mxu0 %v3161
      %v3163 = vpop.f32.mrf.mxu0
      %v3164 = vadd.f32 %v2879, %v3163
      %v3165 = vand.u32 %v326, 4294901760
      %3166 = vmatmul.f32.gmra.mxu0 %v3165
      %v3167 = vpop.f32.mrf.mxu0
      %v3168 = vadd.f32 %v2887, %v3167
      %v3169 = vand.u32 %v329, 4294901760
      %3170 = vmatmul.f32.gmra.mxu0 %v3169
      %v3171 = vpop.f32.mrf.mxu0
      %v3172 = vadd.f32 %v2895, %v3171
      %v3173 = vand.u32 %v332, 4294901760
      %3174 = vmatmul.f32.gmra.mxu0 %v3173
      %v3175 = vpop.f32.mrf.mxu0
      %v3176 = vadd.f32 %v2903, %v3175
      %v3177 = vand.u32 %v335, 4294901760
      %3178 = vmatmul.f32.gmra.mxu0 %v3177
      %v3179 = vpop.f32.mrf.mxu0
      %v3180 = vadd.f32 %v2911, %v3179
      %v3181 = vand.u32 %v338, 4294901760
      %3182 = vmatmul.f32.gmra.mxu0 %v3181
      %v3183 = vpop.f32.mrf.mxu0
      %v3184 = vadd.f32 %v2919, %v3183
      %v3185 = vand.u32 %v341, 4294901760
      %3186 = vmatmul.f32.gmra.mxu0 %v3185
      %v3187 = vpop.f32.mrf.mxu0
      %v3188 = vadd.f32 %v2927, %v3187
      %v3189 = vand.u32 %v344, 4294901760
      %3190 = vmatmul.f32.gmra.mxu0 %v3189
      %v3191 = vpop.f32.mrf.mxu0
      %v3192 = vadd.f32 %v2935, %v3191
      %v3193 = vand.u32 %v347, 4294901760
      %3194 = vmatmul.f32.gmra.mxu0 %v3193
      %v3195 = vpop.f32.mrf.mxu0
      %v3196 = vadd.f32 %v2943, %v3195
      %v3197 = vand.u32 %v350, 4294901760
      %3198 = vmatmul.f32.gmra.mxu0 %v3197
      %v3199 = vpop.f32.mrf.mxu0
      %v3200 = vadd.f32 %v2951, %v3199
      %v3201 = vand.u32 %v353, 4294901760
      %3202 = vmatmul.f32.gmra.mxu0 %v3201
      %v3203 = vpop.f32.mrf.mxu0
      %v3204 = vadd.f32 %v2959, %v3203
      %v3205 = vand.u32 %v356, 4294901760
      %3206 = vmatmul.f32.gmra.mxu0 %v3205
      %v3207 = vpop.f32.mrf.mxu0
      %v3208 = vadd.f32 %v2967, %v3207
      %v3209 = vand.u32 %v359, 4294901760
      %3210 = vmatmul.f32.gmra.mxu0 %v3209
      %v3211 = vpop.f32.mrf.mxu0
      %v3212 = vadd.f32 %v2975, %v3211
      %v3213 = vand.u32 %v362, 4294901760
      %3214 = vmatmul.f32.gmra.mxu0 %v3213
      %v3215 = vpop.f32.mrf.mxu0
      %v3216 = vadd.f32 %v2983, %v3215
      %v3217 = vand.u32 %v365, 4294901760
      %3218 = vmatmul.f32.gmra.mxu0 %v3217
      %v3219 = vpop.f32.mrf.mxu0
      %v3220 = vadd.f32 %v2991, %v3219
      %v3221 = vand.u32 %v368, 4294901760
      %3222 = vmatmul.f32.gmra.mxu0 %v3221
      %v3223 = vpop.f32.mrf.mxu0
      %v3224 = vadd.f32 %v2999, %v3223
      %v3225 = vand.u32 %v371, 4294901760
      %3226 = vmatmul.f32.gmra.mxu0 %v3225
      %v3227 = vpop.f32.mrf.mxu0
      %v3228 = vadd.f32 %v3007, %v3227
      %v3229 = vand.u32 %v374, 4294901760
      %3230 = vmatmul.f32.gmra.mxu0 %v3229
      %v3231 = vpop.f32.mrf.mxu0
      %v3232 = vadd.f32 %v3015, %v3231
      %v3233 = vand.u32 %v377, 4294901760
      %3234 = vmatmul.f32.gmra.mxu0 %v3233
      %v3235 = vpop.f32.mrf.mxu0
      %v3236 = vadd.f32 %v3023, %v3235
      %v3237 = vand.u32 %v380, 4294901760
      %3238 = vmatmul.f32.gmra.mxu0 %v3237
      %v3239 = vpop.f32.mrf.mxu0
      %v3240 = vadd.f32 %v3031, %v3239
      %v3241 = vand.u32 %v383, 4294901760
      %3242 = vmatmul.f32.gmra.mxu0 %v3241
      %v3243 = vpop.f32.mrf.mxu0
      %v3244 = vadd.f32 %v3039, %v3243
      %v3245 = vand.u32 %v386, 4294901760
      %3246 = vmatmul.f32.gmra.mxu0 %v3245
      %v3247 = vpop.f32.mrf.mxu0
      %v3248 = vadd.f32 %v3047, %v3247
      %v3249 = vand.u32 %v389, 4294901760
      %3250 = vmatmul.f32.gmra.mxu0 %v3249
      %v3251 = vpop.f32.mrf.mxu0
      %v3252 = vadd.f32 %v3055, %v3251
      %v3253 = vand.u32 %v392, 4294901760
      %3254 = vmatmul.f32.gmra.mxu0 %v3253
      %v3255 = vpop.f32.mrf.mxu0
      %v3256 = vadd.f32 %v3063, %v3255
      %v3257 = vand.u32 %v395, 4294901760
      %3258 = vmatmul.f32.gmra.mxu0 %v3257
      %v3259 = vpop.f32.mrf.mxu0
      %v3260 = vadd.f32 %v3071, %v3259
      %v3261 = vand.u32 %v398, 4294901760
      %3262 = vmatmul.f32.gmra.mxu0 %v3261
      %v3263 = vpop.f32.mrf.mxu0
      %v3264 = vadd.f32 %v3079, %v3263
      %v3265 = vand.u32 %v401, 4294901760
      %3266 = vmatmul.f32.gmra.mxu0 %v3265
      %v3267 = vpop.f32.mrf.mxu0
      %v3268 = vadd.f32 %v3087, %v3267
      %v3269 = vand.u32 %v404, 4294901760
      %3270 = vmatmul.f32.gmra.mxu0 %v3269
      %v3271 = vpop.f32.mrf.mxu0
      %v3272 = vadd.f32 %v3095, %v3271
      %v3273 = vand.u32 %v407, 4294901760
      %3274 = vmatmul.f32.gmra.mxu0 %v3273
      %v3275 = vpop.f32.mrf.mxu0
      %v3276 = vadd.f32 %v3103, %v3275
      %v3277 = vand.u32 %v410, 4294901760
      %3278 = vmatmul.f32.gmra.mxu0 %v3277
      %v3279 = vpop.f32.mrf.mxu0
      %v3280 = vadd.f32 %v3111, %v3279
      %v3281 = vand.u32 %v413, 4294901760
      %3282 = vmatmul.f32.gmra.mxu0 %v3281
      %v3283 = vpop.f32.mrf.mxu0
      %v3284 = vadd.f32 %v3119, %v3283
      %3285 = vdwg.mxu0
      %3286 = vmatpush.msra.mxu0 0.0
      %3287 = vmatpush.msra.mxu0 0.0
      %3288 = vmatpush.msra.mxu0 0.0
      %3289 = vmatpush.msra.mxu0 0.0
      %3290 = vmatpush.msra.mxu0 0.0
      %3291 = vmatpush.msra.mxu0 0.0
      %3292 = vmatpush.msra.mxu0 0.0
      %3293 = vmatpush.msra.mxu0 0.0
      %3294 = vmatpush.msra.mxu0 0.0
      %3295 = vmatpush.msra.mxu0 0.0
      %3296 = vmatpush.msra.mxu0 0.0
      %3297 = vmatpush.msra.mxu0 0.0
      %v3298 = vand.u32 %v2843, 4294901760
      %v3299 = vsub.f32 %v2843, %v3298
      %3300 = vmatpush.msra.mxu0 %v3299
      %v3301 = vand.u32 %v2842, 4294901760
      %v3302 = vsub.f32 %v2842, %v3301
      %3303 = vmatpush.msra.mxu0 %v3302
      %v3304 = vand.u32 %v2841, 4294901760
      %v3305 = vsub.f32 %v2841, %v3304
      %3306 = vmatpush.msra.mxu0 %v3305
      %v3307 = vand.u32 %v2840, 4294901760
      %v3308 = vsub.f32 %v2840, %v3307
      %3309 = vmatpush.msra.mxu0 %v3308
      %v3310 = vand.u32 %v320, 4294901760
      %v3311 = vsub.f32 %v320, %v3310
      %3312 = vmatmul.f32.gmra.mxu0 %v3311
      %v3313 = vpop.f32.mrf.mxu0
      %v3314 = vadd.f32 %v3160, %v3313
      %v3315 = vand.u32 %v323, 4294901760
      %v3316 = vsub.f32 %v323, %v3315
      %3317 = vmatmul.f32.gmra.mxu0 %v3316
      %v3318 = vpop.f32.mrf.mxu0
      %v3319 = vadd.f32 %v3164, %v3318
      %v3320 = vand.u32 %v326, 4294901760
      %v3321 = vsub.f32 %v326, %v3320
      %3322 = vmatmul.f32.gmra.mxu0 %v3321
      %v3323 = vpop.f32.mrf.mxu0
      %v3324 = vadd.f32 %v3168, %v3323
      %v3325 = vand.u32 %v329, 4294901760
      %v3326 = vsub.f32 %v329, %v3325
      %3327 = vmatmul.f32.gmra.mxu0 %v3326
      %v3328 = vpop.f32.mrf.mxu0
      %v3329 = vadd.f32 %v3172, %v3328
      %v3330 = vand.u32 %v332, 4294901760
      %v3331 = vsub.f32 %v332, %v3330
      %3332 = vmatmul.f32.gmra.mxu0 %v3331
      %v3333 = vpop.f32.mrf.mxu0
      %v3334 = vadd.f32 %v3176, %v3333
      %v3335 = vand.u32 %v335, 4294901760
      %v3336 = vsub.f32 %v335, %v3335
      %3337 = vmatmul.f32.gmra.mxu0 %v3336
      %v3338 = vpop.f32.mrf.mxu0
      %v3339 = vadd.f32 %v3180, %v3338
      %v3340 = vand.u32 %v338, 4294901760
      %v3341 = vsub.f32 %v338, %v3340
      %3342 = vmatmul.f32.gmra.mxu0 %v3341
      %v3343 = vpop.f32.mrf.mxu0
      %v3344 = vadd.f32 %v3184, %v3343
      %v3345 = vand.u32 %v341, 4294901760
      %v3346 = vsub.f32 %v341, %v3345
      %3347 = vmatmul.f32.gmra.mxu0 %v3346
      %v3348 = vpop.f32.mrf.mxu0
      %v3349 = vadd.f32 %v3188, %v3348
      %v3350 = vand.u32 %v344, 4294901760
      %v3351 = vsub.f32 %v344, %v3350
      %3352 = vmatmul.f32.gmra.mxu0 %v3351
      %v3353 = vpop.f32.mrf.mxu0
      %v3354 = vadd.f32 %v3192, %v3353
      %v3355 = vand.u32 %v347, 4294901760
      %v3356 = vsub.f32 %v347, %v3355
      %3357 = vmatmul.f32.gmra.mxu0 %v3356
      %v3358 = vpop.f32.mrf.mxu0
      %v3359 = vadd.f32 %v3196, %v3358
      %v3360 = vand.u32 %v350, 4294901760
      %v3361 = vsub.f32 %v350, %v3360
      %3362 = vmatmul.f32.gmra.mxu0 %v3361
      %v3363 = vpop.f32.mrf.mxu0
      %v3364 = vadd.f32 %v3200, %v3363
      %v3365 = vand.u32 %v353, 4294901760
      %v3366 = vsub.f32 %v353, %v3365
      %3367 = vmatmul.f32.gmra.mxu0 %v3366
      %v3368 = vpop.f32.mrf.mxu0
      %v3369 = vadd.f32 %v3204, %v3368
      %v3370 = vand.u32 %v356, 4294901760
      %v3371 = vsub.f32 %v356, %v3370
      %3372 = vmatmul.f32.gmra.mxu0 %v3371
      %v3373 = vpop.f32.mrf.mxu0
      %v3374 = vadd.f32 %v3208, %v3373
      %v3375 = vand.u32 %v359, 4294901760
      %v3376 = vsub.f32 %v359, %v3375
      %3377 = vmatmul.f32.gmra.mxu0 %v3376
      %v3378 = vpop.f32.mrf.mxu0
      %v3379 = vadd.f32 %v3212, %v3378
      %v3380 = vand.u32 %v362, 4294901760
      %v3381 = vsub.f32 %v362, %v3380
      %3382 = vmatmul.f32.gmra.mxu0 %v3381
      %v3383 = vpop.f32.mrf.mxu0
      %v3384 = vadd.f32 %v3216, %v3383
      %v3385 = vand.u32 %v365, 4294901760
      %v3386 = vsub.f32 %v365, %v3385
      %3387 = vmatmul.f32.gmra.mxu0 %v3386
      %v3388 = vpop.f32.mrf.mxu0
      %v3389 = vadd.f32 %v3220, %v3388
      %v3390 = vand.u32 %v368, 4294901760
      %v3391 = vsub.f32 %v368, %v3390
      %3392 = vmatmul.f32.gmra.mxu0 %v3391
      %v3393 = vpop.f32.mrf.mxu0
      %v3394 = vadd.f32 %v3224, %v3393
      %v3395 = vand.u32 %v371, 4294901760
      %v3396 = vsub.f32 %v371, %v3395
      %3397 = vmatmul.f32.gmra.mxu0 %v3396
      %v3398 = vpop.f32.mrf.mxu0
      %v3399 = vadd.f32 %v3228, %v3398
      %v3400 = vand.u32 %v374, 4294901760
      %v3401 = vsub.f32 %v374, %v3400
      %3402 = vmatmul.f32.gmra.mxu0 %v3401
      %v3403 = vpop.f32.mrf.mxu0
      %v3404 = vadd.f32 %v3232, %v3403
      %v3405 = vand.u32 %v377, 4294901760
      %v3406 = vsub.f32 %v377, %v3405
      %3407 = vmatmul.f32.gmra.mxu0 %v3406
      %v3408 = vpop.f32.mrf.mxu0
      %v3409 = vadd.f32 %v3236, %v3408
      %v3410 = vand.u32 %v380, 4294901760
      %v3411 = vsub.f32 %v380, %v3410
      %3412 = vmatmul.f32.gmra.mxu0 %v3411
      %v3413 = vpop.f32.mrf.mxu0
      %v3414 = vadd.f32 %v3240, %v3413
      %v3415 = vand.u32 %v383, 4294901760
      %v3416 = vsub.f32 %v383, %v3415
      %3417 = vmatmul.f32.gmra.mxu0 %v3416
      %v3418 = vpop.f32.mrf.mxu0
      %v3419 = vadd.f32 %v3244, %v3418
      %v3420 = vand.u32 %v386, 4294901760
      %v3421 = vsub.f32 %v386, %v3420
      %3422 = vmatmul.f32.gmra.mxu0 %v3421
      %v3423 = vpop.f32.mrf.mxu0
      %v3424 = vadd.f32 %v3248, %v3423
      %v3425 = vand.u32 %v389, 4294901760
      %v3426 = vsub.f32 %v389, %v3425
      %3427 = vmatmul.f32.gmra.mxu0 %v3426
      %v3428 = vpop.f32.mrf.mxu0
      %v3429 = vadd.f32 %v3252, %v3428
      %v3430 = vand.u32 %v392, 4294901760
      %v3431 = vsub.f32 %v392, %v3430
      %3432 = vmatmul.f32.gmra.mxu0 %v3431
      %v3433 = vpop.f32.mrf.mxu0
      %v3434 = vadd.f32 %v3256, %v3433
      %v3435 = vand.u32 %v395, 4294901760
      %v3436 = vsub.f32 %v395, %v3435
      %3437 = vmatmul.f32.gmra.mxu0 %v3436
      %v3438 = vpop.f32.mrf.mxu0
      %v3439 = vadd.f32 %v3260, %v3438
      %v3440 = vand.u32 %v398, 4294901760
      %v3441 = vsub.f32 %v398, %v3440
      %3442 = vmatmul.f32.gmra.mxu0 %v3441
      %v3443 = vpop.f32.mrf.mxu0
      %v3444 = vadd.f32 %v3264, %v3443
      %v3445 = vand.u32 %v401, 4294901760
      %v3446 = vsub.f32 %v401, %v3445
      %3447 = vmatmul.f32.gmra.mxu0 %v3446
      %v3448 = vpop.f32.mrf.mxu0
      %v3449 = vadd.f32 %v3268, %v3448
      %v3450 = vand.u32 %v404, 4294901760
      %v3451 = vsub.f32 %v404, %v3450
      %3452 = vmatmul.f32.gmra.mxu0 %v3451
      %v3453 = vpop.f32.mrf.mxu0
      %v3454 = vadd.f32 %v3272, %v3453
      %v3455 = vand.u32 %v407, 4294901760
      %v3456 = vsub.f32 %v407, %v3455
      %3457 = vmatmul.f32.gmra.mxu0 %v3456
      %v3458 = vpop.f32.mrf.mxu0
      %v3459 = vadd.f32 %v3276, %v3458
      %v3460 = vand.u32 %v410, 4294901760
      %v3461 = vsub.f32 %v410, %v3460
      %3462 = vmatmul.f32.gmra.mxu0 %v3461
      %v3463 = vpop.f32.mrf.mxu0
      %v3464 = vadd.f32 %v3280, %v3463
      %v3465 = vand.u32 %v413, 4294901760
      %v3466 = vsub.f32 %v413, %v3465
      %3467 = vmatmul.f32.gmra.mxu0 %v3466
      %v3468 = vpop.f32.mrf.mxu0
      %v3469 = vadd.f32 %v3284, %v3468
      %3470 = vdwg.mxu0
      %3471 = vmatpush.msra.mxu0 0.0
      %3472 = vmatpush.msra.mxu0 0.0
      %3473 = vmatpush.msra.mxu0 0.0
      %3474 = vmatpush.msra.mxu0 0.0
      %3475 = vmatpush.msra.mxu0 0.0
      %3476 = vmatpush.msra.mxu0 0.0
      %3477 = vmatpush.msra.mxu0 0.0
      %3478 = vmatpush.msra.mxu0 0.0
      %3479 = vmatpush.msra.mxu0 0.0
      %3480 = vmatpush.msra.mxu0 0.0
      %3481 = vmatpush.msra.mxu0 0.0
      %3482 = vmatpush.msra.mxu0 0.0
      %v3483 = vand.u32 %v2843, 4294901760
      %3484 = vmatpush.msra.mxu0 %v3483
      %v3485 = vand.u32 %v2842, 4294901760
      %3486 = vmatpush.msra.mxu0 %v3485
      %v3487 = vand.u32 %v2841, 4294901760
      %3488 = vmatpush.msra.mxu0 %v3487
      %v3489 = vand.u32 %v2840, 4294901760
      %3490 = vmatpush.msra.mxu0 %v3489
      %v3491 = vand.u32 %v320, 4294901760
      %v3492 = vsub.f32 %v320, %v3491
      %v3493 = vand.u32 %v3492, 4294901760
      %3494 = vmatmul.f32.gmra.mxu0 %v3493
      %v3495 = vpop.f32.mrf.mxu0
      %v3496 = vadd.f32 %v3314, %v3495
      %v3497 = vand.u32 %v323, 4294901760
      %v3498 = vsub.f32 %v323, %v3497
      %v3499 = vand.u32 %v3498, 4294901760
      %3500 = vmatmul.f32.gmra.mxu0 %v3499
      %v3501 = vpop.f32.mrf.mxu0
      %v3502 = vadd.f32 %v3319, %v3501
      %v3503 = vand.u32 %v326, 4294901760
      %v3504 = vsub.f32 %v326, %v3503
      %v3505 = vand.u32 %v3504, 4294901760
      %3506 = vmatmul.f32.gmra.mxu0 %v3505
      %v3507 = vpop.f32.mrf.mxu0
      %v3508 = vadd.f32 %v3324, %v3507
      %v3509 = vand.u32 %v329, 4294901760
      %v3510 = vsub.f32 %v329, %v3509
      %v3511 = vand.u32 %v3510, 4294901760
      %3512 = vmatmul.f32.gmra.mxu0 %v3511
      %v3513 = vpop.f32.mrf.mxu0
      %v3514 = vadd.f32 %v3329, %v3513
      %v3515 = vand.u32 %v332, 4294901760
      %v3516 = vsub.f32 %v332, %v3515
      %v3517 = vand.u32 %v3516, 4294901760
      %3518 = vmatmul.f32.gmra.mxu0 %v3517
      %v3519 = vpop.f32.mrf.mxu0
      %v3520 = vadd.f32 %v3334, %v3519
      %v3521 = vand.u32 %v335, 4294901760
      %v3522 = vsub.f32 %v335, %v3521
      %v3523 = vand.u32 %v3522, 4294901760
      %3524 = vmatmul.f32.gmra.mxu0 %v3523
      %v3525 = vpop.f32.mrf.mxu0
      %v3526 = vadd.f32 %v3339, %v3525
      %v3527 = vand.u32 %v338, 4294901760
      %v3528 = vsub.f32 %v338, %v3527
      %v3529 = vand.u32 %v3528, 4294901760
      %3530 = vmatmul.f32.gmra.mxu0 %v3529
      %v3531 = vpop.f32.mrf.mxu0
      %v3532 = vadd.f32 %v3344, %v3531
      %v3533 = vand.u32 %v341, 4294901760
      %v3534 = vsub.f32 %v341, %v3533
      %v3535 = vand.u32 %v3534, 4294901760
      %3536 = vmatmul.f32.gmra.mxu0 %v3535
      %v3537 = vpop.f32.mrf.mxu0
      %v3538 = vadd.f32 %v3349, %v3537
      %v3539 = vand.u32 %v344, 4294901760
      %v3540 = vsub.f32 %v344, %v3539
      %v3541 = vand.u32 %v3540, 4294901760
      %3542 = vmatmul.f32.gmra.mxu0 %v3541
      %v3543 = vpop.f32.mrf.mxu0
      %v3544 = vadd.f32 %v3354, %v3543
      %v3545 = vand.u32 %v347, 4294901760
      %v3546 = vsub.f32 %v347, %v3545
      %v3547 = vand.u32 %v3546, 4294901760
      %3548 = vmatmul.f32.gmra.mxu0 %v3547
      %v3549 = vpop.f32.mrf.mxu0
      %v3550 = vadd.f32 %v3359, %v3549
      %v3551 = vand.u32 %v350, 4294901760
      %v3552 = vsub.f32 %v350, %v3551
      %v3553 = vand.u32 %v3552, 4294901760
      %3554 = vmatmul.f32.gmra.mxu0 %v3553
      %v3555 = vpop.f32.mrf.mxu0
      %v3556 = vadd.f32 %v3364, %v3555
      %v3557 = vand.u32 %v353, 4294901760
      %v3558 = vsub.f32 %v353, %v3557
      %v3559 = vand.u32 %v3558, 4294901760
      %3560 = vmatmul.f32.gmra.mxu0 %v3559
      %v3561 = vpop.f32.mrf.mxu0
      %v3562 = vadd.f32 %v3369, %v3561
      %v3563 = vand.u32 %v356, 4294901760
      %v3564 = vsub.f32 %v356, %v3563
      %v3565 = vand.u32 %v3564, 4294901760
      %3566 = vmatmul.f32.gmra.mxu0 %v3565
      %v3567 = vpop.f32.mrf.mxu0
      %v3568 = vadd.f32 %v3374, %v3567
      %v3569 = vand.u32 %v359, 4294901760
      %v3570 = vsub.f32 %v359, %v3569
      %v3571 = vand.u32 %v3570, 4294901760
      %3572 = vmatmul.f32.gmra.mxu0 %v3571
      %v3573 = vpop.f32.mrf.mxu0
      %v3574 = vadd.f32 %v3379, %v3573
      %v3575 = vand.u32 %v362, 4294901760
      %v3576 = vsub.f32 %v362, %v3575
      %v3577 = vand.u32 %v3576, 4294901760
      %3578 = vmatmul.f32.gmra.mxu0 %v3577
      %v3579 = vpop.f32.mrf.mxu0
      %v3580 = vadd.f32 %v3384, %v3579
      %v3581 = vand.u32 %v365, 4294901760
      %v3582 = vsub.f32 %v365, %v3581
      %v3583 = vand.u32 %v3582, 4294901760
      %3584 = vmatmul.f32.gmra.mxu0 %v3583
      %v3585 = vpop.f32.mrf.mxu0
      %v3586 = vadd.f32 %v3389, %v3585
      %v3587 = vand.u32 %v368, 4294901760
      %v3588 = vsub.f32 %v368, %v3587
      %v3589 = vand.u32 %v3588, 4294901760
      %3590 = vmatmul.f32.gmra.mxu0 %v3589
      %v3591 = vpop.f32.mrf.mxu0
      %v3592 = vadd.f32 %v3394, %v3591
      %v3593 = vand.u32 %v371, 4294901760
      %v3594 = vsub.f32 %v371, %v3593
      %v3595 = vand.u32 %v3594, 4294901760
      %3596 = vmatmul.f32.gmra.mxu0 %v3595
      %v3597 = vpop.f32.mrf.mxu0
      %v3598 = vadd.f32 %v3399, %v3597
      %v3599 = vand.u32 %v374, 4294901760
      %v3600 = vsub.f32 %v374, %v3599
      %v3601 = vand.u32 %v3600, 4294901760
      %3602 = vmatmul.f32.gmra.mxu0 %v3601
      %v3603 = vpop.f32.mrf.mxu0
      %v3604 = vadd.f32 %v3404, %v3603
      %v3605 = vand.u32 %v377, 4294901760
      %v3606 = vsub.f32 %v377, %v3605
      %v3607 = vand.u32 %v3606, 4294901760
      %3608 = vmatmul.f32.gmra.mxu0 %v3607
      %v3609 = vpop.f32.mrf.mxu0
      %v3610 = vadd.f32 %v3409, %v3609
      %v3611 = vand.u32 %v380, 4294901760
      %v3612 = vsub.f32 %v380, %v3611
      %v3613 = vand.u32 %v3612, 4294901760
      %3614 = vmatmul.f32.gmra.mxu0 %v3613
      %v3615 = vpop.f32.mrf.mxu0
      %v3616 = vadd.f32 %v3414, %v3615
      %v3617 = vand.u32 %v383, 4294901760
      %v3618 = vsub.f32 %v383, %v3617
      %v3619 = vand.u32 %v3618, 4294901760
      %3620 = vmatmul.f32.gmra.mxu0 %v3619
      %v3621 = vpop.f32.mrf.mxu0
      %v3622 = vadd.f32 %v3419, %v3621
      %v3623 = vand.u32 %v386, 4294901760
      %v3624 = vsub.f32 %v386, %v3623
      %v3625 = vand.u32 %v3624, 4294901760
      %3626 = vmatmul.f32.gmra.mxu0 %v3625
      %v3627 = vpop.f32.mrf.mxu0
      %v3628 = vadd.f32 %v3424, %v3627
      %v3629 = vand.u32 %v389, 4294901760
      %v3630 = vsub.f32 %v389, %v3629
      %v3631 = vand.u32 %v3630, 4294901760
      %3632 = vmatmul.f32.gmra.mxu0 %v3631
      %v3633 = vpop.f32.mrf.mxu0
      %v3634 = vadd.f32 %v3429, %v3633
      %v3635 = vand.u32 %v392, 4294901760
      %v3636 = vsub.f32 %v392, %v3635
      %v3637 = vand.u32 %v3636, 4294901760
      %3638 = vmatmul.f32.gmra.mxu0 %v3637
      %v3639 = vpop.f32.mrf.mxu0
      %v3640 = vadd.f32 %v3434, %v3639
      %v3641 = vand.u32 %v395, 4294901760
      %v3642 = vsub.f32 %v395, %v3641
      %v3643 = vand.u32 %v3642, 4294901760
      %3644 = vmatmul.f32.gmra.mxu0 %v3643
      %v3645 = vpop.f32.mrf.mxu0
      %v3646 = vadd.f32 %v3439, %v3645
      %v3647 = vand.u32 %v398, 4294901760
      %v3648 = vsub.f32 %v398, %v3647
      %v3649 = vand.u32 %v3648, 4294901760
      %3650 = vmatmul.f32.gmra.mxu0 %v3649
      %v3651 = vpop.f32.mrf.mxu0
      %v3652 = vadd.f32 %v3444, %v3651
      %v3653 = vand.u32 %v401, 4294901760
      %v3654 = vsub.f32 %v401, %v3653
      %v3655 = vand.u32 %v3654, 4294901760
      %3656 = vmatmul.f32.gmra.mxu0 %v3655
      %v3657 = vpop.f32.mrf.mxu0
      %v3658 = vadd.f32 %v3449, %v3657
      %v3659 = vand.u32 %v404, 4294901760
      %v3660 = vsub.f32 %v404, %v3659
      %v3661 = vand.u32 %v3660, 4294901760
      %3662 = vmatmul.f32.gmra.mxu0 %v3661
      %v3663 = vpop.f32.mrf.mxu0
      %v3664 = vadd.f32 %v3454, %v3663
      %v3665 = vand.u32 %v407, 4294901760
      %v3666 = vsub.f32 %v407, %v3665
      %v3667 = vand.u32 %v3666, 4294901760
      %3668 = vmatmul.f32.gmra.mxu0 %v3667
      %v3669 = vpop.f32.mrf.mxu0
      %v3670 = vadd.f32 %v3459, %v3669
      %v3671 = vand.u32 %v410, 4294901760
      %v3672 = vsub.f32 %v410, %v3671
      %v3673 = vand.u32 %v3672, 4294901760
      %3674 = vmatmul.f32.gmra.mxu0 %v3673
      %v3675 = vpop.f32.mrf.mxu0
      %v3676 = vadd.f32 %v3464, %v3675
      %v3677 = vand.u32 %v413, 4294901760
      %v3678 = vsub.f32 %v413, %v3677
      %v3679 = vand.u32 %v3678, 4294901760
      %3680 = vmatmul.f32.gmra.mxu0 %v3679
      %v3681 = vpop.f32.mrf.mxu0
      %v3682 = vadd.f32 %v3469, %v3681
      %3683 = vdwg.mxu0
      %3684 = vmatpush.msra.mxu0 0.0
      %3685 = vmatpush.msra.mxu0 0.0
      %3686 = vmatpush.msra.mxu0 0.0
      %3687 = vmatpush.msra.mxu0 0.0
      %3688 = vmatpush.msra.mxu0 0.0
      %3689 = vmatpush.msra.mxu0 0.0
      %3690 = vmatpush.msra.mxu0 0.0
      %3691 = vmatpush.msra.mxu0 0.0
      %3692 = vmatpush.msra.mxu0 0.0
      %3693 = vmatpush.msra.mxu0 0.0
      %3694 = vmatpush.msra.mxu0 0.0
      %3695 = vmatpush.msra.mxu0 0.0
      %v3696 = vand.u32 %v2843, 4294901760
      %v3697 = vsub.f32 %v2843, %v3696
      %v3698 = vand.u32 %v3697, 4294901760
      %3699 = vmatpush.msra.mxu0 %v3698
      %v3700 = vand.u32 %v2842, 4294901760
      %v3701 = vsub.f32 %v2842, %v3700
      %v3702 = vand.u32 %v3701, 4294901760
      %3703 = vmatpush.msra.mxu0 %v3702
      %v3704 = vand.u32 %v2841, 4294901760
      %v3705 = vsub.f32 %v2841, %v3704
      %v3706 = vand.u32 %v3705, 4294901760
      %3707 = vmatpush.msra.mxu0 %v3706
      %v3708 = vand.u32 %v2840, 4294901760
      %v3709 = vsub.f32 %v2840, %v3708
      %v3710 = vand.u32 %v3709, 4294901760
      %3711 = vmatpush.msra.mxu0 %v3710
      %v3712 = vand.u32 %v320, 4294901760
      %3713 = vmatmul.f32.gmra.mxu0 %v3712
      %v3714 = vpop.f32.mrf.mxu0
      %v3715 = vadd.f32 %v3496, %v3714
      %v3716 = vand.u32 %v323, 4294901760
      %3717 = vmatmul.f32.gmra.mxu0 %v3716
      %v3718 = vpop.f32.mrf.mxu0
      %v3719 = vadd.f32 %v3502, %v3718
      %v3720 = vand.u32 %v326, 4294901760
      %3721 = vmatmul.f32.gmra.mxu0 %v3720
      %v3722 = vpop.f32.mrf.mxu0
      %v3723 = vadd.f32 %v3508, %v3722
      %v3724 = vand.u32 %v329, 4294901760
      %3725 = vmatmul.f32.gmra.mxu0 %v3724
      %v3726 = vpop.f32.mrf.mxu0
      %v3727 = vadd.f32 %v3514, %v3726
      %v3728 = vand.u32 %v332, 4294901760
      %3729 = vmatmul.f32.gmra.mxu0 %v3728
      %v3730 = vpop.f32.mrf.mxu0
      %v3731 = vadd.f32 %v3520, %v3730
      %v3732 = vand.u32 %v335, 4294901760
      %3733 = vmatmul.f32.gmra.mxu0 %v3732
      %v3734 = vpop.f32.mrf.mxu0
      %v3735 = vadd.f32 %v3526, %v3734
      %v3736 = vand.u32 %v338, 4294901760
      %3737 = vmatmul.f32.gmra.mxu0 %v3736
      %v3738 = vpop.f32.mrf.mxu0
      %v3739 = vadd.f32 %v3532, %v3738
      %v3740 = vand.u32 %v341, 4294901760
      %3741 = vmatmul.f32.gmra.mxu0 %v3740
      %v3742 = vpop.f32.mrf.mxu0
      %v3743 = vadd.f32 %v3538, %v3742
      %v3744 = vand.u32 %v344, 4294901760
      %3745 = vmatmul.f32.gmra.mxu0 %v3744
      %v3746 = vpop.f32.mrf.mxu0
      %v3747 = vadd.f32 %v3544, %v3746
      %v3748 = vand.u32 %v347, 4294901760
      %3749 = vmatmul.f32.gmra.mxu0 %v3748
      %v3750 = vpop.f32.mrf.mxu0
      %v3751 = vadd.f32 %v3550, %v3750
      %v3752 = vand.u32 %v350, 4294901760
      %3753 = vmatmul.f32.gmra.mxu0 %v3752
      %v3754 = vpop.f32.mrf.mxu0
      %v3755 = vadd.f32 %v3556, %v3754
      %v3756 = vand.u32 %v353, 4294901760
      %3757 = vmatmul.f32.gmra.mxu0 %v3756
      %v3758 = vpop.f32.mrf.mxu0
      %v3759 = vadd.f32 %v3562, %v3758
      %v3760 = vand.u32 %v356, 4294901760
      %3761 = vmatmul.f32.gmra.mxu0 %v3760
      %v3762 = vpop.f32.mrf.mxu0
      %v3763 = vadd.f32 %v3568, %v3762
      %v3764 = vand.u32 %v359, 4294901760
      %3765 = vmatmul.f32.gmra.mxu0 %v3764
      %v3766 = vpop.f32.mrf.mxu0
      %v3767 = vadd.f32 %v3574, %v3766
      %v3768 = vand.u32 %v362, 4294901760
      %3769 = vmatmul.f32.gmra.mxu0 %v3768
      %v3770 = vpop.f32.mrf.mxu0
      %v3771 = vadd.f32 %v3580, %v3770
      %v3772 = vand.u32 %v365, 4294901760
      %3773 = vmatmul.f32.gmra.mxu0 %v3772
      %v3774 = vpop.f32.mrf.mxu0
      %v3775 = vadd.f32 %v3586, %v3774
      %v3776 = vand.u32 %v368, 4294901760
      %3777 = vmatmul.f32.gmra.mxu0 %v3776
      %v3778 = vpop.f32.mrf.mxu0
      %v3779 = vadd.f32 %v3592, %v3778
      %v3780 = vand.u32 %v371, 4294901760
      %3781 = vmatmul.f32.gmra.mxu0 %v3780
      %v3782 = vpop.f32.mrf.mxu0
      %v3783 = vadd.f32 %v3598, %v3782
      %v3784 = vand.u32 %v374, 4294901760
      %3785 = vmatmul.f32.gmra.mxu0 %v3784
      %v3786 = vpop.f32.mrf.mxu0
      %v3787 = vadd.f32 %v3604, %v3786
      %v3788 = vand.u32 %v377, 4294901760
      %3789 = vmatmul.f32.gmra.mxu0 %v3788
      %v3790 = vpop.f32.mrf.mxu0
      %v3791 = vadd.f32 %v3610, %v3790
      %v3792 = vand.u32 %v380, 4294901760
      %3793 = vmatmul.f32.gmra.mxu0 %v3792
      %v3794 = vpop.f32.mrf.mxu0
      %v3795 = vadd.f32 %v3616, %v3794
      %v3796 = vand.u32 %v383, 4294901760
      %3797 = vmatmul.f32.gmra.mxu0 %v3796
      %v3798 = vpop.f32.mrf.mxu0
      %v3799 = vadd.f32 %v3622, %v3798
      %v3800 = vand.u32 %v386, 4294901760
      %3801 = vmatmul.f32.gmra.mxu0 %v3800
      %v3802 = vpop.f32.mrf.mxu0
      %v3803 = vadd.f32 %v3628, %v3802
      %v3804 = vand.u32 %v389, 4294901760
      %3805 = vmatmul.f32.gmra.mxu0 %v3804
      %v3806 = vpop.f32.mrf.mxu0
      %v3807 = vadd.f32 %v3634, %v3806
      %v3808 = vand.u32 %v392, 4294901760
      %3809 = vmatmul.f32.gmra.mxu0 %v3808
      %v3810 = vpop.f32.mrf.mxu0
      %v3811 = vadd.f32 %v3640, %v3810
      %v3812 = vand.u32 %v395, 4294901760
      %3813 = vmatmul.f32.gmra.mxu0 %v3812
      %v3814 = vpop.f32.mrf.mxu0
      %v3815 = vadd.f32 %v3646, %v3814
      %v3816 = vand.u32 %v398, 4294901760
      %3817 = vmatmul.f32.gmra.mxu0 %v3816
      %v3818 = vpop.f32.mrf.mxu0
      %v3819 = vadd.f32 %v3652, %v3818
      %v3820 = vand.u32 %v401, 4294901760
      %3821 = vmatmul.f32.gmra.mxu0 %v3820
      %v3822 = vpop.f32.mrf.mxu0
      %v3823 = vadd.f32 %v3658, %v3822
      %v3824 = vand.u32 %v404, 4294901760
      %3825 = vmatmul.f32.gmra.mxu0 %v3824
      %v3826 = vpop.f32.mrf.mxu0
      %v3827 = vadd.f32 %v3664, %v3826
      %v3828 = vand.u32 %v407, 4294901760
      %3829 = vmatmul.f32.gmra.mxu0 %v3828
      %v3830 = vpop.f32.mrf.mxu0
      %v3831 = vadd.f32 %v3670, %v3830
      %v3832 = vand.u32 %v410, 4294901760
      %3833 = vmatmul.f32.gmra.mxu0 %v3832
      %v3834 = vpop.f32.mrf.mxu0
      %v3835 = vadd.f32 %v3676, %v3834
      %v3836 = vand.u32 %v413, 4294901760
      %3837 = vmatmul.f32.gmra.mxu0 %v3836
      %v3838 = vpop.f32.mrf.mxu0
      %v3839 = vadd.f32 %v3682, %v3838
      %3840 = vdwg.mxu0
      %3841 = vmatpush.msra.mxu0 0.0
      %3842 = vmatpush.msra.mxu0 0.0
      %3843 = vmatpush.msra.mxu0 0.0
      %3844 = vmatpush.msra.mxu0 0.0
      %3845 = vmatpush.msra.mxu0 0.0
      %3846 = vmatpush.msra.mxu0 0.0
      %3847 = vmatpush.msra.mxu0 0.0
      %3848 = vmatpush.msra.mxu0 0.0
      %3849 = vmatpush.msra.mxu0 0.0
      %3850 = vmatpush.msra.mxu0 0.0
      %3851 = vmatpush.msra.mxu0 0.0
      %3852 = vmatpush.msra.mxu0 0.0
      %v3853 = vand.u32 %v2843, 4294901760
      %3854 = vmatpush.msra.mxu0 %v3853
      %v3855 = vand.u32 %v2842, 4294901760
      %3856 = vmatpush.msra.mxu0 %v3855
      %v3857 = vand.u32 %v2841, 4294901760
      %3858 = vmatpush.msra.mxu0 %v3857
      %v3859 = vand.u32 %v2840, 4294901760
      %3860 = vmatpush.msra.mxu0 %v3859
      %v3861 = vand.u32 %v320, 4294901760
      %3862 = vmatmul.f32.gmra.mxu0 %v3861
      %v3863 = vpop.f32.mrf.mxu0
      %v3864 = vadd.f32 %v3715, %v3863
      %v3865 = vand.u32 %v323, 4294901760
      %3866 = vmatmul.f32.gmra.mxu0 %v3865
      %v3867 = vpop.f32.mrf.mxu0
      %v3868 = vadd.f32 %v3719, %v3867
      %v3869 = vand.u32 %v326, 4294901760
      %3870 = vmatmul.f32.gmra.mxu0 %v3869
      %v3871 = vpop.f32.mrf.mxu0
      %v3872 = vadd.f32 %v3723, %v3871
      %v3873 = vand.u32 %v329, 4294901760
      %3874 = vmatmul.f32.gmra.mxu0 %v3873
      %v3875 = vpop.f32.mrf.mxu0
      %v3876 = vadd.f32 %v3727, %v3875
      %v3877 = vand.u32 %v332, 4294901760
      %3878 = vmatmul.f32.gmra.mxu0 %v3877
      %v3879 = vpop.f32.mrf.mxu0
      %v3880 = vadd.f32 %v3731, %v3879
      %v3881 = vand.u32 %v335, 4294901760
      %3882 = vmatmul.f32.gmra.mxu0 %v3881
      %v3883 = vpop.f32.mrf.mxu0
      %v3884 = vadd.f32 %v3735, %v3883
      %v3885 = vand.u32 %v338, 4294901760
      %3886 = vmatmul.f32.gmra.mxu0 %v3885
      %v3887 = vpop.f32.mrf.mxu0
      %v3888 = vadd.f32 %v3739, %v3887
      %v3889 = vand.u32 %v341, 4294901760
      %3890 = vmatmul.f32.gmra.mxu0 %v3889
      %v3891 = vpop.f32.mrf.mxu0
      %v3892 = vadd.f32 %v3743, %v3891
      %v3893 = vand.u32 %v344, 4294901760
      %3894 = vmatmul.f32.gmra.mxu0 %v3893
      %v3895 = vpop.f32.mrf.mxu0
      %v3896 = vadd.f32 %v3747, %v3895
      %v3897 = vand.u32 %v347, 4294901760
      %3898 = vmatmul.f32.gmra.mxu0 %v3897
      %v3899 = vpop.f32.mrf.mxu0
      %v3900 = vadd.f32 %v3751, %v3899
      %v3901 = vand.u32 %v350, 4294901760
      %3902 = vmatmul.f32.gmra.mxu0 %v3901
      %v3903 = vpop.f32.mrf.mxu0
      %v3904 = vadd.f32 %v3755, %v3903
      %v3905 = vand.u32 %v353, 4294901760
      %3906 = vmatmul.f32.gmra.mxu0 %v3905
      %v3907 = vpop.f32.mrf.mxu0
      %v3908 = vadd.f32 %v3759, %v3907
      %v3909 = vand.u32 %v356, 4294901760
      %3910 = vmatmul.f32.gmra.mxu0 %v3909
      %v3911 = vpop.f32.mrf.mxu0
      %v3912 = vadd.f32 %v3763, %v3911
      %v3913 = vand.u32 %v359, 4294901760
      %3914 = vmatmul.f32.gmra.mxu0 %v3913
      %v3915 = vpop.f32.mrf.mxu0
      %v3916 = vadd.f32 %v3767, %v3915
      %v3917 = vand.u32 %v362, 4294901760
      %3918 = vmatmul.f32.gmra.mxu0 %v3917
      %v3919 = vpop.f32.mrf.mxu0
      %v3920 = vadd.f32 %v3771, %v3919
      %v3921 = vand.u32 %v365, 4294901760
      %3922 = vmatmul.f32.gmra.mxu0 %v3921
      %v3923 = vpop.f32.mrf.mxu0
      %v3924 = vadd.f32 %v3775, %v3923
      %v3925 = vand.u32 %v368, 4294901760
      %3926 = vmatmul.f32.gmra.mxu0 %v3925
      %v3927 = vpop.f32.mrf.mxu0
      %v3928 = vadd.f32 %v3779, %v3927
      %v3929 = vand.u32 %v371, 4294901760
      %3930 = vmatmul.f32.gmra.mxu0 %v3929
      %v3931 = vpop.f32.mrf.mxu0
      %v3932 = vadd.f32 %v3783, %v3931
      %v3933 = vand.u32 %v374, 4294901760
      %3934 = vmatmul.f32.gmra.mxu0 %v3933
      %v3935 = vpop.f32.mrf.mxu0
      %v3936 = vadd.f32 %v3787, %v3935
      %v3937 = vand.u32 %v377, 4294901760
      %3938 = vmatmul.f32.gmra.mxu0 %v3937
      %v3939 = vpop.f32.mrf.mxu0
      %v3940 = vadd.f32 %v3791, %v3939
      %v3941 = vand.u32 %v380, 4294901760
      %3942 = vmatmul.f32.gmra.mxu0 %v3941
      %v3943 = vpop.f32.mrf.mxu0
      %v3944 = vadd.f32 %v3795, %v3943
      %v3945 = vand.u32 %v383, 4294901760
      %3946 = vmatmul.f32.gmra.mxu0 %v3945
      %v3947 = vpop.f32.mrf.mxu0
      %v3948 = vadd.f32 %v3799, %v3947
      %v3949 = vand.u32 %v386, 4294901760
      %3950 = vmatmul.f32.gmra.mxu0 %v3949
      %v3951 = vpop.f32.mrf.mxu0
      %v3952 = vadd.f32 %v3803, %v3951
      %v3953 = vand.u32 %v389, 4294901760
      %3954 = vmatmul.f32.gmra.mxu0 %v3953
      %v3955 = vpop.f32.mrf.mxu0
      %v3956 = vadd.f32 %v3807, %v3955
      %v3957 = vand.u32 %v392, 4294901760
      %3958 = vmatmul.f32.gmra.mxu0 %v3957
      %v3959 = vpop.f32.mrf.mxu0
      %v3960 = vadd.f32 %v3811, %v3959
      %v3961 = vand.u32 %v395, 4294901760
      %3962 = vmatmul.f32.gmra.mxu0 %v3961
      %v3963 = vpop.f32.mrf.mxu0
      %v3964 = vadd.f32 %v3815, %v3963
      %v3965 = vand.u32 %v398, 4294901760
      %3966 = vmatmul.f32.gmra.mxu0 %v3965
      %v3967 = vpop.f32.mrf.mxu0
      %v3968 = vadd.f32 %v3819, %v3967
      %v3969 = vand.u32 %v401, 4294901760
      %3970 = vmatmul.f32.gmra.mxu0 %v3969
      %v3971 = vpop.f32.mrf.mxu0
      %v3972 = vadd.f32 %v3823, %v3971
      %v3973 = vand.u32 %v404, 4294901760
      %3974 = vmatmul.f32.gmra.mxu0 %v3973
      %v3975 = vpop.f32.mrf.mxu0
      %v3976 = vadd.f32 %v3827, %v3975
      %v3977 = vand.u32 %v407, 4294901760
      %3978 = vmatmul.f32.gmra.mxu0 %v3977
      %v3979 = vpop.f32.mrf.mxu0
      %v3980 = vadd.f32 %v3831, %v3979
      %v3981 = vand.u32 %v410, 4294901760
      %3982 = vmatmul.f32.gmra.mxu0 %v3981
      %v3983 = vpop.f32.mrf.mxu0
      %v3984 = vadd.f32 %v3835, %v3983
      %v3985 = vand.u32 %v413, 4294901760
      %3986 = vmatmul.f32.gmra.mxu0 %v3985
      %v3987 = vpop.f32.mrf.mxu0
      %v3988 = vadd.f32 %v3839, %v3987
      %3989 = vdwg.mxu0
      %v3990 = vpack.c.bf16 %v3864, %v3864
      %v3991 = vpack.c.bf16 %v3868, %v3868
      %v3992 = vpack.c.bf16 %v3872, %v3872
      %v3993 = vpack.c.bf16 %v3876, %v3876
      %v3994 = vpack.c.bf16 %v3880, %v3880
      %v3995 = vpack.c.bf16 %v3884, %v3884
      %v3996 = vpack.c.bf16 %v3888, %v3888
      %v3997 = vpack.c.bf16 %v3892, %v3892
      %v3998 = vpack.c.bf16 %v3896, %v3896
      %v3999 = vpack.c.bf16 %v3900, %v3900
      %v4000 = vpack.c.bf16 %v3904, %v3904
      %v4001 = vpack.c.bf16 %v3908, %v3908
      %v4002 = vpack.c.bf16 %v3912, %v3912
      %v4003 = vpack.c.bf16 %v3916, %v3916
      %v4004 = vpack.c.bf16 %v3920, %v3920
      %v4005 = vpack.c.bf16 %v3924, %v3924
      %v4006 = vpack.c.bf16 %v3928, %v3928
      %v4007 = vpack.c.bf16 %v3932, %v3932
      %v4008 = vpack.c.bf16 %v3936, %v3936
      %v4009 = vpack.c.bf16 %v3940, %v3940
      %v4010 = vpack.c.bf16 %v3944, %v3944
      %v4011 = vpack.c.bf16 %v3948, %v3948
      %v4012 = vpack.c.bf16 %v3952, %v3952
      %v4013 = vpack.c.bf16 %v3956, %v3956
      %v4014 = vpack.c.bf16 %v3960, %v3960
      %v4015 = vpack.c.bf16 %v3964, %v3964
      %v4016 = vpack.c.bf16 %v3968, %v3968
      %v4017 = vpack.c.bf16 %v3972, %v3972
      %v4018 = vpack.c.bf16 %v3976, %v3976
      %v4019 = vpack.c.bf16 %v3980, %v3980
      %v4020 = vpack.c.bf16 %v3984, %v3984
      %v4021 = vpack.c.bf16 %v3988, %v3988
      %4022 = vst.msk [vmem:[%s280] sm:$0xf] %vm1593, %v3990
      %4023 = vst.msk [vmem:[%s280 + $0x4] sm:$0xf] %vm1593, %v3991
      %4024 = vst.msk [vmem:[%s280 + $0x8] sm:$0xf] %vm1593, %v3992
      %4025 = vst.msk [vmem:[%s280 + $0xc] sm:$0xf] %vm1593, %v3993
      %4026 = vst.msk [vmem:[%s280 + $0x10] sm:$0xf] %vm1593, %v3994
      %4027 = vst.msk [vmem:[%s280 + $0x14] sm:$0xf] %vm1593, %v3995
      %4028 = vst.msk [vmem:[%s280 + $0x18] sm:$0xf] %vm1593, %v3996
      %4029 = vst.msk [vmem:[%s280 + $0x1c] sm:$0xf] %vm1593, %v3997
      %4030 = vst.msk [vmem:[%s280 + $0x20] sm:$0xf] %vm1593, %v3998
      %4031 = vst.msk [vmem:[%s280 + $0x24] sm:$0xf] %vm1593, %v3999
      %4032 = vst.msk [vmem:[%s280 + $0x28] sm:$0xf] %vm1593, %v4000
      %4033 = vst.msk [vmem:[%s280 + $0x2c] sm:$0xf] %vm1593, %v4001
      %4034 = vst.msk [vmem:[%s280 + $0x30] sm:$0xf] %vm1593, %v4002
      %4035 = vst.msk [vmem:[%s280 + $0x34] sm:$0xf] %vm1593, %v4003
      %4036 = vst.msk [vmem:[%s280 + $0x38] sm:$0xf] %vm1593, %v4004
      %4037 = vst.msk [vmem:[%s280 + $0x3c] sm:$0xf] %vm1593, %v4005
      %4038 = vst.msk [vmem:[%s280 + $0x40] sm:$0xf] %vm1593, %v4006
      %4039 = vst.msk [vmem:[%s280 + $0x44] sm:$0xf] %vm1593, %v4007
      %4040 = vst.msk [vmem:[%s280 + $0x48] sm:$0xf] %vm1593, %v4008
      %4041 = vst.msk [vmem:[%s280 + $0x4c] sm:$0xf] %vm1593, %v4009
      %4042 = vst.msk [vmem:[%s280 + $0x50] sm:$0xf] %vm1593, %v4010
      %4043 = vst.msk [vmem:[%s280 + $0x54] sm:$0xf] %vm1593, %v4011
      %4044 = vst.msk [vmem:[%s280 + $0x58] sm:$0xf] %vm1593, %v4012
      %4045 = vst.msk [vmem:[%s280 + $0x5c] sm:$0xf] %vm1593, %v4013
      %4046 = vst.msk [vmem:[%s280 + $0x60] sm:$0xf] %vm1593, %v4014
      %4047 = vst.msk [vmem:[%s280 + $0x64] sm:$0xf] %vm1593, %v4015
      %4048 = vst.msk [vmem:[%s280 + $0x68] sm:$0xf] %vm1593, %v4016
      %4049 = vst.msk [vmem:[%s280 + $0x6c] sm:$0xf] %vm1593, %v4017
      %4050 = vst.msk [vmem:[%s280 + $0x70] sm:$0xf] %vm1593, %v4018
      %4051 = vst.msk [vmem:[%s280 + $0x74] sm:$0xf] %vm1593, %v4019
      %4052 = vst.msk [vmem:[%s280 + $0x78] sm:$0xf] %vm1593, %v4020
      %4053 = vst.msk [vmem:[%s280 + $0x7c] sm:$0xf] %vm1593, %v4021
      %s4054 = smul.u32 32, %s18
      %p4055 = scmp.lt.s32.totalorder %s4054, 63
      %s4056 = scalar_select %p4055, %s4054, 63
      %s4057 = smul.addr %s4056, 4
      %s4058 = scalar_lea.vmem %s4, %s4057
      %s4059 = smul.u32 32, %s18
      %p4060 = scmp.lt.s32.totalorder %s4059, 63
      %s4061 = scalar_select %p4060, %s4059, 63
      %s4062 = smul.addr %s4061, 4
      %s4063 = scalar_lea.vmem %s5, %s4062
      %s4064 = smul.u32 32, %s18
      %p4065 = scmp.lt.s32.totalorder %s4064, 63
      %s4066 = scalar_select %p4065, %s4064, 63
      %s4067 = smul.addr %s4066, 4
      %s4068 = scalar_lea.vmem %s6, %s4067
      // Predicated region
      $region37: #{tpu_custom_call.1} parent=35 // pred_check
        %p4069 = pneg %p125
      $region38: #{tpu_custom_call.1} parent=35 // pred_check_branch
        %4071 = sbr.rel (%p4069) target = $region40
      $region39: #{tpu_custom_call.1} parent=35 // pred_region
        %s4072 = smul.u32 32, %s18
      $region40: #{tpu_custom_call.1} parent=35 // pred_fallthru
        _
      // Predicated region
      $region41: #{tpu_custom_call.1} parent=35 // pred_check
        %p4073 = pneg %p151
      $region42: #{tpu_custom_call.1} parent=35 // pred_check_branch
        %4075 = sbr.rel (%p4073) target = $region44
      $region43: #{tpu_custom_call.1} parent=35 // pred_region
        %s4076 = smul.u32 32, %s18
      $region44: #{tpu_custom_call.1} parent=35 // pred_fallthru
        _
      // Predicated region
      $region45: #{tpu_custom_call.1} parent=35 // pred_check
        %p4077 = pneg %p177
      $region46: #{tpu_custom_call.1} parent=35 // pred_check_branch
        %4079 = sbr.rel (%p4077) target = $region48
      $region47: #{tpu_custom_call.1} parent=35 // pred_region
        %s4080 = smul.u32 32, %s18
      $region48: #{tpu_custom_call.1} parent=35 // pred_fallthru
        _
    $region36: #{tpu_custom_call.1} parent=5 // pred_fallthru
      _
    %p4081 = scmp.le.s32.totalorder 2, %s13
    // Predicated region
    $region49: #{tpu_custom_call.1} parent=5 // pred_check
      %p4082 = pneg %p4081
    $region50: #{tpu_custom_call.1} parent=5 // pred_check_branch
      %4084 = sbr.rel (%p4082) target = $region52
    $region51: #{tpu_custom_call.1} parent=5 // pred_region
      %s4085 = ssub.s32 %s13, 2
      // Predicated region
      $region53: #{tpu_custom_call.1} parent=51 // pred_check
        %p4086 = pneg %p131
      $region54: #{tpu_custom_call.1} parent=51 // pred_check_branch
        %4088 = sbr.rel (%p4086) target = $region56
      $region55: #{tpu_custom_call.1} parent=51 // pred_region
        %s4089 = smul.u32 32, %s19
        %p4090 = scmp.lt.s32.totalorder %s4089, 63
        %s4091 = scalar_select %p4090, %s4089, 63
        %s4092 = smul.addr %s4091, 4
        %s4093 = scalar_lea.vmem %s4, %s4092
      $region56: #{tpu_custom_call.1} parent=51 // pred_fallthru
        _
      // Predicated region
      $region57: #{tpu_custom_call.1} parent=51 // pred_check
        %p4094 = pneg %p157
      $region58: #{tpu_custom_call.1} parent=51 // pred_check_branch
        %4096 = sbr.rel (%p4094) target = $region60
      $region59: #{tpu_custom_call.1} parent=51 // pred_region
        %s4097 = smul.u32 32, %s19
        %p4098 = scmp.lt.s32.totalorder %s4097, 63
        %s4099 = scalar_select %p4098, %s4097, 63
        %s4100 = smul.addr %s4099, 4
        %s4101 = scalar_lea.vmem %s5, %s4100
      $region60: #{tpu_custom_call.1} parent=51 // pred_fallthru
        _
      // Predicated region
      $region61: #{tpu_custom_call.1} parent=51 // pred_check
        %p4102 = pneg %p183
      $region62: #{tpu_custom_call.1} parent=51 // pred_check_branch
        %4104 = sbr.rel (%p4102) target = $region64
      $region63: #{tpu_custom_call.1} parent=51 // pred_region
        %s4105 = smul.u32 32, %s19
        %p4106 = scmp.lt.s32.totalorder %s4105, 63
        %s4107 = scalar_select %p4106, %s4105, 63
        %s4108 = smul.addr %s4107, 4
        %s4109 = scalar_lea.vmem %s6, %s4108
      $region64: #{tpu_custom_call.1} parent=51 // pred_fallthru
        _
    $region52: #{tpu_custom_call.1} parent=5 // pred_fallthru
      _
  $region6: #{tpu_custom_call.1} parent=0 // loop_footer
    %s17 = sadd.s32 1, %s13
  $region7: #{tpu_custom_call.1} parent=0 // loop_footer_branch
    %12 = sbr.rel target = $region3
  $region8: #{tpu_custom_call.1} parent=0 // loop_exit
    _

</llo_original>
